<compile_context>
chip_gen: v6e
topology: v6e:2x2x1
jax: 0.10.0
libtpu: 0.0.40
codegen_flags: <defaults>
</compile_context>

<pallas_src>
import functools
import math

import jax
import jax.numpy as jnp
from jax import lax
from jax.experimental import pallas as pl
from jax.experimental.pallas import tpu as pltpu


def _make_decoder_layer_kernel(n_heads, d_k, eps, tq, s_kv, s_mem, causal):
    scale = 1.0 / math.sqrt(d_k)
    neg_inf = -1e9  # mask/score math kept in f32 (-1e9 would saturate in bf16)

    def kernel(xq_ref, xkv_ref, mem_ref, tgt_kpad_ref, src_kpad_ref,
               wqkv_self_ref, bqkv_self_ref, wo_self_ref, bo_self_ref,
               wqkv_src_ref, bqkv_src_ref, wo_src_ref, bo_src_ref,
               w1_ref, b1_ref, w2_ref, b2_ref,
               ln_a_ref, ln_b_ref, o_ref):
        q0 = pl.program_id(1) * tq

        xq_bf = xq_ref[0]            # (tq, D)   bf16 query tile
        xkv_bf = xkv_ref[0]          # (S, D)    bf16 full sequence (self-attn K/V)
        mem_bf = mem_ref[0]          # (S_m, D)  bf16 encoder memory

        d_model = xq_bf.shape[-1]

        # ---- masks built in-kernel: cheap VPU iota/compare, no O(S^2) DMA -------
        tgt_keep = tgt_kpad_ref[0] > 0                               # (1, S) bool
        if causal:
            row = lax.broadcasted_iota(jnp.int32, (tq, s_kv), 0) + q0
            col = lax.broadcasted_iota(jnp.int32, (tq, s_kv), 1)
            tgt_keep = jnp.logical_and(col <= row, tgt_keep)         # (tq, S)
        else:
            tgt_keep = jnp.broadcast_to(tgt_keep, (tq, s_kv))
        src_keep = jnp.broadcast_to(src_kpad_ref[0] > 0, (tq, s_mem))

        def mha(q_in_bf, kv_in_bf, keep, wqkv_ref, bqkv_ref, wo_ref, bo_ref):
            # Head-major packed weights (packed once at init time):
            #   wqkv: (3, H, d_k, D) bf16, bqkv: (3, H, 1, d_k) f32
            #   wo:   (H, D, d_k)    bf16, bo:   (1, D)        f32
            acc = jnp.zeros((q_in_bf.shape[0], d_model), jnp.float32)
            # NOTE: Python loop is fine for small H; switch to lax.fori_loop for
            # large H to bound per-head live ranges (per perf review).
            for h in range(n_heads):
                q_h = lax.dot_general(q_in_bf, wqkv_ref[0, h],
                                      (((1,), (1,)), ((), ())),
                                      preferred_element_type=jnp.float32) + bqkv_ref[0, h]
                k_h = lax.dot_general(kv_in_bf, wqkv_ref[1, h],
                                      (((1,), (1,)), ((), ())),
                                      preferred_element_type=jnp.float32) + bqkv_ref[1, h]
                v_h = lax.dot_general(kv_in_bf, wqkv_ref[2, h],
                                      (((1,), (1,)), ((), ())),
                                      preferred_element_type=jnp.float32) + bqkv_ref[2, h]
                # Scores / softmax in f32 (EUP/XLU); matmul operands in bf16 (MXU).
                s = lax.dot_general(q_h.astype(jnp.bfloat16), k_h.astype(jnp.bfloat16),
                                    (((1,), (1,)), ((), ())),
                                    preferred_element_type=jnp.float32) * scale
                s = jnp.where(keep, s, neg_inf)
                s = s - jnp.max(s, axis=-1, keepdims=True)
                e = jnp.exp(s)
                inv_denom = pl.reciprocal(jnp.sum(e, axis=-1, keepdims=True), approx=True)
                p_bf = (e * inv_denom).astype(jnp.bfloat16)
                head = jnp.dot(p_bf, v_h.astype(jnp.bfloat16),
                               preferred_element_type=jnp.float32)
                # concat(heads) @ Wo^T == sum_h head_h @ Wo[:, h*dk:(h+1)*dk]^T
                acc = acc + lax.dot_general(head.astype(jnp.bfloat16), wo_ref[h],
                                            (((1,), (1,)), ((), ())),
                                            preferred_element_type=jnp.float32)
            return acc + bo_ref[...]

        def layer_norm(v, idx):
            a = ln_a_ref[idx]                       # (1, D) f32
            b = ln_b_ref[idx]                       # (1, D) f32
            mean = jnp.mean(v, axis=-1, keepdims=True)
            c = v - mean
            # torch.Tensor.std: unbiased (divide by D-1), eps added to the std.
            var = jnp.sum(c * c, axis=-1, keepdims=True) * (1.0 / (v.shape[-1] - 1))
            inv = pl.reciprocal(jnp.sqrt(var) + eps, approx=False)   # (tq, 1) vector
            return a * (c * inv) + b

        # TODO(synk): dropout treated as identity (eval mode); training-mode dropout
        # would need pltpu.prng_seed / pltpu.prng_random_bits masks.

        # Sublayer 0: self-attention (Q = query tile, K/V = full sequence) + post-norm.
        x32 = xq_bf.astype(jnp.float32)
        x32 = layer_norm(x32 + mha(xq_bf, xkv_bf, tgt_keep,
                                   wqkv_self_ref, bqkv_self_ref,
                                   wo_self_ref, bo_self_ref), 0)
        # Sublayer 1: source attention over encoder memory.
        x32 = layer_norm(x32 + mha(x32.astype(jnp.bfloat16), mem_bf, src_keep,
                                   wqkv_src_ref, bqkv_src_ref,
                                   wo_src_ref, bo_src_ref), 1)
        # Sublayer 2: position-wise feed-forward.
        h1 = jnp.maximum(
            lax.dot_general(x32.astype(jnp.bfloat16), w1_ref[...],
                            (((1,), (1,)), ((), ())),
                            preferred_element_type=jnp.float32) + b1_ref[...], 0.0)
        ff = lax.dot_general(h1.astype(jnp.bfloat16), w2_ref[...],
                             (((1,), (1,)), ((), ())),
                             preferred_element_type=jnp.float32) + b2_ref[...]
        x32 = layer_norm(x32 + ff, 2)

        # NOTE: at production D >= 128 this is a lane-dense store; demo D=32 lowers
        # to masked partial stores (tiny shapes, negligible here).
        o_ref[...] = x32[jnp.newaxis].astype(o_ref.dtype)

    return kernel


def decoder_layer_forward(x, memory, src_key_mask, tgt_key_mask, params, *,
                          n_heads, eps=1e-6, causal=True, tq=256):
    """x: (B, S, D) f32, memory: (B, S_m, D) f32.

    src_key_mask / tgt_key_mask: compact (B, 1, S_m) / (B, 1, S) key-padding masks
    (>0 == attend). The causal part of tgt_mask is generated in-kernel.
    Returns (B, S, D) f32.
    """
    B, S, D = x.shape
    S_m = memory.shape[1]
    assert D % n_heads == 0
    d_k = D // n_heads
    d_ff = params["w1"].shape[0]

    # Query tile: multiples of 256 feed the v6e/v7x 256x256 MXU; clamp for small S.
    tq = min(tq, S)
    assert S % tq == 0 and (tq == S or tq % 8 == 0), "bad query tile"
    n_q = S // tq

    # bf16 at the HBM boundary (halves activation traffic); accumulate in f32.
    x_bf = x.astype(jnp.bfloat16)
    mem_bf = memory.astype(jnp.bfloat16)

    kernel = _make_decoder_layer_kernel(n_heads, d_k, eps, tq, S, S_m, causal)

    def resident(a):       # weights: same block every grid step -> stays in VMEM
        nd = a.ndim
        return pl.BlockSpec(a.shape, lambda b, qi, _nd=nd: (0,) * _nd)

    def per_batch(shape):  # full-per-batch activations / masks
        return pl.BlockSpec(shape, lambda b, qi: (b, 0, 0))

    def per_qtile(shape):  # query-tiled activations / output
        return pl.BlockSpec(shape, lambda b, qi: (b, qi, 0))

    p = params
    # Advisory cost estimate so XLA schedules surrounding ops sensibly.
    flops = B * (12 * S * D * D + 4 * S_m * D * D
                 + 4 * S * S * D + 4 * S * S_m * D + 4 * S * D * d_ff)
    transcendentals = B * S * (S + S_m)
    param_bytes = sum(int(v.size) * v.dtype.itemsize
                      for v in jax.tree_util.tree_leaves(params))
    bytes_accessed = (param_bytes
                      + 2 * B * S * D * 2          # x (query-tile view + full view), bf16
                      + B * S_m * D * 2            # memory, bf16
                      + 4 * B * (S + S_m)          # compact key-padding masks
                      + B * S * D * 4)             # f32 output
    cost = pl.CostEstimate(flops=int(flops), transcendentals=int(transcendentals),
                           bytes_accessed=int(bytes_accessed))

    return pl.pallas_call(
        kernel,
        out_shape=jax.ShapeDtypeStruct((B, S, D), jnp.float32),
        grid=(B, n_q),
        in_specs=[
            per_qtile((1, tq, D)),        # x, query tile
            per_batch((1, S, D)),         # x, full sequence (self-attn K/V)
            per_batch((1, S_m, D)),       # memory
            per_batch((1, 1, S)),         # tgt key-padding mask (compact)
            per_batch((1, 1, S_m)),       # src key-padding mask (compact)
            resident(p["wqkv_self"]), resident(p["bqkv_self"]),
            resident(p["wo_self"]), resident(p["bo_self"]),
            resident(p["wqkv_src"]), resident(p["bqkv_src"]),
            resident(p["wo_src"]), resident(p["bo_src"]),
            resident(p["w1"]), resident(p["b1"]),
            resident(p["w2"]), resident(p["b2"]),
            resident(p["ln_a"]), resident(p["ln_b"]),
        ],
        out_specs=per_qtile((1, tq, D)),
        compiler_params=pltpu.CompilerParams(
            dimension_semantics=("parallel", "parallel"),   # batch x query-tile
            vmem_limit_bytes=64 * 1024 * 1024,              # explicit VMEM budget
        ),
        cost_estimate=cost,
    )(x_bf, x_bf, mem_bf, tgt_key_mask, src_key_mask,
      p["wqkv_self"], p["bqkv_self"], p["wo_self"], p["bo_self"],
      p["wqkv_src"], p["bqkv_src"], p["wo_src"], p["bo_src"],
      p["w1"], p["b1"], p["w2"], p["b2"],
      p["ln_a"], p["ln_b"])


def init_params(key, d_model, d_ff, n_heads):
    """Static, init-time packing. Returns (kernel_params, reference_params)."""
    d_k = d_model // n_heads
    ks = iter(jax.random.split(key, 24))

    def lin(out_f, in_f):
        bound = 1.0 / math.sqrt(in_f)
        w = jax.random.uniform(next(ks), (out_f, in_f), jnp.float32, -bound, bound)
        b = jax.random.uniform(next(ks), (out_f,), jnp.float32, -bound, bound)
        return w, b

    def attn():  # q, k, v, o projections (PyTorch (out, in) layout)
        ws, bs = zip(*[lin(d_model, d_model) for _ in range(4)])
        return list(ws), list(bs)

    w_self, b_self = attn()
    w_src, b_src = attn()
    w1, b1 = lin(d_ff, d_model)
    w2, b2 = lin(d_model, d_ff)
    ln_a = 1.0 + 0.1 * jax.random.normal(next(ks), (3, 1, d_model), jnp.float32)
    ln_b = 0.1 * jax.random.normal(next(ks), (3, 1, d_model), jnp.float32)

    # f32 / PyTorch-layout params for the pure-JAX reference.
    ref = dict(
        w_self=jnp.stack(w_self), b_self=jnp.stack([b[None] for b in b_self]),
        w_src=jnp.stack(w_src), b_src=jnp.stack([b[None] for b in b_src]),
        w1=w1, b1=b1[None], w2=w2, b2=b2[None], ln_a=ln_a, ln_b=ln_b)

    # Kernel packing: head-major bf16 weights, f32 biases / LayerNorm params.
    def pack_attn(ws, bs):
        wq, wk, wv, wo = ws
        bq, bk, bv, bo = bs
        wqkv = jnp.stack([w.reshape(n_heads, d_k, d_model) for w in (wq, wk, wv)])
        bqkv = jnp.stack([b.reshape(n_heads, 1, d_k) for b in (bq, bk, bv)])
        wo_hm = wo.reshape(d_model, n_heads, d_k).transpose(1, 0, 2)   # (H, D, d_k)
        return (wqkv.astype(jnp.bfloat16), bqkv,
                wo_hm.astype(jnp.bfloat16), bo.reshape(1, d_model))

    wqkv_self, bqkv_self, wo_self, bo_self = pack_attn(w_self, b_self)
    wqkv_src, bqkv_src, wo_src, bo_src = pack_attn(w_src, b_src)
    packed = dict(
        wqkv_self=wqkv_self, bqkv_self=bqkv_self, wo_self=wo_self, bo_self=bo_self,
        wqkv_src=wqkv_src, bqkv_src=bqkv_src, wo_src=wo_src, bo_src=bo_src,
        w1=w1.astype(jnp.bfloat16), b1=b1[None],
        w2=w2.astype(jnp.bfloat16), b2=b2[None],
        ln_a=ln_a, ln_b=ln_b)
    return packed, ref


def reference_forward(x, memory, src_mask, tgt_mask, p, n_heads, eps=1e-6):
    """Pure-JAX f32 reference with the PyTorch module's exact semantics."""
    def linear(v, w, b):
        return jnp.einsum("bsi,oi->bso", v, w) + b

    def mha(q_in, kv_in, mask, w, b):
        q, k, v = (linear(q_in, w[0], b[0]),
                   linear(kv_in, w[1], b[1]),
                   linear(kv_in, w[2], b[2]))
        B_, Sq, D = q.shape
        Sk = k.shape[1]
        dk = D // n_heads
        qh = q.reshape(B_, Sq, n_heads, dk).transpose(0, 2, 1, 3)
        kh = k.reshape(B_, Sk, n_heads, dk).transpose(0, 2, 1, 3)
        vh = v.reshape(B_, Sk, n_heads, dk).transpose(0, 2, 1, 3)
        s = jnp.einsum("bhqd,bhkd->bhqk", qh, kh) / math.sqrt(dk)
        s = jnp.where(mask[:, None] > 0, s, -1e9)
        pr = jax.nn.softmax(s, axis=-1)
        o = jnp.einsum("bhqk,bhkd->bhqd", pr, vh).transpose(0, 2, 1, 3).reshape(B_, Sq, D)
        return linear(o, w[3], b[3])

    def layer_norm(v, a, bb):
        mean = v.mean(-1, keepdims=True)
        c = v - mean
        var = (c ** 2).sum(-1, keepdims=True) / (v.shape[-1] - 1)
        return a * c / (jnp.sqrt(var) + eps) + bb

    h = layer_norm(x + mha(x, x, tgt_mask, p["w_self"], p["b_self"]),
                   p["ln_a"][0], p["ln_b"][0])
    h = layer_norm(h + mha(h, memory, src_mask, p["w_src"], p["b_src"]),
                   p["ln_a"][1], p["ln_b"][1])
    ff = linear(jnp.maximum(linear(h, p["w1"], p["b1"]), 0.0), p["w2"], p["b2"])
    return layer_norm(h + ff, p["ln_a"][2], p["ln_b"][2])


if __name__ == "__main__":
    # Small shapes consistent with the module: batch=2, seq=8, d_model=32, heads=4, d_ff=64.
    B, S, S_MEM, D, H, D_FF = 2, 8, 8, 32, 4, 64

    key = jax.random.PRNGKey(0)
    kx, km, kp = jax.random.split(key, 3)

    x = jax.random.normal(kx, (B, S, D), jnp.float32)
    memory = jax.random.normal(km, (B, S_MEM, D), jnp.float32)

    # Kernel takes compact key-padding masks; the causal part of tgt_mask is
    # generated in-kernel. int32 here for maximal lowering safety; int8 would
    # shrink them a further 4x (negligible vs. removing the (B,S,S) f32 masks).
    tgt_kpad = jnp.ones((B, 1, S), jnp.int32)
    src_kpad = jnp.ones((B, 1, S_MEM), jnp.int32)
    # TODO(synk): arbitrary dense (B,S,S) tgt masks (beyond causal+key-padding)
    # would need the old O(S^2) mask input path.

    params, ref_params = init_params(kp, D, D_FF, H)

    fwd = jax.jit(functools.partial(decoder_layer_forward, n_heads=H, causal=True))
    out = fwd(x, memory, src_kpad, tgt_kpad, params)
    out = jax.block_until_ready(out)

    # Dense f32 masks with the same semantics for the f32 reference.
    tgt_mask = jnp.broadcast_to(jnp.tril(jnp.ones((S, S), jnp.float32)), (B, S, S))
    src_mask = jnp.ones((B, S, S_MEM), jnp.float32)
    ref = reference_forward(x, memory, src_mask, tgt_mask, ref_params, H)

    assert out.shape == (B, S, D)
    err = float(jnp.max(jnp.abs(out - ref)))
    # Kernel uses bf16 matmul operands (f32 accumulation) per the perf review,
    # so compare against the f32 reference at bf16-level tolerance.
    assert jnp.allclose(out, ref, atol=2e-2, rtol=2e-2), err
    print("KERNEL_OK")
</pallas_src>

<mosaic_0001>
module attributes {stable_mosaic.version = 11 : i64} {
  func.func @kernel(%arg0: i32, %arg1: i32, %arg2: memref<1x8x32xbf16, #tpu.memory_space<vmem>>, %arg3: memref<1x8x32xbf16, #tpu.memory_space<vmem>>, %arg4: memref<1x8x32xbf16, #tpu.memory_space<vmem>>, %arg5: memref<1x1x8xi32, #tpu.memory_space<vmem>>, %arg6: memref<1x1x8xi32, #tpu.memory_space<vmem>>, %arg7: memref<3x4x8x32xbf16, #tpu.memory_space<vmem>>, %arg8: memref<3x4x1x8xf32, #tpu.memory_space<vmem>>, %arg9: memref<4x32x8xbf16, #tpu.memory_space<vmem>>, %arg10: memref<1x32xf32, #tpu.memory_space<vmem>>, %arg11: memref<3x4x8x32xbf16, #tpu.memory_space<vmem>>, %arg12: memref<3x4x1x8xf32, #tpu.memory_space<vmem>>, %arg13: memref<4x32x8xbf16, #tpu.memory_space<vmem>>, %arg14: memref<1x32xf32, #tpu.memory_space<vmem>>, %arg15: memref<64x32xbf16, #tpu.memory_space<vmem>>, %arg16: memref<1x64xf32, #tpu.memory_space<vmem>>, %arg17: memref<32x64xbf16, #tpu.memory_space<vmem>>, %arg18: memref<1x32xf32, #tpu.memory_space<vmem>>, %arg19: memref<3x1x32xf32, #tpu.memory_space<vmem>>, %arg20: memref<3x1x32xf32, #tpu.memory_space<vmem>>, %arg21: memref<1x8x32xf32, #tpu.memory_space<vmem>>) attributes {dimension_semantics = [#tpu.dimension_semantics<parallel>, #tpu.dimension_semantics<parallel>], iteration_bounds = array<i64: 2, 1>, scalar_prefetch = 0 : i64, scratch_operands = 0 : i64, tpu.core_type = #tpu.core_type<tc>, window_params = [{transform_indices = @transform_0, window_bounds = array<i64: 1, 8, 32>}, {transform_indices = @transform_1, window_bounds = array<i64: 1, 8, 32>}, {transform_indices = @transform_2, window_bounds = array<i64: 1, 8, 32>}, {transform_indices = @transform_3, window_bounds = array<i64: 1, 1, 8>}, {transform_indices = @transform_4, window_bounds = array<i64: 1, 1, 8>}, {pipeline_mode = #tpu.pipeline_mode<synchronous>, transform_indices = @transform_5, window_bounds = array<i64: 3, 4, 8, 32>}, {pipeline_mode = #tpu.pipeline_mode<synchronous>, transform_indices = @transform_6, window_bounds = array<i64: 3, 4, 1, 8>}, {pipeline_mode = #tpu.pipeline_mode<synchronous>, transform_indices = @transform_7, window_bounds = array<i64: 4, 32, 8>}, {pipeline_mode = #tpu.pipeline_mode<synchronous>, transform_indices = @transform_8, window_bounds = array<i64: 1, 32>}, {pipeline_mode = #tpu.pipeline_mode<synchronous>, transform_indices = @transform_9, window_bounds = array<i64: 3, 4, 8, 32>}, {pipeline_mode = #tpu.pipeline_mode<synchronous>, transform_indices = @transform_10, window_bounds = array<i64: 3, 4, 1, 8>}, {pipeline_mode = #tpu.pipeline_mode<synchronous>, transform_indices = @transform_11, window_bounds = array<i64: 4, 32, 8>}, {pipeline_mode = #tpu.pipeline_mode<synchronous>, transform_indices = @transform_12, window_bounds = array<i64: 1, 32>}, {pipeline_mode = #tpu.pipeline_mode<synchronous>, transform_indices = @transform_13, window_bounds = array<i64: 64, 32>}, {pipeline_mode = #tpu.pipeline_mode<synchronous>, transform_indices = @transform_14, window_bounds = array<i64: 1, 64>}, {pipeline_mode = #tpu.pipeline_mode<synchronous>, transform_indices = @transform_15, window_bounds = array<i64: 32, 64>}, {pipeline_mode = #tpu.pipeline_mode<synchronous>, transform_indices = @transform_16, window_bounds = array<i64: 1, 32>}, {pipeline_mode = #tpu.pipeline_mode<synchronous>, transform_indices = @transform_17, window_bounds = array<i64: 3, 1, 32>}, {pipeline_mode = #tpu.pipeline_mode<synchronous>, transform_indices = @transform_18, window_bounds = array<i64: 3, 1, 32>}, {transform_indices = @transform_19, window_bounds = array<i64: 1, 8, 32>}]} {
    %c8_i32 = arith.constant 8 : i32
    %0 = arith.muli %arg1, %c8_i32 : i32
    %c0 = arith.constant 0 : index
    %c0_0 = arith.constant 0 : index
    %c0_1 = arith.constant 0 : index
    %1 = vector.load %arg2[%c0, %c0_0, %c0_1] : memref<1x8x32xbf16, #tpu.memory_space<vmem>>, vector<1x8x32xbf16>
    %2 = vector.shape_cast %1 : vector<1x8x32xbf16> to vector<8x32xbf16>
    %c0_2 = arith.constant 0 : index
    %c0_3 = arith.constant 0 : index
    %c0_4 = arith.constant 0 : index
    %3 = vector.load %arg3[%c0_2, %c0_3, %c0_4] : memref<1x8x32xbf16, #tpu.memory_space<vmem>>, vector<1x8x32xbf16>
    %4 = vector.shape_cast %3 : vector<1x8x32xbf16> to vector<8x32xbf16>
    %c0_5 = arith.constant 0 : index
    %c0_6 = arith.constant 0 : index
    %c0_7 = arith.constant 0 : index
    %5 = vector.load %arg4[%c0_5, %c0_6, %c0_7] : memref<1x8x32xbf16, #tpu.memory_space<vmem>>, vector<1x8x32xbf16>
    %6 = vector.shape_cast %5 : vector<1x8x32xbf16> to vector<8x32xbf16>
    %c0_8 = arith.constant 0 : index
    %c0_9 = arith.constant 0 : index
    %c0_10 = arith.constant 0 : index
    %7 = vector.load %arg5[%c0_8, %c0_9, %c0_10] : memref<1x1x8xi32, #tpu.memory_space<vmem>>, vector<1x1x8xi32>
    %8 = vector.shape_cast %7 : vector<1x1x8xi32> to vector<1x8xi32>
    %c0_i32 = arith.constant 0 : i32
    %9 = vector.broadcast %c0_i32 : i32 to vector<1x8xi32>
    %10 = arith.cmpi sgt, %8, %9 : vector<1x8xi32>
    %11 = tpu.iota {dimensions = array<i32: 0>} : vector<8x8xi32>
    %12 = vector.broadcast %0 : i32 to vector<8x8xi32>
    %13 = arith.addi %11, %12 : vector<8x8xi32>
    %14 = tpu.iota {dimensions = array<i32: 1>} : vector<8x8xi32>
    %15 = arith.cmpi sle, %14, %13 : vector<8x8xi32>
    %16 = vector.broadcast %10 : vector<1x8xi1> to vector<8x8xi1>
    %17 = arith.andi %15, %16 : vector<8x8xi1>
    %c0_11 = arith.constant 0 : index
    %c0_12 = arith.constant 0 : index
    %c0_13 = arith.constant 0 : index
    %18 = vector.load %arg6[%c0_11, %c0_12, %c0_13] : memref<1x1x8xi32, #tpu.memory_space<vmem>>, vector<1x1x8xi32>
    %19 = vector.shape_cast %18 : vector<1x1x8xi32> to vector<1x8xi32>
    %c0_i32_14 = arith.constant 0 : i32
    %20 = vector.broadcast %c0_i32_14 : i32 to vector<1x8xi32>
    %21 = arith.cmpi sgt, %19, %20 : vector<1x8xi32>
    %22 = vector.shape_cast %21 : vector<1x8xi1> to vector<1x8xi1>
    %23 = vector.broadcast %22 : vector<1x8xi1> to vector<8x8xi1>
    %24 = arith.extf %2 : vector<8x32xbf16> to vector<8x32xf32>
    %cst = arith.constant 0.000000e+00 : f32
    %25 = vector.broadcast %cst : f32 to vector<8x32xf32>
    %c0_15 = arith.constant 0 : index
    %c0_16 = arith.constant 0 : index
    %c0_17 = arith.constant 0 : index
    %c0_18 = arith.constant 0 : index
    %26 = vector.load %arg7[%c0_15, %c0_16, %c0_17, %c0_18] : memref<3x4x8x32xbf16, #tpu.memory_space<vmem>>, vector<1x1x8x32xbf16>
    %27 = vector.shape_cast %26 : vector<1x1x8x32xbf16> to vector<8x32xbf16>
    %cst_19 = arith.constant dense<0.000000e+00> : vector<8x8xf32>
    %28 = tpu.matmul %2, %27, %cst_19 {dimension_numbers = #tpu.dot_dimension_numbers<[1], [1], [0], [0], [0, 0, 1, 0], [], []>} : vector<8x32xbf16>, vector<8x32xbf16>, vector<8x8xf32> -> vector<8x8xf32>
    %c0_20 = arith.constant 0 : index
    %c0_21 = arith.constant 0 : index
    %c0_22 = arith.constant 0 : index
    %c0_23 = arith.constant 0 : index
    %29 = vector.load %arg8[%c0_20, %c0_21, %c0_22, %c0_23] : memref<3x4x1x8xf32, #tpu.memory_space<vmem>>, vector<1x1x1x8xf32>
    %30 = vector.shape_cast %29 : vector<1x1x1x8xf32> to vector<1x8xf32>
    %31 = vector.broadcast %30 : vector<1x8xf32> to vector<8x8xf32>
    %32 = arith.addf %28, %31 : vector<8x8xf32>
    %c1 = arith.constant 1 : index
    %c0_24 = arith.constant 0 : index
    %c0_25 = arith.constant 0 : index
    %c0_26 = arith.constant 0 : index
    %33 = vector.load %arg7[%c1, %c0_24, %c0_25, %c0_26] : memref<3x4x8x32xbf16, #tpu.memory_space<vmem>>, vector<1x1x8x32xbf16>
    %34 = vector.shape_cast %33 : vector<1x1x8x32xbf16> to vector<8x32xbf16>
    %cst_27 = arith.constant dense<0.000000e+00> : vector<8x8xf32>
    %35 = tpu.matmul %4, %34, %cst_27 {dimension_numbers = #tpu.dot_dimension_numbers<[1], [1], [0], [0], [0, 0, 1, 0], [], []>} : vector<8x32xbf16>, vector<8x32xbf16>, vector<8x8xf32> -> vector<8x8xf32>
    %c1_28 = arith.constant 1 : index
    %c0_29 = arith.constant 0 : index
    %c0_30 = arith.constant 0 : index
    %c0_31 = arith.constant 0 : index
    %36 = vector.load %arg8[%c1_28, %c0_29, %c0_30, %c0_31] : memref<3x4x1x8xf32, #tpu.memory_space<vmem>>, vector<1x1x1x8xf32>
    %37 = vector.shape_cast %36 : vector<1x1x1x8xf32> to vector<1x8xf32>
    %38 = vector.broadcast %37 : vector<1x8xf32> to vector<8x8xf32>
    %39 = arith.addf %35, %38 : vector<8x8xf32>
    %c2 = arith.constant 2 : index
    %c0_32 = arith.constant 0 : index
    %c0_33 = arith.constant 0 : index
    %c0_34 = arith.constant 0 : index
    %40 = vector.load %arg7[%c2, %c0_32, %c0_33, %c0_34] : memref<3x4x8x32xbf16, #tpu.memory_space<vmem>>, vector<1x1x8x32xbf16>
    %41 = vector.shape_cast %40 : vector<1x1x8x32xbf16> to vector<8x32xbf16>
    %cst_35 = arith.constant dense<0.000000e+00> : vector<8x8xf32>
    %42 = tpu.matmul %4, %41, %cst_35 {dimension_numbers = #tpu.dot_dimension_numbers<[1], [1], [0], [0], [0, 0, 1, 0], [], []>} : vector<8x32xbf16>, vector<8x32xbf16>, vector<8x8xf32> -> vector<8x8xf32>
    %c2_36 = arith.constant 2 : index
    %c0_37 = arith.constant 0 : index
    %c0_38 = arith.constant 0 : index
    %c0_39 = arith.constant 0 : index
    %43 = vector.load %arg8[%c2_36, %c0_37, %c0_38, %c0_39] : memref<3x4x1x8xf32, #tpu.memory_space<vmem>>, vector<1x1x1x8xf32>
    %44 = vector.shape_cast %43 : vector<1x1x1x8xf32> to vector<1x8xf32>
    %45 = vector.broadcast %44 : vector<1x8xf32> to vector<8x8xf32>
    %46 = arith.addf %42, %45 : vector<8x8xf32>
    %47 = arith.truncf %32 : vector<8x8xf32> to vector<8x8xbf16>
    %48 = arith.truncf %39 : vector<8x8xf32> to vector<8x8xbf16>
    %cst_40 = arith.constant dense<0.000000e+00> : vector<8x8xf32>
    %49 = tpu.matmul %47, %48, %cst_40 {dimension_numbers = #tpu.dot_dimension_numbers<[1], [1], [0], [0], [0, 0, 1, 0], [], []>} : vector<8x8xbf16>, vector<8x8xbf16>, vector<8x8xf32> -> vector<8x8xf32>
    %cst_41 = arith.constant 0.353553385 : f32
    %50 = vector.broadcast %cst_41 : f32 to vector<8x8xf32>
    %51 = arith.mulf %49, %50 : vector<8x8xf32>
    %cst_42 = arith.constant -1.000000e+09 : f32
    %52 = vector.broadcast %cst_42 : f32 to vector<8x8xf32>
    %53 = arith.select %17, %51, %52 : vector<8x8xi1>, vector<8x8xf32>
    %cst_43 = arith.constant dense<0xFF800000> : vector<8xf32>
    %54 = vector.multi_reduction <maximumf>, %53, %cst_43 [1] : vector<8x8xf32> to vector<8xf32>
    %55 = vector.shape_cast %54 : vector<8xf32> to vector<8x1xf32>
    %56 = vector.broadcast %55 : vector<8x1xf32> to vector<8x8xf32>
    %57 = arith.subf %53, %56 : vector<8x8xf32>
    %58 = math.exp %57 : vector<8x8xf32>
    %cst_44 = arith.constant dense<0.000000e+00> : vector<8xf32>
    %59 = vector.multi_reduction <add>, %58, %cst_44 [1] : vector<8x8xf32> to vector<8xf32>
    %60 = vector.shape_cast %59 : vector<8xf32> to vector<8x1xf32>
    %61 = tpu.reciprocal %60 {approx = true} : vector<8x1xf32> -> vector<8x1xf32>
    %62 = vector.broadcast %61 : vector<8x1xf32> to vector<8x8xf32>
    %63 = arith.mulf %58, %62 : vector<8x8xf32>
    %64 = arith.truncf %63 : vector<8x8xf32> to vector<8x8xbf16>
    %65 = arith.truncf %46 : vector<8x8xf32> to vector<8x8xbf16>
    %cst_45 = arith.constant dense<0.000000e+00> : vector<8x8xf32>
    %66 = tpu.matmul %64, %65, %cst_45 {dimension_numbers = #tpu.dot_dimension_numbers<[1], [0], [0], [1], [0, 0, 1, 1], [], []>} : vector<8x8xbf16>, vector<8x8xbf16>, vector<8x8xf32> -> vector<8x8xf32>
    %67 = arith.truncf %66 : vector<8x8xf32> to vector<8x8xbf16>
    %c0_46 = arith.constant 0 : index
    %c0_47 = arith.constant 0 : index
    %c0_48 = arith.constant 0 : index
    %68 = vector.load %arg9[%c0_46, %c0_47, %c0_48] : memref<4x32x8xbf16, #tpu.memory_space<vmem>>, vector<1x32x8xbf16>
    %69 = vector.shape_cast %68 : vector<1x32x8xbf16> to vector<32x8xbf16>
    %cst_49 = arith.constant dense<0.000000e+00> : vector<8x32xf32>
    %70 = tpu.matmul %67, %69, %cst_49 {dimension_numbers = #tpu.dot_dimension_numbers<[1], [1], [0], [0], [0, 0, 1, 0], [], []>} : vector<8x8xbf16>, vector<32x8xbf16>, vector<8x32xf32> -> vector<8x32xf32>
    %71 = arith.addf %25, %70 : vector<8x32xf32>
    %c0_50 = arith.constant 0 : index
    %c1_51 = arith.constant 1 : index
    %c0_52 = arith.constant 0 : index
    %c0_53 = arith.constant 0 : index
    %72 = vector.load %arg7[%c0_50, %c1_51, %c0_52, %c0_53] : memref<3x4x8x32xbf16, #tpu.memory_space<vmem>>, vector<1x1x8x32xbf16>
    %73 = vector.shape_cast %72 : vector<1x1x8x32xbf16> to vector<8x32xbf16>
    %cst_54 = arith.constant dense<0.000000e+00> : vector<8x8xf32>
    %74 = tpu.matmul %2, %73, %cst_54 {dimension_numbers = #tpu.dot_dimension_numbers<[1], [1], [0], [0], [0, 0, 1, 0], [], []>} : vector<8x32xbf16>, vector<8x32xbf16>, vector<8x8xf32> -> vector<8x8xf32>
    %c0_55 = arith.constant 0 : index
    %c1_56 = arith.constant 1 : index
    %c0_57 = arith.constant 0 : index
    %c0_58 = arith.constant 0 : index
    %75 = vector.load %arg8[%c0_55, %c1_56, %c0_57, %c0_58] : memref<3x4x1x8xf32, #tpu.memory_space<vmem>>, vector<1x1x1x8xf32>
    %76 = vector.shape_cast %75 : vector<1x1x1x8xf32> to vector<1x8xf32>
    %77 = vector.broadcast %76 : vector<1x8xf32> to vector<8x8xf32>
    %78 = arith.addf %74, %77 : vector<8x8xf32>
    %c1_59 = arith.constant 1 : index
    %c1_60 = arith.constant 1 : index
    %c0_61 = arith.constant 0 : index
    %c0_62 = arith.constant 0 : index
    %79 = vector.load %arg7[%c1_59, %c1_60, %c0_61, %c0_62] : memref<3x4x8x32xbf16, #tpu.memory_space<vmem>>, vector<1x1x8x32xbf16>
    %80 = vector.shape_cast %79 : vector<1x1x8x32xbf16> to vector<8x32xbf16>
    %cst_63 = arith.constant dense<0.000000e+00> : vector<8x8xf32>
    %81 = tpu.matmul %4, %80, %cst_63 {dimension_numbers = #tpu.dot_dimension_numbers<[1], [1], [0], [0], [0, 0, 1, 0], [], []>} : vector<8x32xbf16>, vector<8x32xbf16>, vector<8x8xf32> -> vector<8x8xf32>
    %c1_64 = arith.constant 1 : index
    %c1_65 = arith.constant 1 : index
    %c0_66 = arith.constant 0 : index
    %c0_67 = arith.constant 0 : index
    %82 = vector.load %arg8[%c1_64, %c1_65, %c0_66, %c0_67] : memref<3x4x1x8xf32, #tpu.memory_space<vmem>>, vector<1x1x1x8xf32>
    %83 = vector.shape_cast %82 : vector<1x1x1x8xf32> to vector<1x8xf32>
    %84 = vector.broadcast %83 : vector<1x8xf32> to vector<8x8xf32>
    %85 = arith.addf %81, %84 : vector<8x8xf32>
    %c2_68 = arith.constant 2 : index
    %c1_69 = arith.constant 1 : index
    %c0_70 = arith.constant 0 : index
    %c0_71 = arith.constant 0 : index
    %86 = vector.load %arg7[%c2_68, %c1_69, %c0_70, %c0_71] : memref<3x4x8x32xbf16, #tpu.memory_space<vmem>>, vector<1x1x8x32xbf16>
    %87 = vector.shape_cast %86 : vector<1x1x8x32xbf16> to vector<8x32xbf16>
    %cst_72 = arith.constant dense<0.000000e+00> : vector<8x8xf32>
    %88 = tpu.matmul %4, %87, %cst_72 {dimension_numbers = #tpu.dot_dimension_numbers<[1], [1], [0], [0], [0, 0, 1, 0], [], []>} : vector<8x32xbf16>, vector<8x32xbf16>, vector<8x8xf32> -> vector<8x8xf32>
    %c2_73 = arith.constant 2 : index
    %c1_74 = arith.constant 1 : index
    %c0_75 = arith.constant 0 : index
    %c0_76 = arith.constant 0 : index
    %89 = vector.load %arg8[%c2_73, %c1_74, %c0_75, %c0_76] : memref<3x4x1x8xf32, #tpu.memory_space<vmem>>, vector<1x1x1x8xf32>
    %90 = vector.shape_cast %89 : vector<1x1x1x8xf32> to vector<1x8xf32>
    %91 = vector.broadcast %90 : vector<1x8xf32> to vector<8x8xf32>
    %92 = arith.addf %88, %91 : vector<8x8xf32>
    %93 = arith.truncf %78 : vector<8x8xf32> to vector<8x8xbf16>
    %94 = arith.truncf %85 : vector<8x8xf32> to vector<8x8xbf16>
    %cst_77 = arith.constant dense<0.000000e+00> : vector<8x8xf32>
    %95 = tpu.matmul %93, %94, %cst_77 {dimension_numbers = #tpu.dot_dimension_numbers<[1], [1], [0], [0], [0, 0, 1, 0], [], []>} : vector<8x8xbf16>, vector<8x8xbf16>, vector<8x8xf32> -> vector<8x8xf32>
    %cst_78 = arith.constant 0.353553385 : f32
    %96 = vector.broadcast %cst_78 : f32 to vector<8x8xf32>
    %97 = arith.mulf %95, %96 : vector<8x8xf32>
    %cst_79 = arith.constant -1.000000e+09 : f32
    %98 = vector.broadcast %cst_79 : f32 to vector<8x8xf32>
    %99 = arith.select %17, %97, %98 : vector<8x8xi1>, vector<8x8xf32>
    %cst_80 = arith.constant dense<0xFF800000> : vector<8xf32>
    %100 = vector.multi_reduction <maximumf>, %99, %cst_80 [1] : vector<8x8xf32> to vector<8xf32>
    %101 = vector.shape_cast %100 : vector<8xf32> to vector<8x1xf32>
    %102 = vector.broadcast %101 : vector<8x1xf32> to vector<8x8xf32>
    %103 = arith.subf %99, %102 : vector<8x8xf32>
    %104 = math.exp %103 : vector<8x8xf32>
    %cst_81 = arith.constant dense<0.000000e+00> : vector<8xf32>
    %105 = vector.multi_reduction <add>, %104, %cst_81 [1] : vector<8x8xf32> to vector<8xf32>
    %106 = vector.shape_cast %105 : vector<8xf32> to vector<8x1xf32>
    %107 = tpu.reciprocal %106 {approx = true} : vector<8x1xf32> -> vector<8x1xf32>
    %108 = vector.broadcast %107 : vector<8x1xf32> to vector<8x8xf32>
    %109 = arith.mulf %104, %108 : vector<8x8xf32>
    %110 = arith.truncf %109 : vector<8x8xf32> to vector<8x8xbf16>
    %111 = arith.truncf %92 : vector<8x8xf32> to vector<8x8xbf16>
    %cst_82 = arith.constant dense<0.000000e+00> : vector<8x8xf32>
    %112 = tpu.matmul %110, %111, %cst_82 {dimension_numbers = #tpu.dot_dimension_numbers<[1], [0], [0], [1], [0, 0, 1, 1], [], []>} : vector<8x8xbf16>, vector<8x8xbf16>, vector<8x8xf32> -> vector<8x8xf32>
    %113 = arith.truncf %112 : vector<8x8xf32> to vector<8x8xbf16>
    %c1_83 = arith.constant 1 : index
    %c0_84 = arith.constant 0 : index
    %c0_85 = arith.constant 0 : index
    %114 = vector.load %arg9[%c1_83, %c0_84, %c0_85] : memref<4x32x8xbf16, #tpu.memory_space<vmem>>, vector<1x32x8xbf16>
    %115 = vector.shape_cast %114 : vector<1x32x8xbf16> to vector<32x8xbf16>
    %cst_86 = arith.constant dense<0.000000e+00> : vector<8x32xf32>
    %116 = tpu.matmul %113, %115, %cst_86 {dimension_numbers = #tpu.dot_dimension_numbers<[1], [1], [0], [0], [0, 0, 1, 0], [], []>} : vector<8x8xbf16>, vector<32x8xbf16>, vector<8x32xf32> -> vector<8x32xf32>
    %117 = arith.addf %71, %116 : vector<8x32xf32>
    %c0_87 = arith.constant 0 : index
    %c2_88 = arith.constant 2 : index
    %c0_89 = arith.constant 0 : index
    %c0_90 = arith.constant 0 : index
    %118 = vector.load %arg7[%c0_87, %c2_88, %c0_89, %c0_90] : memref<3x4x8x32xbf16, #tpu.memory_space<vmem>>, vector<1x1x8x32xbf16>
    %119 = vector.shape_cast %118 : vector<1x1x8x32xbf16> to vector<8x32xbf16>
    %cst_91 = arith.constant dense<0.000000e+00> : vector<8x8xf32>
    %120 = tpu.matmul %2, %119, %cst_91 {dimension_numbers = #tpu.dot_dimension_numbers<[1], [1], [0], [0], [0, 0, 1, 0], [], []>} : vector<8x32xbf16>, vector<8x32xbf16>, vector<8x8xf32> -> vector<8x8xf32>
    %c0_92 = arith.constant 0 : index
    %c2_93 = arith.constant 2 : index
    %c0_94 = arith.constant 0 : index
    %c0_95 = arith.constant 0 : index
    %121 = vector.load %arg8[%c0_92, %c2_93, %c0_94, %c0_95] : memref<3x4x1x8xf32, #tpu.memory_space<vmem>>, vector<1x1x1x8xf32>
    %122 = vector.shape_cast %121 : vector<1x1x1x8xf32> to vector<1x8xf32>
    %123 = vector.broadcast %122 : vector<1x8xf32> to vector<8x8xf32>
    %124 = arith.addf %120, %123 : vector<8x8xf32>
    %c1_96 = arith.constant 1 : index
    %c2_97 = arith.constant 2 : index
    %c0_98 = arith.constant 0 : index
    %c0_99 = arith.constant 0 : index
    %125 = vector.load %arg7[%c1_96, %c2_97, %c0_98, %c0_99] : memref<3x4x8x32xbf16, #tpu.memory_space<vmem>>, vector<1x1x8x32xbf16>
    %126 = vector.shape_cast %125 : vector<1x1x8x32xbf16> to vector<8x32xbf16>
    %cst_100 = arith.constant dense<0.000000e+00> : vector<8x8xf32>
    %127 = tpu.matmul %4, %126, %cst_100 {dimension_numbers = #tpu.dot_dimension_numbers<[1], [1], [0], [0], [0, 0, 1, 0], [], []>} : vector<8x32xbf16>, vector<8x32xbf16>, vector<8x8xf32> -> vector<8x8xf32>
    %c1_101 = arith.constant 1 : index
    %c2_102 = arith.constant 2 : index
    %c0_103 = arith.constant 0 : index
    %c0_104 = arith.constant 0 : index
    %128 = vector.load %arg8[%c1_101, %c2_102, %c0_103, %c0_104] : memref<3x4x1x8xf32, #tpu.memory_space<vmem>>, vector<1x1x1x8xf32>
    %129 = vector.shape_cast %128 : vector<1x1x1x8xf32> to vector<1x8xf32>
    %130 = vector.broadcast %129 : vector<1x8xf32> to vector<8x8xf32>
    %131 = arith.addf %127, %130 : vector<8x8xf32>
    %c2_105 = arith.constant 2 : index
    %c2_106 = arith.constant 2 : index
    %c0_107 = arith.constant 0 : index
    %c0_108 = arith.constant 0 : index
    %132 = vector.load %arg7[%c2_105, %c2_106, %c0_107, %c0_108] : memref<3x4x8x32xbf16, #tpu.memory_space<vmem>>, vector<1x1x8x32xbf16>
    %133 = vector.shape_cast %132 : vector<1x1x8x32xbf16> to vector<8x32xbf16>
    %cst_109 = arith.constant dense<0.000000e+00> : vector<8x8xf32>
    %134 = tpu.matmul %4, %133, %cst_109 {dimension_numbers = #tpu.dot_dimension_numbers<[1], [1], [0], [0], [0, 0, 1, 0], [], []>} : vector<8x32xbf16>, vector<8x32xbf16>, vector<8x8xf32> -> vector<8x8xf32>
    %c2_110 = arith.constant 2 : index
    %c2_111 = arith.constant 2 : index
    %c0_112 = arith.constant 0 : index
    %c0_113 = arith.constant 0 : index
    %135 = vector.load %arg8[%c2_110, %c2_111, %c0_112, %c0_113] : memref<3x4x1x8xf32, #tpu.memory_space<vmem>>, vector<1x1x1x8xf32>
    %136 = vector.shape_cast %135 : vector<1x1x1x8xf32> to vector<1x8xf32>
    %137 = vector.broadcast %136 : vector<1x8xf32> to vector<8x8xf32>
    %138 = arith.addf %134, %137 : vector<8x8xf32>
    %139 = arith.truncf %124 : vector<8x8xf32> to vector<8x8xbf16>
    %140 = arith.truncf %131 : vector<8x8xf32> to vector<8x8xbf16>
    %cst_114 = arith.constant dense<0.000000e+00> : vector<8x8xf32>
    %141 = tpu.matmul %139, %140, %cst_114 {dimension_numbers = #tpu.dot_dimension_numbers<[1], [1], [0], [0], [0, 0, 1, 0], [], []>} : vector<8x8xbf16>, vector<8x8xbf16>, vector<8x8xf32> -> vector<8x8xf32>
    %cst_115 = arith.constant 0.353553385 : f32
    %142 = vector.broadcast %cst_115 : f32 to vector<8x8xf32>
    %143 = arith.mulf %141, %142 : vector<8x8xf32>
    %cst_116 = arith.constant -1.000000e+09 : f32
    %144 = vector.broadcast %cst_116 : f32 to vector<8x8xf32>
    %145 = arith.select %17, %143, %144 : vector<8x8xi1>, vector<8x8xf32>
    %cst_117 = arith.constant dense<0xFF800000> : vector<8xf32>
    %146 = vector.multi_reduction <maximumf>, %145, %cst_117 [1] : vector<8x8xf32> to vector<8xf32>
    %147 = vector.shape_cast %146 : vector<8xf32> to vector<8x1xf32>
    %148 = vector.broadcast %147 : vector<8x1xf32> to vector<8x8xf32>
    %149 = arith.subf %145, %148 : vector<8x8xf32>
    %150 = math.exp %149 : vector<8x8xf32>
    %cst_118 = arith.constant dense<0.000000e+00> : vector<8xf32>
    %151 = vector.multi_reduction <add>, %150, %cst_118 [1] : vector<8x8xf32> to vector<8xf32>
    %152 = vector.shape_cast %151 : vector<8xf32> to vector<8x1xf32>
    %153 = tpu.reciprocal %152 {approx = true} : vector<8x1xf32> -> vector<8x1xf32>
    %154 = vector.broadcast %153 : vector<8x1xf32> to vector<8x8xf32>
    %155 = arith.mulf %150, %154 : vector<8x8xf32>
    %156 = arith.truncf %155 : vector<8x8xf32> to vector<8x8xbf16>
    %157 = arith.truncf %138 : vector<8x8xf32> to vector<8x8xbf16>
    %cst_119 = arith.constant dense<0.000000e+00> : vector<8x8xf32>
    %158 = tpu.matmul %156, %157, %cst_119 {dimension_numbers = #tpu.dot_dimension_numbers<[1], [0], [0], [1], [0, 0, 1, 1], [], []>} : vector<8x8xbf16>, vector<8x8xbf16>, vector<8x8xf32> -> vector<8x8xf32>
    %159 = arith.truncf %158 : vector<8x8xf32> to vector<8x8xbf16>
    %c2_120 = arith.constant 2 : index
    %c0_121 = arith.constant 0 : index
    %c0_122 = arith.constant 0 : index
    %160 = vector.load %arg9[%c2_120, %c0_121, %c0_122] : memref<4x32x8xbf16, #tpu.memory_space<vmem>>, vector<1x32x8xbf16>
    %161 = vector.shape_cast %160 : vector<1x32x8xbf16> to vector<32x8xbf16>
    %cst_123 = arith.constant dense<0.000000e+00> : vector<8x32xf32>
    %162 = tpu.matmul %159, %161, %cst_123 {dimension_numbers = #tpu.dot_dimension_numbers<[1], [1], [0], [0], [0, 0, 1, 0], [], []>} : vector<8x8xbf16>, vector<32x8xbf16>, vector<8x32xf32> -> vector<8x32xf32>
    %163 = arith.addf %117, %162 : vector<8x32xf32>
    %c0_124 = arith.constant 0 : index
    %c3 = arith.constant 3 : index
    %c0_125 = arith.constant 0 : index
    %c0_126 = arith.constant 0 : index
    %164 = vector.load %arg7[%c0_124, %c3, %c0_125, %c0_126] : memref<3x4x8x32xbf16, #tpu.memory_space<vmem>>, vector<1x1x8x32xbf16>
    %165 = vector.shape_cast %164 : vector<1x1x8x32xbf16> to vector<8x32xbf16>
    %cst_127 = arith.constant dense<0.000000e+00> : vector<8x8xf32>
    %166 = tpu.matmul %2, %165, %cst_127 {dimension_numbers = #tpu.dot_dimension_numbers<[1], [1], [0], [0], [0, 0, 1, 0], [], []>} : vector<8x32xbf16>, vector<8x32xbf16>, vector<8x8xf32> -> vector<8x8xf32>
    %c0_128 = arith.constant 0 : index
    %c3_129 = arith.constant 3 : index
    %c0_130 = arith.constant 0 : index
    %c0_131 = arith.constant 0 : index
    %167 = vector.load %arg8[%c0_128, %c3_129, %c0_130, %c0_131] : memref<3x4x1x8xf32, #tpu.memory_space<vmem>>, vector<1x1x1x8xf32>
    %168 = vector.shape_cast %167 : vector<1x1x1x8xf32> to vector<1x8xf32>
    %169 = vector.broadcast %168 : vector<1x8xf32> to vector<8x8xf32>
    %170 = arith.addf %166, %169 : vector<8x8xf32>
    %c1_132 = arith.constant 1 : index
    %c3_133 = arith.constant 3 : index
    %c0_134 = arith.constant 0 : index
    %c0_135 = arith.constant 0 : index
    %171 = vector.load %arg7[%c1_132, %c3_133, %c0_134, %c0_135] : memref<3x4x8x32xbf16, #tpu.memory_space<vmem>>, vector<1x1x8x32xbf16>
    %172 = vector.shape_cast %171 : vector<1x1x8x32xbf16> to vector<8x32xbf16>
    %cst_136 = arith.constant dense<0.000000e+00> : vector<8x8xf32>
    %173 = tpu.matmul %4, %172, %cst_136 {dimension_numbers = #tpu.dot_dimension_numbers<[1], [1], [0], [0], [0, 0, 1, 0], [], []>} : vector<8x32xbf16>, vector<8x32xbf16>, vector<8x8xf32> -> vector<8x8xf32>
    %c1_137 = arith.constant 1 : index
    %c3_138 = arith.constant 3 : index
    %c0_139 = arith.constant 0 : index
    %c0_140 = arith.constant 0 : index
    %174 = vector.load %arg8[%c1_137, %c3_138, %c0_139, %c0_140] : memref<3x4x1x8xf32, #tpu.memory_space<vmem>>, vector<1x1x1x8xf32>
    %175 = vector.shape_cast %174 : vector<1x1x1x8xf32> to vector<1x8xf32>
    %176 = vector.broadcast %175 : vector<1x8xf32> to vector<8x8xf32>
    %177 = arith.addf %173, %176 : vector<8x8xf32>
    %c2_141 = arith.constant 2 : index
    %c3_142 = arith.constant 3 : index
    %c0_143 = arith.constant 0 : index
    %c0_144 = arith.constant 0 : index
    %178 = vector.load %arg7[%c2_141, %c3_142, %c0_143, %c0_144] : memref<3x4x8x32xbf16, #tpu.memory_space<vmem>>, vector<1x1x8x32xbf16>
    %179 = vector.shape_cast %178 : vector<1x1x8x32xbf16> to vector<8x32xbf16>
    %cst_145 = arith.constant dense<0.000000e+00> : vector<8x8xf32>
    %180 = tpu.matmul %4, %179, %cst_145 {dimension_numbers = #tpu.dot_dimension_numbers<[1], [1], [0], [0], [0, 0, 1, 0], [], []>} : vector<8x32xbf16>, vector<8x32xbf16>, vector<8x8xf32> -> vector<8x8xf32>
    %c2_146 = arith.constant 2 : index
    %c3_147 = arith.constant 3 : index
    %c0_148 = arith.constant 0 : index
    %c0_149 = arith.constant 0 : index
    %181 = vector.load %arg8[%c2_146, %c3_147, %c0_148, %c0_149] : memref<3x4x1x8xf32, #tpu.memory_space<vmem>>, vector<1x1x1x8xf32>
    %182 = vector.shape_cast %181 : vector<1x1x1x8xf32> to vector<1x8xf32>
    %183 = vector.broadcast %182 : vector<1x8xf32> to vector<8x8xf32>
    %184 = arith.addf %180, %183 : vector<8x8xf32>
    %185 = arith.truncf %170 : vector<8x8xf32> to vector<8x8xbf16>
    %186 = arith.truncf %177 : vector<8x8xf32> to vector<8x8xbf16>
    %cst_150 = arith.constant dense<0.000000e+00> : vector<8x8xf32>
    %187 = tpu.matmul %185, %186, %cst_150 {dimension_numbers = #tpu.dot_dimension_numbers<[1], [1], [0], [0], [0, 0, 1, 0], [], []>} : vector<8x8xbf16>, vector<8x8xbf16>, vector<8x8xf32> -> vector<8x8xf32>
    %cst_151 = arith.constant 0.353553385 : f32
    %188 = vector.broadcast %cst_151 : f32 to vector<8x8xf32>
    %189 = arith.mulf %187, %188 : vector<8x8xf32>
    %cst_152 = arith.constant -1.000000e+09 : f32
    %190 = vector.broadcast %cst_152 : f32 to vector<8x8xf32>
    %191 = arith.select %17, %189, %190 : vector<8x8xi1>, vector<8x8xf32>
    %cst_153 = arith.constant dense<0xFF800000> : vector<8xf32>
    %192 = vector.multi_reduction <maximumf>, %191, %cst_153 [1] : vector<8x8xf32> to vector<8xf32>
    %193 = vector.shape_cast %192 : vector<8xf32> to vector<8x1xf32>
    %194 = vector.broadcast %193 : vector<8x1xf32> to vector<8x8xf32>
    %195 = arith.subf %191, %194 : vector<8x8xf32>
    %196 = math.exp %195 : vector<8x8xf32>
    %cst_154 = arith.constant dense<0.000000e+00> : vector<8xf32>
    %197 = vector.multi_reduction <add>, %196, %cst_154 [1] : vector<8x8xf32> to vector<8xf32>
    %198 = vector.shape_cast %197 : vector<8xf32> to vector<8x1xf32>
    %199 = tpu.reciprocal %198 {approx = true} : vector<8x1xf32> -> vector<8x1xf32>
    %200 = vector.broadcast %199 : vector<8x1xf32> to vector<8x8xf32>
    %201 = arith.mulf %196, %200 : vector<8x8xf32>
    %202 = arith.truncf %201 : vector<8x8xf32> to vector<8x8xbf16>
    %203 = arith.truncf %184 : vector<8x8xf32> to vector<8x8xbf16>
    %cst_155 = arith.constant dense<0.000000e+00> : vector<8x8xf32>
    %204 = tpu.matmul %202, %203, %cst_155 {dimension_numbers = #tpu.dot_dimension_numbers<[1], [0], [0], [1], [0, 0, 1, 1], [], []>} : vector<8x8xbf16>, vector<8x8xbf16>, vector<8x8xf32> -> vector<8x8xf32>
    %205 = arith.truncf %204 : vector<8x8xf32> to vector<8x8xbf16>
    %c3_156 = arith.constant 3 : index
    %c0_157 = arith.constant 0 : index
    %c0_158 = arith.constant 0 : index
    %206 = vector.load %arg9[%c3_156, %c0_157, %c0_158] : memref<4x32x8xbf16, #tpu.memory_space<vmem>>, vector<1x32x8xbf16>
    %207 = vector.shape_cast %206 : vector<1x32x8xbf16> to vector<32x8xbf16>
    %cst_159 = arith.constant dense<0.000000e+00> : vector<8x32xf32>
    %208 = tpu.matmul %205, %207, %cst_159 {dimension_numbers = #tpu.dot_dimension_numbers<[1], [1], [0], [0], [0, 0, 1, 0], [], []>} : vector<8x8xbf16>, vector<32x8xbf16>, vector<8x32xf32> -> vector<8x32xf32>
    %209 = arith.addf %163, %208 : vector<8x32xf32>
    %c0_160 = arith.constant 0 : index
    %c0_161 = arith.constant 0 : index
    %210 = vector.load %arg10[%c0_160, %c0_161] : memref<1x32xf32, #tpu.memory_space<vmem>>, vector<1x32xf32>
    %211 = vector.broadcast %210 : vector<1x32xf32> to vector<8x32xf32>
    %212 = arith.addf %209, %211 : vector<8x32xf32>
    %213 = arith.addf %24, %212 : vector<8x32xf32>
    %c0_162 = arith.constant 0 : index
    %c0_163 = arith.constant 0 : index
    %c0_164 = arith.constant 0 : index
    %214 = vector.load %arg19[%c0_162, %c0_163, %c0_164] : memref<3x1x32xf32, #tpu.memory_space<vmem>>, vector<1x1x32xf32>
    %215 = vector.shape_cast %214 : vector<1x1x32xf32> to vector<1x32xf32>
    %c0_165 = arith.constant 0 : index
    %c0_166 = arith.constant 0 : index
    %c0_167 = arith.constant 0 : index
    %216 = vector.load %arg20[%c0_165, %c0_166, %c0_167] : memref<3x1x32xf32, #tpu.memory_space<vmem>>, vector<1x1x32xf32>
    %217 = vector.shape_cast %216 : vector<1x1x32xf32> to vector<1x32xf32>
    %cst_168 = arith.constant dense<0.000000e+00> : vector<8xf32>
    %218 = vector.multi_reduction <add>, %213, %cst_168 [1] : vector<8x32xf32> to vector<8xf32>
    %219 = vector.shape_cast %218 : vector<8xf32> to vector<8x1xf32>
    %cst_169 = arith.constant 3.200000e+01 : f32
    %220 = vector.broadcast %cst_169 : f32 to vector<8x1xf32>
    %221 = arith.divf %219, %220 : vector<8x1xf32>
    %222 = vector.broadcast %221 : vector<8x1xf32> to vector<8x32xf32>
    %223 = arith.subf %213, %222 : vector<8x32xf32>
    %224 = arith.mulf %223, %223 : vector<8x32xf32>
    %cst_170 = arith.constant dense<0.000000e+00> : vector<8xf32>
    %225 = vector.multi_reduction <add>, %224, %cst_170 [1] : vector<8x32xf32> to vector<8xf32>
    %226 = vector.shape_cast %225 : vector<8xf32> to vector<8x1xf32>
    %cst_171 = arith.constant 0.0322580636 : f32
    %227 = vector.broadcast %cst_171 : f32 to vector<8x1xf32>
    %228 = arith.mulf %226, %227 : vector<8x1xf32>
    %229 = math.sqrt %228 : vector<8x1xf32>
    %cst_172 = arith.constant 9.99999997E-7 : f32
    %230 = vector.broadcast %cst_172 : f32 to vector<8x1xf32>
    %231 = arith.addf %229, %230 : vector<8x1xf32>
    %232 = tpu.reciprocal %231 : vector<8x1xf32> -> vector<8x1xf32>
    %233 = vector.broadcast %232 : vector<8x1xf32> to vector<8x32xf32>
    %234 = arith.mulf %223, %233 : vector<8x32xf32>
    %235 = vector.broadcast %215 : vector<1x32xf32> to vector<8x32xf32>
    %236 = arith.mulf %235, %234 : vector<8x32xf32>
    %237 = vector.broadcast %217 : vector<1x32xf32> to vector<8x32xf32>
    %238 = arith.addf %236, %237 : vector<8x32xf32>
    %239 = arith.truncf %238 : vector<8x32xf32> to vector<8x32xbf16>
    %cst_173 = arith.constant 0.000000e+00 : f32
    %240 = vector.broadcast %cst_173 : f32 to vector<8x32xf32>
    %c0_174 = arith.constant 0 : index
    %c0_175 = arith.constant 0 : index
    %c0_176 = arith.constant 0 : index
    %c0_177 = arith.constant 0 : index
    %241 = vector.load %arg11[%c0_174, %c0_175, %c0_176, %c0_177] : memref<3x4x8x32xbf16, #tpu.memory_space<vmem>>, vector<1x1x8x32xbf16>
    %242 = vector.shape_cast %241 : vector<1x1x8x32xbf16> to vector<8x32xbf16>
    %cst_178 = arith.constant dense<0.000000e+00> : vector<8x8xf32>
    %243 = tpu.matmul %239, %242, %cst_178 {dimension_numbers = #tpu.dot_dimension_numbers<[1], [1], [0], [0], [0, 0, 1, 0], [], []>} : vector<8x32xbf16>, vector<8x32xbf16>, vector<8x8xf32> -> vector<8x8xf32>
    %c0_179 = arith.constant 0 : index
    %c0_180 = arith.constant 0 : index
    %c0_181 = arith.constant 0 : index
    %c0_182 = arith.constant 0 : index
    %244 = vector.load %arg12[%c0_179, %c0_180, %c0_181, %c0_182] : memref<3x4x1x8xf32, #tpu.memory_space<vmem>>, vector<1x1x1x8xf32>
    %245 = vector.shape_cast %244 : vector<1x1x1x8xf32> to vector<1x8xf32>
    %246 = vector.broadcast %245 : vector<1x8xf32> to vector<8x8xf32>
    %247 = arith.addf %243, %246 : vector<8x8xf32>
    %c1_183 = arith.constant 1 : index
    %c0_184 = arith.constant 0 : index
    %c0_185 = arith.constant 0 : index
    %c0_186 = arith.constant 0 : index
    %248 = vector.load %arg11[%c1_183, %c0_184, %c0_185, %c0_186] : memref<3x4x8x32xbf16, #tpu.memory_space<vmem>>, vector<1x1x8x32xbf16>
    %249 = vector.shape_cast %248 : vector<1x1x8x32xbf16> to vector<8x32xbf16>
    %cst_187 = arith.constant dense<0.000000e+00> : vector<8x8xf32>
    %250 = tpu.matmul %6, %249, %cst_187 {dimension_numbers = #tpu.dot_dimension_numbers<[1], [1], [0], [0], [0, 0, 1, 0], [], []>} : vector<8x32xbf16>, vector<8x32xbf16>, vector<8x8xf32> -> vector<8x8xf32>
    %c1_188 = arith.constant 1 : index
    %c0_189 = arith.constant 0 : index
    %c0_190 = arith.constant 0 : index
    %c0_191 = arith.constant 0 : index
    %251 = vector.load %arg12[%c1_188, %c0_189, %c0_190, %c0_191] : memref<3x4x1x8xf32, #tpu.memory_space<vmem>>, vector<1x1x1x8xf32>
    %252 = vector.shape_cast %251 : vector<1x1x1x8xf32> to vector<1x8xf32>
    %253 = vector.broadcast %252 : vector<1x8xf32> to vector<8x8xf32>
    %254 = arith.addf %250, %253 : vector<8x8xf32>
    %c2_192 = arith.constant 2 : index
    %c0_193 = arith.constant 0 : index
    %c0_194 = arith.constant 0 : index
    %c0_195 = arith.constant 0 : index
    %255 = vector.load %arg11[%c2_192, %c0_193, %c0_194, %c0_195] : memref<3x4x8x32xbf16, #tpu.memory_space<vmem>>, vector<1x1x8x32xbf16>
    %256 = vector.shape_cast %255 : vector<1x1x8x32xbf16> to vector<8x32xbf16>
    %cst_196 = arith.constant dense<0.000000e+00> : vector<8x8xf32>
    %257 = tpu.matmul %6, %256, %cst_196 {dimension_numbers = #tpu.dot_dimension_numbers<[1], [1], [0], [0], [0, 0, 1, 0], [], []>} : vector<8x32xbf16>, vector<8x32xbf16>, vector<8x8xf32> -> vector<8x8xf32>
    %c2_197 = arith.constant 2 : index
    %c0_198 = arith.constant 0 : index
    %c0_199 = arith.constant 0 : index
    %c0_200 = arith.constant 0 : index
    %258 = vector.load %arg12[%c2_197, %c0_198, %c0_199, %c0_200] : memref<3x4x1x8xf32, #tpu.memory_space<vmem>>, vector<1x1x1x8xf32>
    %259 = vector.shape_cast %258 : vector<1x1x1x8xf32> to vector<1x8xf32>
    %260 = vector.broadcast %259 : vector<1x8xf32> to vector<8x8xf32>
    %261 = arith.addf %257, %260 : vector<8x8xf32>
    %262 = arith.truncf %247 : vector<8x8xf32> to vector<8x8xbf16>
    %263 = arith.truncf %254 : vector<8x8xf32> to vector<8x8xbf16>
    %cst_201 = arith.constant dense<0.000000e+00> : vector<8x8xf32>
    %264 = tpu.matmul %262, %263, %cst_201 {dimension_numbers = #tpu.dot_dimension_numbers<[1], [1], [0], [0], [0, 0, 1, 0], [], []>} : vector<8x8xbf16>, vector<8x8xbf16>, vector<8x8xf32> -> vector<8x8xf32>
    %cst_202 = arith.constant 0.353553385 : f32
    %265 = vector.broadcast %cst_202 : f32 to vector<8x8xf32>
    %266 = arith.mulf %264, %265 : vector<8x8xf32>
    %cst_203 = arith.constant -1.000000e+09 : f32
    %267 = vector.broadcast %cst_203 : f32 to vector<8x8xf32>
    %268 = arith.select %23, %266, %267 : vector<8x8xi1>, vector<8x8xf32>
    %cst_204 = arith.constant dense<0xFF800000> : vector<8xf32>
    %269 = vector.multi_reduction <maximumf>, %268, %cst_204 [1] : vector<8x8xf32> to vector<8xf32>
    %270 = vector.shape_cast %269 : vector<8xf32> to vector<8x1xf32>
    %271 = vector.broadcast %270 : vector<8x1xf32> to vector<8x8xf32>
    %272 = arith.subf %268, %271 : vector<8x8xf32>
    %273 = math.exp %272 : vector<8x8xf32>
    %cst_205 = arith.constant dense<0.000000e+00> : vector<8xf32>
    %274 = vector.multi_reduction <add>, %273, %cst_205 [1] : vector<8x8xf32> to vector<8xf32>
    %275 = vector.shape_cast %274 : vector<8xf32> to vector<8x1xf32>
    %276 = tpu.reciprocal %275 {approx = true} : vector<8x1xf32> -> vector<8x1xf32>
    %277 = vector.broadcast %276 : vector<8x1xf32> to vector<8x8xf32>
    %278 = arith.mulf %273, %277 : vector<8x8xf32>
    %279 = arith.truncf %278 : vector<8x8xf32> to vector<8x8xbf16>
    %280 = arith.truncf %261 : vector<8x8xf32> to vector<8x8xbf16>
    %cst_206 = arith.constant dense<0.000000e+00> : vector<8x8xf32>
    %281 = tpu.matmul %279, %280, %cst_206 {dimension_numbers = #tpu.dot_dimension_numbers<[1], [0], [0], [1], [0, 0, 1, 1], [], []>} : vector<8x8xbf16>, vector<8x8xbf16>, vector<8x8xf32> -> vector<8x8xf32>
    %282 = arith.truncf %281 : vector<8x8xf32> to vector<8x8xbf16>
    %c0_207 = arith.constant 0 : index
    %c0_208 = arith.constant 0 : index
    %c0_209 = arith.constant 0 : index
    %283 = vector.load %arg13[%c0_207, %c0_208, %c0_209] : memref<4x32x8xbf16, #tpu.memory_space<vmem>>, vector<1x32x8xbf16>
    %284 = vector.shape_cast %283 : vector<1x32x8xbf16> to vector<32x8xbf16>
    %cst_210 = arith.constant dense<0.000000e+00> : vector<8x32xf32>
    %285 = tpu.matmul %282, %284, %cst_210 {dimension_numbers = #tpu.dot_dimension_numbers<[1], [1], [0], [0], [0, 0, 1, 0], [], []>} : vector<8x8xbf16>, vector<32x8xbf16>, vector<8x32xf32> -> vector<8x32xf32>
    %286 = arith.addf %240, %285 : vector<8x32xf32>
    %c0_211 = arith.constant 0 : index
    %c1_212 = arith.constant 1 : index
    %c0_213 = arith.constant 0 : index
    %c0_214 = arith.constant 0 : index
    %287 = vector.load %arg11[%c0_211, %c1_212, %c0_213, %c0_214] : memref<3x4x8x32xbf16, #tpu.memory_space<vmem>>, vector<1x1x8x32xbf16>
    %288 = vector.shape_cast %287 : vector<1x1x8x32xbf16> to vector<8x32xbf16>
    %cst_215 = arith.constant dense<0.000000e+00> : vector<8x8xf32>
    %289 = tpu.matmul %239, %288, %cst_215 {dimension_numbers = #tpu.dot_dimension_numbers<[1], [1], [0], [0], [0, 0, 1, 0], [], []>} : vector<8x32xbf16>, vector<8x32xbf16>, vector<8x8xf32> -> vector<8x8xf32>
    %c0_216 = arith.constant 0 : index
    %c1_217 = arith.constant 1 : index
    %c0_218 = arith.constant 0 : index
    %c0_219 = arith.constant 0 : index
    %290 = vector.load %arg12[%c0_216, %c1_217, %c0_218, %c0_219] : memref<3x4x1x8xf32, #tpu.memory_space<vmem>>, vector<1x1x1x8xf32>
    %291 = vector.shape_cast %290 : vector<1x1x1x8xf32> to vector<1x8xf32>
    %292 = vector.broadcast %291 : vector<1x8xf32> to vector<8x8xf32>
    %293 = arith.addf %289, %292 : vector<8x8xf32>
    %c1_220 = arith.constant 1 : index
    %c1_221 = arith.constant 1 : index
    %c0_222 = arith.constant 0 : index
    %c0_223 = arith.constant 0 : index
    %294 = vector.load %arg11[%c1_220, %c1_221, %c0_222, %c0_223] : memref<3x4x8x32xbf16, #tpu.memory_space<vmem>>, vector<1x1x8x32xbf16>
    %295 = vector.shape_cast %294 : vector<1x1x8x32xbf16> to vector<8x32xbf16>
    %cst_224 = arith.constant dense<0.000000e+00> : vector<8x8xf32>
    %296 = tpu.matmul %6, %295, %cst_224 {dimension_numbers = #tpu.dot_dimension_numbers<[1], [1], [0], [0], [0, 0, 1, 0], [], []>} : vector<8x32xbf16>, vector<8x32xbf16>, vector<8x8xf32> -> vector<8x8xf32>
    %c1_225 = arith.constant 1 : index
    %c1_226 = arith.constant 1 : index
    %c0_227 = arith.constant 0 : index
    %c0_228 = arith.constant 0 : index
    %297 = vector.load %arg12[%c1_225, %c1_226, %c0_227, %c0_228] : memref<3x4x1x8xf32, #tpu.memory_space<vmem>>, vector<1x1x1x8xf32>
    %298 = vector.shape_cast %297 : vector<1x1x1x8xf32> to vector<1x8xf32>
    %299 = vector.broadcast %298 : vector<1x8xf32> to vector<8x8xf32>
    %300 = arith.addf %296, %299 : vector<8x8xf32>
    %c2_229 = arith.constant 2 : index
    %c1_230 = arith.constant 1 : index
    %c0_231 = arith.constant 0 : index
    %c0_232 = arith.constant 0 : index
    %301 = vector.load %arg11[%c2_229, %c1_230, %c0_231, %c0_232] : memref<3x4x8x32xbf16, #tpu.memory_space<vmem>>, vector<1x1x8x32xbf16>
    %302 = vector.shape_cast %301 : vector<1x1x8x32xbf16> to vector<8x32xbf16>
    %cst_233 = arith.constant dense<0.000000e+00> : vector<8x8xf32>
    %303 = tpu.matmul %6, %302, %cst_233 {dimension_numbers = #tpu.dot_dimension_numbers<[1], [1], [0], [0], [0, 0, 1, 0], [], []>} : vector<8x32xbf16>, vector<8x32xbf16>, vector<8x8xf32> -> vector<8x8xf32>
    %c2_234 = arith.constant 2 : index
    %c1_235 = arith.constant 1 : index
    %c0_236 = arith.constant 0 : index
    %c0_237 = arith.constant 0 : index
    %304 = vector.load %arg12[%c2_234, %c1_235, %c0_236, %c0_237] : memref<3x4x1x8xf32, #tpu.memory_space<vmem>>, vector<1x1x1x8xf32>
    %305 = vector.shape_cast %304 : vector<1x1x1x8xf32> to vector<1x8xf32>
    %306 = vector.broadcast %305 : vector<1x8xf32> to vector<8x8xf32>
    %307 = arith.addf %303, %306 : vector<8x8xf32>
    %308 = arith.truncf %293 : vector<8x8xf32> to vector<8x8xbf16>
    %309 = arith.truncf %300 : vector<8x8xf32> to vector<8x8xbf16>
    %cst_238 = arith.constant dense<0.000000e+00> : vector<8x8xf32>
    %310 = tpu.matmul %308, %309, %cst_238 {dimension_numbers = #tpu.dot_dimension_numbers<[1], [1], [0], [0], [0, 0, 1, 0], [], []>} : vector<8x8xbf16>, vector<8x8xbf16>, vector<8x8xf32> -> vector<8x8xf32>
    %cst_239 = arith.constant 0.353553385 : f32
    %311 = vector.broadcast %cst_239 : f32 to vector<8x8xf32>
    %312 = arith.mulf %310, %311 : vector<8x8xf32>
    %cst_240 = arith.constant -1.000000e+09 : f32
    %313 = vector.broadcast %cst_240 : f32 to vector<8x8xf32>
    %314 = arith.select %23, %312, %313 : vector<8x8xi1>, vector<8x8xf32>
    %cst_241 = arith.constant dense<0xFF800000> : vector<8xf32>
    %315 = vector.multi_reduction <maximumf>, %314, %cst_241 [1] : vector<8x8xf32> to vector<8xf32>
    %316 = vector.shape_cast %315 : vector<8xf32> to vector<8x1xf32>
    %317 = vector.broadcast %316 : vector<8x1xf32> to vector<8x8xf32>
    %318 = arith.subf %314, %317 : vector<8x8xf32>
    %319 = math.exp %318 : vector<8x8xf32>
    %cst_242 = arith.constant dense<0.000000e+00> : vector<8xf32>
    %320 = vector.multi_reduction <add>, %319, %cst_242 [1] : vector<8x8xf32> to vector<8xf32>
    %321 = vector.shape_cast %320 : vector<8xf32> to vector<8x1xf32>
    %322 = tpu.reciprocal %321 {approx = true} : vector<8x1xf32> -> vector<8x1xf32>
    %323 = vector.broadcast %322 : vector<8x1xf32> to vector<8x8xf32>
    %324 = arith.mulf %319, %323 : vector<8x8xf32>
    %325 = arith.truncf %324 : vector<8x8xf32> to vector<8x8xbf16>
    %326 = arith.truncf %307 : vector<8x8xf32> to vector<8x8xbf16>
    %cst_243 = arith.constant dense<0.000000e+00> : vector<8x8xf32>
    %327 = tpu.matmul %325, %326, %cst_243 {dimension_numbers = #tpu.dot_dimension_numbers<[1], [0], [0], [1], [0, 0, 1, 1], [], []>} : vector<8x8xbf16>, vector<8x8xbf16>, vector<8x8xf32> -> vector<8x8xf32>
    %328 = arith.truncf %327 : vector<8x8xf32> to vector<8x8xbf16>
    %c1_244 = arith.constant 1 : index
    %c0_245 = arith.constant 0 : index
    %c0_246 = arith.constant 0 : index
    %329 = vector.load %arg13[%c1_244, %c0_245, %c0_246] : memref<4x32x8xbf16, #tpu.memory_space<vmem>>, vector<1x32x8xbf16>
    %330 = vector.shape_cast %329 : vector<1x32x8xbf16> to vector<32x8xbf16>
    %cst_247 = arith.constant dense<0.000000e+00> : vector<8x32xf32>
    %331 = tpu.matmul %328, %330, %cst_247 {dimension_numbers = #tpu.dot_dimension_numbers<[1], [1], [0], [0], [0, 0, 1, 0], [], []>} : vector<8x8xbf16>, vector<32x8xbf16>, vector<8x32xf32> -> vector<8x32xf32>
    %332 = arith.addf %286, %331 : vector<8x32xf32>
    %c0_248 = arith.constant 0 : index
    %c2_249 = arith.constant 2 : index
    %c0_250 = arith.constant 0 : index
    %c0_251 = arith.constant 0 : index
    %333 = vector.load %arg11[%c0_248, %c2_249, %c0_250, %c0_251] : memref<3x4x8x32xbf16, #tpu.memory_space<vmem>>, vector<1x1x8x32xbf16>
    %334 = vector.shape_cast %333 : vector<1x1x8x32xbf16> to vector<8x32xbf16>
    %cst_252 = arith.constant dense<0.000000e+00> : vector<8x8xf32>
    %335 = tpu.matmul %239, %334, %cst_252 {dimension_numbers = #tpu.dot_dimension_numbers<[1], [1], [0], [0], [0, 0, 1, 0], [], []>} : vector<8x32xbf16>, vector<8x32xbf16>, vector<8x8xf32> -> vector<8x8xf32>
    %c0_253 = arith.constant 0 : index
    %c2_254 = arith.constant 2 : index
    %c0_255 = arith.constant 0 : index
    %c0_256 = arith.constant 0 : index
    %336 = vector.load %arg12[%c0_253, %c2_254, %c0_255, %c0_256] : memref<3x4x1x8xf32, #tpu.memory_space<vmem>>, vector<1x1x1x8xf32>
    %337 = vector.shape_cast %336 : vector<1x1x1x8xf32> to vector<1x8xf32>
    %338 = vector.broadcast %337 : vector<1x8xf32> to vector<8x8xf32>
    %339 = arith.addf %335, %338 : vector<8x8xf32>
    %c1_257 = arith.constant 1 : index
    %c2_258 = arith.constant 2 : index
    %c0_259 = arith.constant 0 : index
    %c0_260 = arith.constant 0 : index
    %340 = vector.load %arg11[%c1_257, %c2_258, %c0_259, %c0_260] : memref<3x4x8x32xbf16, #tpu.memory_space<vmem>>, vector<1x1x8x32xbf16>
    %341 = vector.shape_cast %340 : vector<1x1x8x32xbf16> to vector<8x32xbf16>
    %cst_261 = arith.constant dense<0.000000e+00> : vector<8x8xf32>
    %342 = tpu.matmul %6, %341, %cst_261 {dimension_numbers = #tpu.dot_dimension_numbers<[1], [1], [0], [0], [0, 0, 1, 0], [], []>} : vector<8x32xbf16>, vector<8x32xbf16>, vector<8x8xf32> -> vector<8x8xf32>
    %c1_262 = arith.constant 1 : index
    %c2_263 = arith.constant 2 : index
    %c0_264 = arith.constant 0 : index
    %c0_265 = arith.constant 0 : index
    %343 = vector.load %arg12[%c1_262, %c2_263, %c0_264, %c0_265] : memref<3x4x1x8xf32, #tpu.memory_space<vmem>>, vector<1x1x1x8xf32>
    %344 = vector.shape_cast %343 : vector<1x1x1x8xf32> to vector<1x8xf32>
    %345 = vector.broadcast %344 : vector<1x8xf32> to vector<8x8xf32>
    %346 = arith.addf %342, %345 : vector<8x8xf32>
    %c2_266 = arith.constant 2 : index
    %c2_267 = arith.constant 2 : index
    %c0_268 = arith.constant 0 : index
    %c0_269 = arith.constant 0 : index
    %347 = vector.load %arg11[%c2_266, %c2_267, %c0_268, %c0_269] : memref<3x4x8x32xbf16, #tpu.memory_space<vmem>>, vector<1x1x8x32xbf16>
    %348 = vector.shape_cast %347 : vector<1x1x8x32xbf16> to vector<8x32xbf16>
    %cst_270 = arith.constant dense<0.000000e+00> : vector<8x8xf32>
    %349 = tpu.matmul %6, %348, %cst_270 {dimension_numbers = #tpu.dot_dimension_numbers<[1], [1], [0], [0], [0, 0, 1, 0], [], []>} : vector<8x32xbf16>, vector<8x32xbf16>, vector<8x8xf32> -> vector<8x8xf32>
    %c2_271 = arith.constant 2 : index
    %c2_272 = arith.constant 2 : index
    %c0_273 = arith.constant 0 : index
    %c0_274 = arith.constant 0 : index
    %350 = vector.load %arg12[%c2_271, %c2_272, %c0_273, %c0_274] : memref<3x4x1x8xf32, #tpu.memory_space<vmem>>, vector<1x1x1x8xf32>
    %351 = vector.shape_cast %350 : vector<1x1x1x8xf32> to vector<1x8xf32>
    %352 = vector.broadcast %351 : vector<1x8xf32> to vector<8x8xf32>
    %353 = arith.addf %349, %352 : vector<8x8xf32>
    %354 = arith.truncf %339 : vector<8x8xf32> to vector<8x8xbf16>
    %355 = arith.truncf %346 : vector<8x8xf32> to vector<8x8xbf16>
    %cst_275 = arith.constant dense<0.000000e+00> : vector<8x8xf32>
    %356 = tpu.matmul %354, %355, %cst_275 {dimension_numbers = #tpu.dot_dimension_numbers<[1], [1], [0], [0], [0, 0, 1, 0], [], []>} : vector<8x8xbf16>, vector<8x8xbf16>, vector<8x8xf32> -> vector<8x8xf32>
    %cst_276 = arith.constant 0.353553385 : f32
    %357 = vector.broadcast %cst_276 : f32 to vector<8x8xf32>
    %358 = arith.mulf %356, %357 : vector<8x8xf32>
    %cst_277 = arith.constant -1.000000e+09 : f32
    %359 = vector.broadcast %cst_277 : f32 to vector<8x8xf32>
    %360 = arith.select %23, %358, %359 : vector<8x8xi1>, vector<8x8xf32>
    %cst_278 = arith.constant dense<0xFF800000> : vector<8xf32>
    %361 = vector.multi_reduction <maximumf>, %360, %cst_278 [1] : vector<8x8xf32> to vector<8xf32>
    %362 = vector.shape_cast %361 : vector<8xf32> to vector<8x1xf32>
    %363 = vector.broadcast %362 : vector<8x1xf32> to vector<8x8xf32>
    %364 = arith.subf %360, %363 : vector<8x8xf32>
    %365 = math.exp %364 : vector<8x8xf32>
    %cst_279 = arith.constant dense<0.000000e+00> : vector<8xf32>
    %366 = vector.multi_reduction <add>, %365, %cst_279 [1] : vector<8x8xf32> to vector<8xf32>
    %367 = vector.shape_cast %366 : vector<8xf32> to vector<8x1xf32>
    %368 = tpu.reciprocal %367 {approx = true} : vector<8x1xf32> -> vector<8x1xf32>
    %369 = vector.broadcast %368 : vector<8x1xf32> to vector<8x8xf32>
    %370 = arith.mulf %365, %369 : vector<8x8xf32>
    %371 = arith.truncf %370 : vector<8x8xf32> to vector<8x8xbf16>
    %372 = arith.truncf %353 : vector<8x8xf32> to vector<8x8xbf16>
    %cst_280 = arith.constant dense<0.000000e+00> : vector<8x8xf32>
    %373 = tpu.matmul %371, %372, %cst_280 {dimension_numbers = #tpu.dot_dimension_numbers<[1], [0], [0], [1], [0, 0, 1, 1], [], []>} : vector<8x8xbf16>, vector<8x8xbf16>, vector<8x8xf32> -> vector<8x8xf32>
    %374 = arith.truncf %373 : vector<8x8xf32> to vector<8x8xbf16>
    %c2_281 = arith.constant 2 : index
    %c0_282 = arith.constant 0 : index
    %c0_283 = arith.constant 0 : index
    %375 = vector.load %arg13[%c2_281, %c0_282, %c0_283] : memref<4x32x8xbf16, #tpu.memory_space<vmem>>, vector<1x32x8xbf16>
    %376 = vector.shape_cast %375 : vector<1x32x8xbf16> to vector<32x8xbf16>
    %cst_284 = arith.constant dense<0.000000e+00> : vector<8x32xf32>
    %377 = tpu.matmul %374, %376, %cst_284 {dimension_numbers = #tpu.dot_dimension_numbers<[1], [1], [0], [0], [0, 0, 1, 0], [], []>} : vector<8x8xbf16>, vector<32x8xbf16>, vector<8x32xf32> -> vector<8x32xf32>
    %378 = arith.addf %332, %377 : vector<8x32xf32>
    %c0_285 = arith.constant 0 : index
    %c3_286 = arith.constant 3 : index
    %c0_287 = arith.constant 0 : index
    %c0_288 = arith.constant 0 : index
    %379 = vector.load %arg11[%c0_285, %c3_286, %c0_287, %c0_288] : memref<3x4x8x32xbf16, #tpu.memory_space<vmem>>, vector<1x1x8x32xbf16>
    %380 = vector.shape_cast %379 : vector<1x1x8x32xbf16> to vector<8x32xbf16>
    %cst_289 = arith.constant dense<0.000000e+00> : vector<8x8xf32>
    %381 = tpu.matmul %239, %380, %cst_289 {dimension_numbers = #tpu.dot_dimension_numbers<[1], [1], [0], [0], [0, 0, 1, 0], [], []>} : vector<8x32xbf16>, vector<8x32xbf16>, vector<8x8xf32> -> vector<8x8xf32>
    %c0_290 = arith.constant 0 : index
    %c3_291 = arith.constant 3 : index
    %c0_292 = arith.constant 0 : index
    %c0_293 = arith.constant 0 : index
    %382 = vector.load %arg12[%c0_290, %c3_291, %c0_292, %c0_293] : memref<3x4x1x8xf32, #tpu.memory_space<vmem>>, vector<1x1x1x8xf32>
    %383 = vector.shape_cast %382 : vector<1x1x1x8xf32> to vector<1x8xf32>
    %384 = vector.broadcast %383 : vector<1x8xf32> to vector<8x8xf32>
    %385 = arith.addf %381, %384 : vector<8x8xf32>
    %c1_294 = arith.constant 1 : index
    %c3_295 = arith.constant 3 : index
    %c0_296 = arith.constant 0 : index
    %c0_297 = arith.constant 0 : index
    %386 = vector.load %arg11[%c1_294, %c3_295, %c0_296, %c0_297] : memref<3x4x8x32xbf16, #tpu.memory_space<vmem>>, vector<1x1x8x32xbf16>
    %387 = vector.shape_cast %386 : vector<1x1x8x32xbf16> to vector<8x32xbf16>
    %cst_298 = arith.constant dense<0.000000e+00> : vector<8x8xf32>
    %388 = tpu.matmul %6, %387, %cst_298 {dimension_numbers = #tpu.dot_dimension_numbers<[1], [1], [0], [0], [0, 0, 1, 0], [], []>} : vector<8x32xbf16>, vector<8x32xbf16>, vector<8x8xf32> -> vector<8x8xf32>
    %c1_299 = arith.constant 1 : index
    %c3_300 = arith.constant 3 : index
    %c0_301 = arith.constant 0 : index
    %c0_302 = arith.constant 0 : index
    %389 = vector.load %arg12[%c1_299, %c3_300, %c0_301, %c0_302] : memref<3x4x1x8xf32, #tpu.memory_space<vmem>>, vector<1x1x1x8xf32>
    %390 = vector.shape_cast %389 : vector<1x1x1x8xf32> to vector<1x8xf32>
    %391 = vector.broadcast %390 : vector<1x8xf32> to vector<8x8xf32>
    %392 = arith.addf %388, %391 : vector<8x8xf32>
    %c2_303 = arith.constant 2 : index
    %c3_304 = arith.constant 3 : index
    %c0_305 = arith.constant 0 : index
    %c0_306 = arith.constant 0 : index
    %393 = vector.load %arg11[%c2_303, %c3_304, %c0_305, %c0_306] : memref<3x4x8x32xbf16, #tpu.memory_space<vmem>>, vector<1x1x8x32xbf16>
    %394 = vector.shape_cast %393 : vector<1x1x8x32xbf16> to vector<8x32xbf16>
    %cst_307 = arith.constant dense<0.000000e+00> : vector<8x8xf32>
    %395 = tpu.matmul %6, %394, %cst_307 {dimension_numbers = #tpu.dot_dimension_numbers<[1], [1], [0], [0], [0, 0, 1, 0], [], []>} : vector<8x32xbf16>, vector<8x32xbf16>, vector<8x8xf32> -> vector<8x8xf32>
    %c2_308 = arith.constant 2 : index
    %c3_309 = arith.constant 3 : index
    %c0_310 = arith.constant 0 : index
    %c0_311 = arith.constant 0 : index
    %396 = vector.load %arg12[%c2_308, %c3_309, %c0_310, %c0_311] : memref<3x4x1x8xf32, #tpu.memory_space<vmem>>, vector<1x1x1x8xf32>
    %397 = vector.shape_cast %396 : vector<1x1x1x8xf32> to vector<1x8xf32>
    %398 = vector.broadcast %397 : vector<1x8xf32> to vector<8x8xf32>
    %399 = arith.addf %395, %398 : vector<8x8xf32>
    %400 = arith.truncf %385 : vector<8x8xf32> to vector<8x8xbf16>
    %401 = arith.truncf %392 : vector<8x8xf32> to vector<8x8xbf16>
    %cst_312 = arith.constant dense<0.000000e+00> : vector<8x8xf32>
    %402 = tpu.matmul %400, %401, %cst_312 {dimension_numbers = #tpu.dot_dimension_numbers<[1], [1], [0], [0], [0, 0, 1, 0], [], []>} : vector<8x8xbf16>, vector<8x8xbf16>, vector<8x8xf32> -> vector<8x8xf32>
    %cst_313 = arith.constant 0.353553385 : f32
    %403 = vector.broadcast %cst_313 : f32 to vector<8x8xf32>
    %404 = arith.mulf %402, %403 : vector<8x8xf32>
    %cst_314 = arith.constant -1.000000e+09 : f32
    %405 = vector.broadcast %cst_314 : f32 to vector<8x8xf32>
    %406 = arith.select %23, %404, %405 : vector<8x8xi1>, vector<8x8xf32>
    %cst_315 = arith.constant dense<0xFF800000> : vector<8xf32>
    %407 = vector.multi_reduction <maximumf>, %406, %cst_315 [1] : vector<8x8xf32> to vector<8xf32>
    %408 = vector.shape_cast %407 : vector<8xf32> to vector<8x1xf32>
    %409 = vector.broadcast %408 : vector<8x1xf32> to vector<8x8xf32>
    %410 = arith.subf %406, %409 : vector<8x8xf32>
    %411 = math.exp %410 : vector<8x8xf32>
    %cst_316 = arith.constant dense<0.000000e+00> : vector<8xf32>
    %412 = vector.multi_reduction <add>, %411, %cst_316 [1] : vector<8x8xf32> to vector<8xf32>
    %413 = vector.shape_cast %412 : vector<8xf32> to vector<8x1xf32>
    %414 = tpu.reciprocal %413 {approx = true} : vector<8x1xf32> -> vector<8x1xf32>
    %415 = vector.broadcast %414 : vector<8x1xf32> to vector<8x8xf32>
    %416 = arith.mulf %411, %415 : vector<8x8xf32>
    %417 = arith.truncf %416 : vector<8x8xf32> to vector<8x8xbf16>
    %418 = arith.truncf %399 : vector<8x8xf32> to vector<8x8xbf16>
    %cst_317 = arith.constant dense<0.000000e+00> : vector<8x8xf32>
    %419 = tpu.matmul %417, %418, %cst_317 {dimension_numbers = #tpu.dot_dimension_numbers<[1], [0], [0], [1], [0, 0, 1, 1], [], []>} : vector<8x8xbf16>, vector<8x8xbf16>, vector<8x8xf32> -> vector<8x8xf32>
    %420 = arith.truncf %419 : vector<8x8xf32> to vector<8x8xbf16>
    %c3_318 = arith.constant 3 : index
    %c0_319 = arith.constant 0 : index
    %c0_320 = arith.constant 0 : index
    %421 = vector.load %arg13[%c3_318, %c0_319, %c0_320] : memref<4x32x8xbf16, #tpu.memory_space<vmem>>, vector<1x32x8xbf16>
    %422 = vector.shape_cast %421 : vector<1x32x8xbf16> to vector<32x8xbf16>
    %cst_321 = arith.constant dense<0.000000e+00> : vector<8x32xf32>
    %423 = tpu.matmul %420, %422, %cst_321 {dimension_numbers = #tpu.dot_dimension_numbers<[1], [1], [0], [0], [0, 0, 1, 0], [], []>} : vector<8x8xbf16>, vector<32x8xbf16>, vector<8x32xf32> -> vector<8x32xf32>
    %424 = arith.addf %378, %423 : vector<8x32xf32>
    %c0_322 = arith.constant 0 : index
    %c0_323 = arith.constant 0 : index
    %425 = vector.load %arg14[%c0_322, %c0_323] : memref<1x32xf32, #tpu.memory_space<vmem>>, vector<1x32xf32>
    %426 = vector.broadcast %425 : vector<1x32xf32> to vector<8x32xf32>
    %427 = arith.addf %424, %426 : vector<8x32xf32>
    %428 = arith.addf %238, %427 : vector<8x32xf32>
    %c1_324 = arith.constant 1 : index
    %c0_325 = arith.constant 0 : index
    %c0_326 = arith.constant 0 : index
    %429 = vector.load %arg19[%c1_324, %c0_325, %c0_326] : memref<3x1x32xf32, #tpu.memory_space<vmem>>, vector<1x1x32xf32>
    %430 = vector.shape_cast %429 : vector<1x1x32xf32> to vector<1x32xf32>
    %c1_327 = arith.constant 1 : index
    %c0_328 = arith.constant 0 : index
    %c0_329 = arith.constant 0 : index
    %431 = vector.load %arg20[%c1_327, %c0_328, %c0_329] : memref<3x1x32xf32, #tpu.memory_space<vmem>>, vector<1x1x32xf32>
    %432 = vector.shape_cast %431 : vector<1x1x32xf32> to vector<1x32xf32>
    %cst_330 = arith.constant dense<0.000000e+00> : vector<8xf32>
    %433 = vector.multi_reduction <add>, %428, %cst_330 [1] : vector<8x32xf32> to vector<8xf32>
    %434 = vector.shape_cast %433 : vector<8xf32> to vector<8x1xf32>
    %cst_331 = arith.constant 3.200000e+01 : f32
    %435 = vector.broadcast %cst_331 : f32 to vector<8x1xf32>
    %436 = arith.divf %434, %435 : vector<8x1xf32>
    %437 = vector.broadcast %436 : vector<8x1xf32> to vector<8x32xf32>
    %438 = arith.subf %428, %437 : vector<8x32xf32>
    %439 = arith.mulf %438, %438 : vector<8x32xf32>
    %cst_332 = arith.constant dense<0.000000e+00> : vector<8xf32>
    %440 = vector.multi_reduction <add>, %439, %cst_332 [1] : vector<8x32xf32> to vector<8xf32>
    %441 = vector.shape_cast %440 : vector<8xf32> to vector<8x1xf32>
    %cst_333 = arith.constant 0.0322580636 : f32
    %442 = vector.broadcast %cst_333 : f32 to vector<8x1xf32>
    %443 = arith.mulf %441, %442 : vector<8x1xf32>
    %444 = math.sqrt %443 : vector<8x1xf32>
    %cst_334 = arith.constant 9.99999997E-7 : f32
    %445 = vector.broadcast %cst_334 : f32 to vector<8x1xf32>
    %446 = arith.addf %444, %445 : vector<8x1xf32>
    %447 = tpu.reciprocal %446 : vector<8x1xf32> -> vector<8x1xf32>
    %448 = vector.broadcast %447 : vector<8x1xf32> to vector<8x32xf32>
    %449 = arith.mulf %438, %448 : vector<8x32xf32>
    %450 = vector.broadcast %430 : vector<1x32xf32> to vector<8x32xf32>
    %451 = arith.mulf %450, %449 : vector<8x32xf32>
    %452 = vector.broadcast %432 : vector<1x32xf32> to vector<8x32xf32>
    %453 = arith.addf %451, %452 : vector<8x32xf32>
    %454 = arith.truncf %453 : vector<8x32xf32> to vector<8x32xbf16>
    %c0_335 = arith.constant 0 : index
    %c0_336 = arith.constant 0 : index
    %455 = vector.load %arg15[%c0_335, %c0_336] : memref<64x32xbf16, #tpu.memory_space<vmem>>, vector<64x32xbf16>
    %cst_337 = arith.constant dense<0.000000e+00> : vector<8x64xf32>
    %456 = tpu.matmul %454, %455, %cst_337 {dimension_numbers = #tpu.dot_dimension_numbers<[1], [1], [0], [0], [0, 0, 1, 0], [], []>} : vector<8x32xbf16>, vector<64x32xbf16>, vector<8x64xf32> -> vector<8x64xf32>
    %c0_338 = arith.constant 0 : index
    %c0_339 = arith.constant 0 : index
    %457 = vector.load %arg16[%c0_338, %c0_339] : memref<1x64xf32, #tpu.memory_space<vmem>>, vector<1x64xf32>
    %458 = vector.broadcast %457 : vector<1x64xf32> to vector<8x64xf32>
    %459 = arith.addf %456, %458 : vector<8x64xf32>
    %cst_340 = arith.constant 0.000000e+00 : f32
    %460 = vector.broadcast %cst_340 : f32 to vector<8x64xf32>
    %461 = arith.maximumf %459, %460 : vector<8x64xf32>
    %462 = arith.truncf %461 : vector<8x64xf32> to vector<8x64xbf16>
    %c0_341 = arith.constant 0 : index
    %c0_342 = arith.constant 0 : index
    %463 = vector.load %arg17[%c0_341, %c0_342] : memref<32x64xbf16, #tpu.memory_space<vmem>>, vector<32x64xbf16>
    %cst_343 = arith.constant dense<0.000000e+00> : vector<8x32xf32>
    %464 = tpu.matmul %462, %463, %cst_343 {dimension_numbers = #tpu.dot_dimension_numbers<[1], [1], [0], [0], [0, 0, 1, 0], [], []>} : vector<8x64xbf16>, vector<32x64xbf16>, vector<8x32xf32> -> vector<8x32xf32>
    %c0_344 = arith.constant 0 : index
    %c0_345 = arith.constant 0 : index
    %465 = vector.load %arg18[%c0_344, %c0_345] : memref<1x32xf32, #tpu.memory_space<vmem>>, vector<1x32xf32>
    %466 = vector.broadcast %465 : vector<1x32xf32> to vector<8x32xf32>
    %467 = arith.addf %464, %466 : vector<8x32xf32>
    %468 = arith.addf %453, %467 : vector<8x32xf32>
    %c2_346 = arith.constant 2 : index
    %c0_347 = arith.constant 0 : index
    %c0_348 = arith.constant 0 : index
    %469 = vector.load %arg19[%c2_346, %c0_347, %c0_348] : memref<3x1x32xf32, #tpu.memory_space<vmem>>, vector<1x1x32xf32>
    %470 = vector.shape_cast %469 : vector<1x1x32xf32> to vector<1x32xf32>
    %c2_349 = arith.constant 2 : index
    %c0_350 = arith.constant 0 : index
    %c0_351 = arith.constant 0 : index
    %471 = vector.load %arg20[%c2_349, %c0_350, %c0_351] : memref<3x1x32xf32, #tpu.memory_space<vmem>>, vector<1x1x32xf32>
    %472 = vector.shape_cast %471 : vector<1x1x32xf32> to vector<1x32xf32>
    %cst_352 = arith.constant dense<0.000000e+00> : vector<8xf32>
    %473 = vector.multi_reduction <add>, %468, %cst_352 [1] : vector<8x32xf32> to vector<8xf32>
    %474 = vector.shape_cast %473 : vector<8xf32> to vector<8x1xf32>
    %cst_353 = arith.constant 3.200000e+01 : f32
    %475 = vector.broadcast %cst_353 : f32 to vector<8x1xf32>
    %476 = arith.divf %474, %475 : vector<8x1xf32>
    %477 = vector.broadcast %476 : vector<8x1xf32> to vector<8x32xf32>
    %478 = arith.subf %468, %477 : vector<8x32xf32>
    %479 = arith.mulf %478, %478 : vector<8x32xf32>
    %cst_354 = arith.constant dense<0.000000e+00> : vector<8xf32>
    %480 = vector.multi_reduction <add>, %479, %cst_354 [1] : vector<8x32xf32> to vector<8xf32>
    %481 = vector.shape_cast %480 : vector<8xf32> to vector<8x1xf32>
    %cst_355 = arith.constant 0.0322580636 : f32
    %482 = vector.broadcast %cst_355 : f32 to vector<8x1xf32>
    %483 = arith.mulf %481, %482 : vector<8x1xf32>
    %484 = math.sqrt %483 : vector<8x1xf32>
    %cst_356 = arith.constant 9.99999997E-7 : f32
    %485 = vector.broadcast %cst_356 : f32 to vector<8x1xf32>
    %486 = arith.addf %484, %485 : vector<8x1xf32>
    %487 = tpu.reciprocal %486 : vector<8x1xf32> -> vector<8x1xf32>
    %488 = vector.broadcast %487 : vector<8x1xf32> to vector<8x32xf32>
    %489 = arith.mulf %478, %488 : vector<8x32xf32>
    %490 = vector.broadcast %470 : vector<1x32xf32> to vector<8x32xf32>
    %491 = arith.mulf %490, %489 : vector<8x32xf32>
    %492 = vector.broadcast %472 : vector<1x32xf32> to vector<8x32xf32>
    %493 = arith.addf %491, %492 : vector<8x32xf32>
    %494 = vector.shape_cast %493 : vector<8x32xf32> to vector<1x8x32xf32>
    %c0_357 = arith.constant 0 : index
    %c0_358 = arith.constant 0 : index
    %c0_359 = arith.constant 0 : index
    %495 = vector.load %arg21[%c0_357, %c0_358, %c0_359] : memref<1x8x32xf32, #tpu.memory_space<vmem>>, vector<1x8x32xf32>
    tpu.vector_store %arg21[%c0_357, %c0_358, %c0_359], %494 {strides = array<i32>} : memref<1x8x32xf32, #tpu.memory_space<vmem>>, vector<1x8x32xf32>,
    return
  }
  func.func @transform_0(%arg0: i32, %arg1: i32) -> (i32, i32, i32) {
    %c0_i32 = arith.constant 0 : i32
    %c0_i32_0 = arith.constant 0 : i32
    return %arg0, %arg1, %c0_i32 : i32, i32, i32
  }
  func.func @transform_1(%arg0: i32, %arg1: i32) -> (i32, i32, i32) {
    %c0_i32 = arith.constant 0 : i32
    %c0_i32_0 = arith.constant 0 : i32
    %c0_i32_1 = arith.constant 0 : i32
    return %arg0, %c0_i32, %c0_i32_0 : i32, i32, i32
  }
  func.func @transform_2(%arg0: i32, %arg1: i32) -> (i32, i32, i32) {
    %c0_i32 = arith.constant 0 : i32
    %c0_i32_0 = arith.constant 0 : i32
    %c0_i32_1 = arith.constant 0 : i32
    return %arg0, %c0_i32, %c0_i32_0 : i32, i32, i32
  }
  func.func @transform_3(%arg0: i32, %arg1: i32) -> (i32, i32, i32) {
    %c0_i32 = arith.constant 0 : i32
    %c0_i32_0 = arith.constant 0 : i32
    %c0_i32_1 = arith.constant 0 : i32
    return %arg0, %c0_i32, %c0_i32_0 : i32, i32, i32
  }
  func.func @transform_4(%arg0: i32, %arg1: i32) -> (i32, i32, i32) {
    %c0_i32 = arith.constant 0 : i32
    %c0_i32_0 = arith.constant 0 : i32
    %c0_i32_1 = arith.constant 0 : i32
    return %arg0, %c0_i32, %c0_i32_0 : i32, i32, i32
  }
  func.func @transform_5(%arg0: i32, %arg1: i32) -> (i32, i32, i32, i32) {
    %c0_i32 = arith.constant 0 : i32
    %c0_i32_0 = arith.constant 0 : i32
    %c0_i32_1 = arith.constant 0 : i32
    %c0_i32_2 = arith.constant 0 : i32
    %c0_i32_3 = arith.constant 0 : i32
    return %c0_i32, %c0_i32_0, %c0_i32_1, %c0_i32_2 : i32, i32, i32, i32
  }
  func.func @transform_6(%arg0: i32, %arg1: i32) -> (i32, i32, i32, i32) {
    %c0_i32 = arith.constant 0 : i32
    %c0_i32_0 = arith.constant 0 : i32
    %c0_i32_1 = arith.constant 0 : i32
    %c0_i32_2 = arith.constant 0 : i32
    %c0_i32_3 = arith.constant 0 : i32
    return %c0_i32, %c0_i32_0, %c0_i32_1, %c0_i32_2 : i32, i32, i32, i32
  }
  func.func @transform_7(%arg0: i32, %arg1: i32) -> (i32, i32, i32) {
    %c0_i32 = arith.constant 0 : i32
    %c0_i32_0 = arith.constant 0 : i32
    %c0_i32_1 = arith.constant 0 : i32
    %c0_i32_2 = arith.constant 0 : i32
    return %c0_i32, %c0_i32_0, %c0_i32_1 : i32, i32, i32
  }
  func.func @transform_8(%arg0: i32, %arg1: i32) -> (i32, i32) {
    %c0_i32 = arith.constant 0 : i32
    %c0_i32_0 = arith.constant 0 : i32
    %c0_i32_1 = arith.constant 0 : i32
    return %c0_i32, %c0_i32_0 : i32, i32
  }
  func.func @transform_9(%arg0: i32, %arg1: i32) -> (i32, i32, i32, i32) {
    %c0_i32 = arith.constant 0 : i32
    %c0_i32_0 = arith.constant 0 : i32
    %c0_i32_1 = arith.constant 0 : i32
    %c0_i32_2 = arith.constant 0 : i32
    %c0_i32_3 = arith.constant 0 : i32
    return %c0_i32, %c0_i32_0, %c0_i32_1, %c0_i32_2 : i32, i32, i32, i32
  }
  func.func @transform_10(%arg0: i32, %arg1: i32) -> (i32, i32, i32, i32) {
    %c0_i32 = arith.constant 0 : i32
    %c0_i32_0 = arith.constant 0 : i32
    %c0_i32_1 = arith.constant 0 : i32
    %c0_i32_2 = arith.constant 0 : i32
    %c0_i32_3 = arith.constant 0 : i32
    return %c0_i32, %c0_i32_0, %c0_i32_1, %c0_i32_2 : i32, i32, i32, i32
  }
  func.func @transform_11(%arg0: i32, %arg1: i32) -> (i32, i32, i32) {
    %c0_i32 = arith.constant 0 : i32
    %c0_i32_0 = arith.constant 0 : i32
    %c0_i32_1 = arith.constant 0 : i32
    %c0_i32_2 = arith.constant 0 : i32
    return %c0_i32, %c0_i32_0, %c0_i32_1 : i32, i32, i32
  }
  func.func @transform_12(%arg0: i32, %arg1: i32) -> (i32, i32) {
    %c0_i32 = arith.constant 0 : i32
    %c0_i32_0 = arith.constant 0 : i32
    %c0_i32_1 = arith.constant 0 : i32
    return %c0_i32, %c0_i32_0 : i32, i32
  }
  func.func @transform_13(%arg0: i32, %arg1: i32) -> (i32, i32) {
    %c0_i32 = arith.constant 0 : i32
    %c0_i32_0 = arith.constant 0 : i32
    %c0_i32_1 = arith.constant 0 : i32
    return %c0_i32, %c0_i32_0 : i32, i32
  }
  func.func @transform_14(%arg0: i32, %arg1: i32) -> (i32, i32) {
    %c0_i32 = arith.constant 0 : i32
    %c0_i32_0 = arith.constant 0 : i32
    %c0_i32_1 = arith.constant 0 : i32
    return %c0_i32, %c0_i32_0 : i32, i32
  }
  func.func @transform_15(%arg0: i32, %arg1: i32) -> (i32, i32) {
    %c0_i32 = arith.constant 0 : i32
    %c0_i32_0 = arith.constant 0 : i32
    %c0_i32_1 = arith.constant 0 : i32
    return %c0_i32, %c0_i32_0 : i32, i32
  }
  func.func @transform_16(%arg0: i32, %arg1: i32) -> (i32, i32) {
    %c0_i32 = arith.constant 0 : i32
    %c0_i32_0 = arith.constant 0 : i32
    %c0_i32_1 = arith.constant 0 : i32
    return %c0_i32, %c0_i32_0 : i32, i32
  }
  func.func @transform_17(%arg0: i32, %arg1: i32) -> (i32, i32, i32) {
    %c0_i32 = arith.constant 0 : i32
    %c0_i32_0 = arith.constant 0 : i32
    %c0_i32_1 = arith.constant 0 : i32
    %c0_i32_2 = arith.constant 0 : i32
    return %c0_i32, %c0_i32_0, %c0_i32_1 : i32, i32, i32
  }
  func.func @transform_18(%arg0: i32, %arg1: i32) -> (i32, i32, i32) {
    %c0_i32 = arith.constant 0 : i32
    %c0_i32_0 = arith.constant 0 : i32
    %c0_i32_1 = arith.constant 0 : i32
    %c0_i32_2 = arith.constant 0 : i32
    return %c0_i32, %c0_i32_0, %c0_i32_1 : i32, i32, i32
  }
  func.func @transform_19(%arg0: i32, %arg1: i32) -> (i32, i32, i32) {
    %c0_i32 = arith.constant 0 : i32
    %c0_i32_0 = arith.constant 0 : i32
    return %arg0, %arg1, %c0_i32 : i32, i32, i32
  }
}

</mosaic_0001>

<llo_original>
// kernel: decoder_layer_forward.1
$region0: #{decoder_layer_forward.1}
  #allocation0 [shape = 'u32[]', space=smem, size = 0x4, offset = 0x4, fixed_abs, tag = 'smem constant byte address 0x4 - core index']
  #allocation1 [shape = 'u32[144,128]{1,0:T(1,128)}', space=vmem, size = 0x12000, scoped, tag = 'internal scratch']
  %s0 = inlined_call_operand.vmem [shape: bf16[2,8,32], index: 0, kind: input, shape index: {}, may-alias: {0,1}]
  %s1 = inlined_call_operand.vmem [shape: bf16[2,8,32], index: 1, kind: input, shape index: {}, may-alias: {0,1}]
  %s2 = inlined_call_operand.vmem [shape: bf16[2,8,32], index: 2, kind: input, shape index: {}]
  %s3 = inlined_call_operand.vmem [shape: s32[2,1,8], index: 3, kind: input, shape index: {}]
  %s4 = inlined_call_operand.vmem [shape: s32[2,1,8], index: 4, kind: input, shape index: {}]
  %s5 = inlined_call_operand.vmem [shape: bf16[3,4,8,32], index: 5, kind: input, shape index: {}]
  %s6 = inlined_call_operand.vmem [shape: f32[3,4,1,8], index: 6, kind: input, shape index: {}]
  %s7 = inlined_call_operand.vmem [shape: bf16[4,32,8], index: 7, kind: input, shape index: {}]
  %s8 = inlined_call_operand.vmem [shape: f32[1,32], index: 8, kind: input, shape index: {}]
  %s9 = inlined_call_operand.vmem [shape: bf16[3,4,8,32], index: 9, kind: input, shape index: {}]
  %s10 = inlined_call_operand.vmem [shape: f32[3,4,1,8], index: 10, kind: input, shape index: {}]
  %s11 = inlined_call_operand.vmem [shape: bf16[4,32,8], index: 11, kind: input, shape index: {}]
  %s12 = inlined_call_operand.vmem [shape: f32[1,32], index: 12, kind: input, shape index: {}]
  %s13 = inlined_call_operand.vmem [shape: bf16[64,32], index: 13, kind: input, shape index: {}]
  %s14 = inlined_call_operand.vmem [shape: f32[1,64], index: 14, kind: input, shape index: {}]
  %s15 = inlined_call_operand.vmem [shape: bf16[32,64], index: 15, kind: input, shape index: {}]
  %s16 = inlined_call_operand.vmem [shape: f32[1,32], index: 16, kind: input, shape index: {}]
  %s17 = inlined_call_operand.vmem [shape: f32[3,1,32], index: 17, kind: input, shape index: {}]
  %s18 = inlined_call_operand.vmem [shape: f32[3,1,32], index: 18, kind: input, shape index: {}]
  %s19 = inlined_call_operand.hbm [shape: f32[2,8,32], index: 19, kind: output, shape index: {}]
  %s20 = sld [smem:[#allocation0]]
  $region109: #{decoder_layer_forward.1} parent=0
    _
  %s22 = ssub.s32 1, %s20
  %s23 = scalar_select 0, %s22, %s20
  $region1: #{decoder_layer_forward.1} parent=0
    #allocation2 [shape = 'u8[8192]{0}', space=vmem, size = 0x2000, scoped, tag = 'output window, operand 0']
    #allocation3 [shape = 's32[2]{0}', space=sflag, size = 0x8, scoped, tag = 'scoped memory for decoder_layer_forward.1']
    %24 = vsyncpa [#allocation3], 0
    %s25 = scalar_lea.sflag [#allocation3], 1
    %26 = vsyncpa %s25, 0
    loop: start=0, step=1, limit=4
    $region2: #{decoder_layer_forward.1} parent=1 // loop_pre_header
      _
    $region3: #{decoder_layer_forward.1} parent=1 // loop_header
      %s28 = sphi 0, %s32
      %p29 = scmp.ge.s32.totalorder %s28, 4
      %s35 = sphi 0, %s47
      %s36 = sphi 0, %s43
      %s37 = sphi 0, %s35
      %s38 = sphi 0, %s36
      %s39 = sphi 0, %s37
      %s40 = sphi 0, %s38
      %s52 = sphi 0, %s54
      %s55 = sphi 0, %s52
      %s56 = sphi 0, %s55
      %s72 = sphi 0, %s56
      %s78 = sphi 0, %s80
      %s81 = sphi 0, %s78
      %s82 = sphi 0, %s81
      %s98 = sphi 0, %s82
      %s104 = sphi 0, %s106
      %s107 = sphi 0, %s104
      %s108 = sphi 0, %s107
      %s124 = sphi 0, %s108
      %s130 = sphi 0, %s132
      %s133 = sphi 0, %s130
      %s134 = sphi 0, %s133
      %s150 = sphi 0, %s134
      %s156 = sphi 0, %s158
      %s159 = sphi 0, %s156
      %s160 = sphi 0, %s159
      %s176 = sphi 0, %s160
      %s180 = sphi 0, %s180
      %s182 = sphi 0, %s180
      %s183 = sphi 0, %s182
      %s197 = sphi 0, %s183
      %s201 = sphi 0, %s201
      %s203 = sphi 0, %s201
      %s204 = sphi 0, %s203
      %s218 = sphi 0, %s204
      %s222 = sphi 0, %s222
      %s224 = sphi 0, %s222
      %s225 = sphi 0, %s224
      %s239 = sphi 0, %s225
      %s243 = sphi 0, %s243
      %s245 = sphi 0, %s243
      %s246 = sphi 0, %s245
      %s260 = sphi 0, %s246
      %s264 = sphi 0, %s264
      %s266 = sphi 0, %s264
      %s267 = sphi 0, %s266
      %s281 = sphi 0, %s267
      %s285 = sphi 0, %s285
      %s287 = sphi 0, %s285
      %s288 = sphi 0, %s287
      %s302 = sphi 0, %s288
      %s306 = sphi 0, %s306
      %s308 = sphi 0, %s306
      %s309 = sphi 0, %s308
      %s323 = sphi 0, %s309
      %s327 = sphi 0, %s327
      %s329 = sphi 0, %s327
      %s330 = sphi 0, %s329
      %s344 = sphi 0, %s330
      %s348 = sphi 0, %s348
      %s350 = sphi 0, %s348
      %s351 = sphi 0, %s350
      %s365 = sphi 0, %s351
      %s369 = sphi 0, %s369
      %s371 = sphi 0, %s369
      %s372 = sphi 0, %s371
      %s386 = sphi 0, %s372
      %s390 = sphi 0, %s390
      %s392 = sphi 0, %s390
      %s393 = sphi 0, %s392
      %s407 = sphi 0, %s393
      %s411 = sphi 0, %s411
      %s413 = sphi 0, %s411
      %s414 = sphi 0, %s413
      %s428 = sphi 0, %s414
      %s432 = sphi 0, %s432
      %s434 = sphi 0, %s432
      %s435 = sphi 0, %s434
      %s449 = sphi 0, %s435
      %s453 = sphi 0, %s453
      %s455 = sphi 0, %s453
      %s456 = sphi 0, %s455
      %s470 = sphi 0, %s456
      %s478 = sphi 0, %s480
      %s481 = sphi 0, %s478
      %s482 = sphi 0, %s481
      %s498 = sphi 0, %s482
    $region4: #{decoder_layer_forward.1} parent=1 // loop_header_branch
      %31 = sbr.rel (%p29) target = $region8
    $region5: #{decoder_layer_forward.1} parent=1 // loop_body
      %s33 = ssub.s32 %s28, 1
      %s34 = ssub.s32 %s28, 2
      %s41 = sadd.s32 1, %s36
      %p42 = scmp.ge.s32.totalorder %s41, 1
      %s43 = scalar_select %p42, 0, %s41
      %s44 = sadd.s32 1, %s35
      %s45 = scalar_select %p42, %s44, %s35
      %p46 = scmp.ge.s32.totalorder %s45, 2
      %s47 = scalar_select %p46, 0, %s45
      %s48 = ssub.s32 %s35, %s47
      %s49 = ssub.s32 %s36, %s43
      %s50 = sor.u32 %s48, %s49
      %p51 = scmp.eq.s32.totalorder %s50, 0
      %s53 = sadd.s32 %s52, 1
      %s54 = scalar_select %p51, %s52, %s53
      %p57 = pneg %p51
      %p58 = scmp.eq.s32.totalorder %s28, 1
      %p59 = por %p57, %p58
      %p60 = scmp.ne.s32.totalorder %s52, %s55
      %p61 = scmp.eq.s32.totalorder %s28, 0
      %p62 = por %p60, %p61
      %p63 = scmp.ne.s32.totalorder %s52, %s55
      %p64 = scmp.eq.s32.totalorder %s33, 1
      %p65 = por %p63, %p64
      %p66 = scmp.ne.s32.totalorder %s55, %s56
      %p67 = scmp.eq.s32.totalorder %s33, 0
      %p68 = por %p66, %p67
      %p69 = scmp.ne.s32.totalorder %s55, %s56
      %p70 = scmp.eq.s32.totalorder %s34, 1
      %p71 = por %p69, %p70
      %p73 = scmp.ne.s32.totalorder %s56, %s72
      %p74 = scmp.eq.s32.totalorder %s34, 0
      %p75 = por %p73, %p74
      %s76 = ssub.s32 %s35, %s47
      %p77 = scmp.eq.s32.totalorder %s76, 0
      %s79 = sadd.s32 %s78, 1
      %s80 = scalar_select %p77, %s78, %s79
      %p83 = pneg %p77
      %p84 = scmp.eq.s32.totalorder %s28, 1
      %p85 = por %p83, %p84
      %p86 = scmp.ne.s32.totalorder %s78, %s81
      %p87 = scmp.eq.s32.totalorder %s28, 0
      %p88 = por %p86, %p87
      %p89 = scmp.ne.s32.totalorder %s78, %s81
      %p90 = scmp.eq.s32.totalorder %s33, 1
      %p91 = por %p89, %p90
      %p92 = scmp.ne.s32.totalorder %s81, %s82
      %p93 = scmp.eq.s32.totalorder %s33, 0
      %p94 = por %p92, %p93
      %p95 = scmp.ne.s32.totalorder %s81, %s82
      %p96 = scmp.eq.s32.totalorder %s34, 1
      %p97 = por %p95, %p96
      %p99 = scmp.ne.s32.totalorder %s82, %s98
      %p100 = scmp.eq.s32.totalorder %s34, 0
      %p101 = por %p99, %p100
      %s102 = ssub.s32 %s35, %s47
      %p103 = scmp.eq.s32.totalorder %s102, 0
      %s105 = sadd.s32 %s104, 1
      %s106 = scalar_select %p103, %s104, %s105
      %p109 = pneg %p103
      %p110 = scmp.eq.s32.totalorder %s28, 1
      %p111 = por %p109, %p110
      %p112 = scmp.ne.s32.totalorder %s104, %s107
      %p113 = scmp.eq.s32.totalorder %s28, 0
      %p114 = por %p112, %p113
      %p115 = scmp.ne.s32.totalorder %s104, %s107
      %p116 = scmp.eq.s32.totalorder %s33, 1
      %p117 = por %p115, %p116
      %p118 = scmp.ne.s32.totalorder %s107, %s108
      %p119 = scmp.eq.s32.totalorder %s33, 0
      %p120 = por %p118, %p119
      %p121 = scmp.ne.s32.totalorder %s107, %s108
      %p122 = scmp.eq.s32.totalorder %s34, 1
      %p123 = por %p121, %p122
      %p125 = scmp.ne.s32.totalorder %s108, %s124
      %p126 = scmp.eq.s32.totalorder %s34, 0
      %p127 = por %p125, %p126
      %s128 = ssub.s32 %s35, %s47
      %p129 = scmp.eq.s32.totalorder %s128, 0
      %s131 = sadd.s32 %s130, 1
      %s132 = scalar_select %p129, %s130, %s131
      %p135 = pneg %p129
      %p136 = scmp.eq.s32.totalorder %s28, 1
      %p137 = por %p135, %p136
      %p138 = scmp.ne.s32.totalorder %s130, %s133
      %p139 = scmp.eq.s32.totalorder %s28, 0
      %p140 = por %p138, %p139
      %p141 = scmp.ne.s32.totalorder %s130, %s133
      %p142 = scmp.eq.s32.totalorder %s33, 1
      %p143 = por %p141, %p142
      %p144 = scmp.ne.s32.totalorder %s133, %s134
      %p145 = scmp.eq.s32.totalorder %s33, 0
      %p146 = por %p144, %p145
      %p147 = scmp.ne.s32.totalorder %s133, %s134
      %p148 = scmp.eq.s32.totalorder %s34, 1
      %p149 = por %p147, %p148
      %p151 = scmp.ne.s32.totalorder %s134, %s150
      %p152 = scmp.eq.s32.totalorder %s34, 0
      %p153 = por %p151, %p152
      %s154 = ssub.s32 %s35, %s47
      %p155 = scmp.eq.s32.totalorder %s154, 0
      %s157 = sadd.s32 %s156, 1
      %s158 = scalar_select %p155, %s156, %s157
      %p161 = pneg %p155
      %p162 = scmp.eq.s32.totalorder %s28, 1
      %p163 = por %p161, %p162
      %p164 = scmp.ne.s32.totalorder %s156, %s159
      %p165 = scmp.eq.s32.totalorder %s28, 0
      %p166 = por %p164, %p165
      %p167 = scmp.ne.s32.totalorder %s156, %s159
      %p168 = scmp.eq.s32.totalorder %s33, 1
      %p169 = por %p167, %p168
      %p170 = scmp.ne.s32.totalorder %s159, %s160
      %p171 = scmp.eq.s32.totalorder %s33, 0
      %p172 = por %p170, %p171
      %p173 = scmp.ne.s32.totalorder %s159, %s160
      %p174 = scmp.eq.s32.totalorder %s34, 1
      %p175 = por %p173, %p174
      %p177 = scmp.ne.s32.totalorder %s160, %s176
      %p178 = scmp.eq.s32.totalorder %s34, 0
      %p179 = por %p177, %p178
      %s181 = sadd.s32 %s180, 1
      %p184 = scmp.eq.s32.totalorder %s28, 1
      %p185 = scmp.ne.s32.totalorder %s180, %s182
      %p186 = scmp.eq.s32.totalorder %s28, 0
      %p187 = por %p185, %p186
      %p188 = scmp.ne.s32.totalorder %s180, %s182
      %p189 = scmp.eq.s32.totalorder %s33, 1
      %p190 = por %p188, %p189
      %p191 = scmp.ne.s32.totalorder %s182, %s183
      %p192 = scmp.eq.s32.totalorder %s33, 0
      %p193 = por %p191, %p192
      %p194 = scmp.ne.s32.totalorder %s182, %s183
      %p195 = scmp.eq.s32.totalorder %s34, 1
      %p196 = por %p194, %p195
      %p198 = scmp.ne.s32.totalorder %s183, %s197
      %p199 = scmp.eq.s32.totalorder %s34, 0
      %p200 = por %p198, %p199
      %s202 = sadd.s32 %s201, 1
      %p205 = scmp.eq.s32.totalorder %s28, 1
      %p206 = scmp.ne.s32.totalorder %s201, %s203
      %p207 = scmp.eq.s32.totalorder %s28, 0
      %p208 = por %p206, %p207
      %p209 = scmp.ne.s32.totalorder %s201, %s203
      %p210 = scmp.eq.s32.totalorder %s33, 1
      %p211 = por %p209, %p210
      %p212 = scmp.ne.s32.totalorder %s203, %s204
      %p213 = scmp.eq.s32.totalorder %s33, 0
      %p214 = por %p212, %p213
      %p215 = scmp.ne.s32.totalorder %s203, %s204
      %p216 = scmp.eq.s32.totalorder %s34, 1
      %p217 = por %p215, %p216
      %p219 = scmp.ne.s32.totalorder %s204, %s218
      %p220 = scmp.eq.s32.totalorder %s34, 0
      %p221 = por %p219, %p220
      %s223 = sadd.s32 %s222, 1
      %p226 = scmp.eq.s32.totalorder %s28, 1
      %p227 = scmp.ne.s32.totalorder %s222, %s224
      %p228 = scmp.eq.s32.totalorder %s28, 0
      %p229 = por %p227, %p228
      %p230 = scmp.ne.s32.totalorder %s222, %s224
      %p231 = scmp.eq.s32.totalorder %s33, 1
      %p232 = por %p230, %p231
      %p233 = scmp.ne.s32.totalorder %s224, %s225
      %p234 = scmp.eq.s32.totalorder %s33, 0
      %p235 = por %p233, %p234
      %p236 = scmp.ne.s32.totalorder %s224, %s225
      %p237 = scmp.eq.s32.totalorder %s34, 1
      %p238 = por %p236, %p237
      %p240 = scmp.ne.s32.totalorder %s225, %s239
      %p241 = scmp.eq.s32.totalorder %s34, 0
      %p242 = por %p240, %p241
      %s244 = sadd.s32 %s243, 1
      %p247 = scmp.eq.s32.totalorder %s28, 1
      %p248 = scmp.ne.s32.totalorder %s243, %s245
      %p249 = scmp.eq.s32.totalorder %s28, 0
      %p250 = por %p248, %p249
      %p251 = scmp.ne.s32.totalorder %s243, %s245
      %p252 = scmp.eq.s32.totalorder %s33, 1
      %p253 = por %p251, %p252
      %p254 = scmp.ne.s32.totalorder %s245, %s246
      %p255 = scmp.eq.s32.totalorder %s33, 0
      %p256 = por %p254, %p255
      %p257 = scmp.ne.s32.totalorder %s245, %s246
      %p258 = scmp.eq.s32.totalorder %s34, 1
      %p259 = por %p257, %p258
      %p261 = scmp.ne.s32.totalorder %s246, %s260
      %p262 = scmp.eq.s32.totalorder %s34, 0
      %p263 = por %p261, %p262
      %s265 = sadd.s32 %s264, 1
      %p268 = scmp.eq.s32.totalorder %s28, 1
      %p269 = scmp.ne.s32.totalorder %s264, %s266
      %p270 = scmp.eq.s32.totalorder %s28, 0
      %p271 = por %p269, %p270
      %p272 = scmp.ne.s32.totalorder %s264, %s266
      %p273 = scmp.eq.s32.totalorder %s33, 1
      %p274 = por %p272, %p273
      %p275 = scmp.ne.s32.totalorder %s266, %s267
      %p276 = scmp.eq.s32.totalorder %s33, 0
      %p277 = por %p275, %p276
      %p278 = scmp.ne.s32.totalorder %s266, %s267
      %p279 = scmp.eq.s32.totalorder %s34, 1
      %p280 = por %p278, %p279
      %p282 = scmp.ne.s32.totalorder %s267, %s281
      %p283 = scmp.eq.s32.totalorder %s34, 0
      %p284 = por %p282, %p283
      %s286 = sadd.s32 %s285, 1
      %p289 = scmp.eq.s32.totalorder %s28, 1
      %p290 = scmp.ne.s32.totalorder %s285, %s287
      %p291 = scmp.eq.s32.totalorder %s28, 0
      %p292 = por %p290, %p291
      %p293 = scmp.ne.s32.totalorder %s285, %s287
      %p294 = scmp.eq.s32.totalorder %s33, 1
      %p295 = por %p293, %p294
      %p296 = scmp.ne.s32.totalorder %s287, %s288
      %p297 = scmp.eq.s32.totalorder %s33, 0
      %p298 = por %p296, %p297
      %p299 = scmp.ne.s32.totalorder %s287, %s288
      %p300 = scmp.eq.s32.totalorder %s34, 1
      %p301 = por %p299, %p300
      %p303 = scmp.ne.s32.totalorder %s288, %s302
      %p304 = scmp.eq.s32.totalorder %s34, 0
      %p305 = por %p303, %p304
      %s307 = sadd.s32 %s306, 1
      %p310 = scmp.eq.s32.totalorder %s28, 1
      %p311 = scmp.ne.s32.totalorder %s306, %s308
      %p312 = scmp.eq.s32.totalorder %s28, 0
      %p313 = por %p311, %p312
      %p314 = scmp.ne.s32.totalorder %s306, %s308
      %p315 = scmp.eq.s32.totalorder %s33, 1
      %p316 = por %p314, %p315
      %p317 = scmp.ne.s32.totalorder %s308, %s309
      %p318 = scmp.eq.s32.totalorder %s33, 0
      %p319 = por %p317, %p318
      %p320 = scmp.ne.s32.totalorder %s308, %s309
      %p321 = scmp.eq.s32.totalorder %s34, 1
      %p322 = por %p320, %p321
      %p324 = scmp.ne.s32.totalorder %s309, %s323
      %p325 = scmp.eq.s32.totalorder %s34, 0
      %p326 = por %p324, %p325
      %s328 = sadd.s32 %s327, 1
      %p331 = scmp.eq.s32.totalorder %s28, 1
      %p332 = scmp.ne.s32.totalorder %s327, %s329
      %p333 = scmp.eq.s32.totalorder %s28, 0
      %p334 = por %p332, %p333
      %p335 = scmp.ne.s32.totalorder %s327, %s329
      %p336 = scmp.eq.s32.totalorder %s33, 1
      %p337 = por %p335, %p336
      %p338 = scmp.ne.s32.totalorder %s329, %s330
      %p339 = scmp.eq.s32.totalorder %s33, 0
      %p340 = por %p338, %p339
      %p341 = scmp.ne.s32.totalorder %s329, %s330
      %p342 = scmp.eq.s32.totalorder %s34, 1
      %p343 = por %p341, %p342
      %p345 = scmp.ne.s32.totalorder %s330, %s344
      %p346 = scmp.eq.s32.totalorder %s34, 0
      %p347 = por %p345, %p346
      %s349 = sadd.s32 %s348, 1
      %p352 = scmp.eq.s32.totalorder %s28, 1
      %p353 = scmp.ne.s32.totalorder %s348, %s350
      %p354 = scmp.eq.s32.totalorder %s28, 0
      %p355 = por %p353, %p354
      %p356 = scmp.ne.s32.totalorder %s348, %s350
      %p357 = scmp.eq.s32.totalorder %s33, 1
      %p358 = por %p356, %p357
      %p359 = scmp.ne.s32.totalorder %s350, %s351
      %p360 = scmp.eq.s32.totalorder %s33, 0
      %p361 = por %p359, %p360
      %p362 = scmp.ne.s32.totalorder %s350, %s351
      %p363 = scmp.eq.s32.totalorder %s34, 1
      %p364 = por %p362, %p363
      %p366 = scmp.ne.s32.totalorder %s351, %s365
      %p367 = scmp.eq.s32.totalorder %s34, 0
      %p368 = por %p366, %p367
      %s370 = sadd.s32 %s369, 1
      %p373 = scmp.eq.s32.totalorder %s28, 1
      %p374 = scmp.ne.s32.totalorder %s369, %s371
      %p375 = scmp.eq.s32.totalorder %s28, 0
      %p376 = por %p374, %p375
      %p377 = scmp.ne.s32.totalorder %s369, %s371
      %p378 = scmp.eq.s32.totalorder %s33, 1
      %p379 = por %p377, %p378
      %p380 = scmp.ne.s32.totalorder %s371, %s372
      %p381 = scmp.eq.s32.totalorder %s33, 0
      %p382 = por %p380, %p381
      %p383 = scmp.ne.s32.totalorder %s371, %s372
      %p384 = scmp.eq.s32.totalorder %s34, 1
      %p385 = por %p383, %p384
      %p387 = scmp.ne.s32.totalorder %s372, %s386
      %p388 = scmp.eq.s32.totalorder %s34, 0
      %p389 = por %p387, %p388
      %s391 = sadd.s32 %s390, 1
      %p394 = scmp.eq.s32.totalorder %s28, 1
      %p395 = scmp.ne.s32.totalorder %s390, %s392
      %p396 = scmp.eq.s32.totalorder %s28, 0
      %p397 = por %p395, %p396
      %p398 = scmp.ne.s32.totalorder %s390, %s392
      %p399 = scmp.eq.s32.totalorder %s33, 1
      %p400 = por %p398, %p399
      %p401 = scmp.ne.s32.totalorder %s392, %s393
      %p402 = scmp.eq.s32.totalorder %s33, 0
      %p403 = por %p401, %p402
      %p404 = scmp.ne.s32.totalorder %s392, %s393
      %p405 = scmp.eq.s32.totalorder %s34, 1
      %p406 = por %p404, %p405
      %p408 = scmp.ne.s32.totalorder %s393, %s407
      %p409 = scmp.eq.s32.totalorder %s34, 0
      %p410 = por %p408, %p409
      %s412 = sadd.s32 %s411, 1
      %p415 = scmp.eq.s32.totalorder %s28, 1
      %p416 = scmp.ne.s32.totalorder %s411, %s413
      %p417 = scmp.eq.s32.totalorder %s28, 0
      %p418 = por %p416, %p417
      %p419 = scmp.ne.s32.totalorder %s411, %s413
      %p420 = scmp.eq.s32.totalorder %s33, 1
      %p421 = por %p419, %p420
      %p422 = scmp.ne.s32.totalorder %s413, %s414
      %p423 = scmp.eq.s32.totalorder %s33, 0
      %p424 = por %p422, %p423
      %p425 = scmp.ne.s32.totalorder %s413, %s414
      %p426 = scmp.eq.s32.totalorder %s34, 1
      %p427 = por %p425, %p426
      %p429 = scmp.ne.s32.totalorder %s414, %s428
      %p430 = scmp.eq.s32.totalorder %s34, 0
      %p431 = por %p429, %p430
      %s433 = sadd.s32 %s432, 1
      %p436 = scmp.eq.s32.totalorder %s28, 1
      %p437 = scmp.ne.s32.totalorder %s432, %s434
      %p438 = scmp.eq.s32.totalorder %s28, 0
      %p439 = por %p437, %p438
      %p440 = scmp.ne.s32.totalorder %s432, %s434
      %p441 = scmp.eq.s32.totalorder %s33, 1
      %p442 = por %p440, %p441
      %p443 = scmp.ne.s32.totalorder %s434, %s435
      %p444 = scmp.eq.s32.totalorder %s33, 0
      %p445 = por %p443, %p444
      %p446 = scmp.ne.s32.totalorder %s434, %s435
      %p447 = scmp.eq.s32.totalorder %s34, 1
      %p448 = por %p446, %p447
      %p450 = scmp.ne.s32.totalorder %s435, %s449
      %p451 = scmp.eq.s32.totalorder %s34, 0
      %p452 = por %p450, %p451
      %s454 = sadd.s32 %s453, 1
      %p457 = scmp.eq.s32.totalorder %s28, 1
      %p458 = scmp.ne.s32.totalorder %s453, %s455
      %p459 = scmp.eq.s32.totalorder %s28, 0
      %p460 = por %p458, %p459
      %p461 = scmp.ne.s32.totalorder %s453, %s455
      %p462 = scmp.eq.s32.totalorder %s33, 1
      %p463 = por %p461, %p462
      %p464 = scmp.ne.s32.totalorder %s455, %s456
      %p465 = scmp.eq.s32.totalorder %s33, 0
      %p466 = por %p464, %p465
      %p467 = scmp.ne.s32.totalorder %s455, %s456
      %p468 = scmp.eq.s32.totalorder %s34, 1
      %p469 = por %p467, %p468
      %p471 = scmp.ne.s32.totalorder %s456, %s470
      %p472 = scmp.eq.s32.totalorder %s34, 0
      %p473 = por %p471, %p472
      %s474 = ssub.s32 %s35, %s47
      %s475 = ssub.s32 %s36, %s43
      %s476 = sor.u32 %s474, %s475
      %p477 = scmp.eq.s32.totalorder %s476, 0
      %s479 = sadd.s32 %s478, 1
      %s480 = scalar_select %p477, %s478, %s479
      %p483 = pneg %p477
      %p484 = scmp.eq.s32.totalorder %s28, 1
      %p485 = por %p483, %p484
      %p486 = scmp.ne.s32.totalorder %s478, %s481
      %p487 = scmp.eq.s32.totalorder %s28, 0
      %p488 = por %p486, %p487
      %p489 = scmp.ne.s32.totalorder %s478, %s481
      %p490 = scmp.eq.s32.totalorder %s33, 1
      %p491 = por %p489, %p490
      %p492 = scmp.ne.s32.totalorder %s481, %s482
      %p493 = scmp.eq.s32.totalorder %s33, 0
      %p494 = por %p492, %p493
      %p495 = scmp.ne.s32.totalorder %s481, %s482
      %p496 = scmp.eq.s32.totalorder %s34, 1
      %p497 = por %p495, %p496
      %p499 = scmp.ne.s32.totalorder %s482, %s498
      %p500 = scmp.eq.s32.totalorder %s34, 0
      %p501 = por %p499, %p500
      %p502 = scmp.le.s32.totalorder 1, %s28
      %p503 = scmp.lt.s32.totalorder %s28, 3
      %p504 = pnand %p502, %p503
      %p505 = pneg %p504
      // Predicated region
      $region9: #{decoder_layer_forward.1} parent=5 // pred_check
        _
      $region10: #{decoder_layer_forward.1} parent=5 // pred_check_branch
        %507 = sbr.rel (%p504) target = $region12
      $region11: #{decoder_layer_forward.1} parent=5 // pred_region
        %s508 = ssub.s32 %s28, 1
        // Predicated region
        $region13: #{decoder_layer_forward.1} parent=11 // pred_check
          %p509 = pneg %p193
        $region14: #{decoder_layer_forward.1} parent=11 // pred_check_branch
          %511 = sbr.rel (%p509) target = $region16
        $region15: #{decoder_layer_forward.1} parent=11 // pred_region
          _
        $region16: #{decoder_layer_forward.1} parent=11 // pred_fallthru
          _
        // Predicated region
        $region17: #{decoder_layer_forward.1} parent=11 // pred_check
          %p512 = pneg %p214
        $region18: #{decoder_layer_forward.1} parent=11 // pred_check_branch
          %514 = sbr.rel (%p512) target = $region20
        $region19: #{decoder_layer_forward.1} parent=11 // pred_region
          _
        $region20: #{decoder_layer_forward.1} parent=11 // pred_fallthru
          _
        // Predicated region
        $region21: #{decoder_layer_forward.1} parent=11 // pred_check
          %p515 = pneg %p235
        $region22: #{decoder_layer_forward.1} parent=11 // pred_check_branch
          %517 = sbr.rel (%p515) target = $region24
        $region23: #{decoder_layer_forward.1} parent=11 // pred_region
          _
        $region24: #{decoder_layer_forward.1} parent=11 // pred_fallthru
          _
        // Predicated region
        $region25: #{decoder_layer_forward.1} parent=11 // pred_check
          %p518 = pneg %p256
        $region26: #{decoder_layer_forward.1} parent=11 // pred_check_branch
          %520 = sbr.rel (%p518) target = $region28
        $region27: #{decoder_layer_forward.1} parent=11 // pred_region
          _
        $region28: #{decoder_layer_forward.1} parent=11 // pred_fallthru
          _
        // Predicated region
        $region29: #{decoder_layer_forward.1} parent=11 // pred_check
          %p521 = pneg %p277
        $region30: #{decoder_layer_forward.1} parent=11 // pred_check_branch
          %523 = sbr.rel (%p521) target = $region32
        $region31: #{decoder_layer_forward.1} parent=11 // pred_region
          _
        $region32: #{decoder_layer_forward.1} parent=11 // pred_fallthru
          _
        // Predicated region
        $region33: #{decoder_layer_forward.1} parent=11 // pred_check
          %p524 = pneg %p298
        $region34: #{decoder_layer_forward.1} parent=11 // pred_check_branch
          %526 = sbr.rel (%p524) target = $region36
        $region35: #{decoder_layer_forward.1} parent=11 // pred_region
          _
        $region36: #{decoder_layer_forward.1} parent=11 // pred_fallthru
          _
        // Predicated region
        $region37: #{decoder_layer_forward.1} parent=11 // pred_check
          %p527 = pneg %p319
        $region38: #{decoder_layer_forward.1} parent=11 // pred_check_branch
          %529 = sbr.rel (%p527) target = $region40
        $region39: #{decoder_layer_forward.1} parent=11 // pred_region
          _
        $region40: #{decoder_layer_forward.1} parent=11 // pred_fallthru
          _
        // Predicated region
        $region41: #{decoder_layer_forward.1} parent=11 // pred_check
          %p530 = pneg %p340
        $region42: #{decoder_layer_forward.1} parent=11 // pred_check_branch
          %532 = sbr.rel (%p530) target = $region44
        $region43: #{decoder_layer_forward.1} parent=11 // pred_region
          _
        $region44: #{decoder_layer_forward.1} parent=11 // pred_fallthru
          _
        // Predicated region
        $region45: #{decoder_layer_forward.1} parent=11 // pred_check
          %p533 = pneg %p361
        $region46: #{decoder_layer_forward.1} parent=11 // pred_check_branch
          %535 = sbr.rel (%p533) target = $region48
        $region47: #{decoder_layer_forward.1} parent=11 // pred_region
          _
        $region48: #{decoder_layer_forward.1} parent=11 // pred_fallthru
          _
        // Predicated region
        $region49: #{decoder_layer_forward.1} parent=11 // pred_check
          %p536 = pneg %p382
        $region50: #{decoder_layer_forward.1} parent=11 // pred_check_branch
          %538 = sbr.rel (%p536) target = $region52
        $region51: #{decoder_layer_forward.1} parent=11 // pred_region
          _
        $region52: #{decoder_layer_forward.1} parent=11 // pred_fallthru
          _
        // Predicated region
        $region53: #{decoder_layer_forward.1} parent=11 // pred_check
          %p539 = pneg %p403
        $region54: #{decoder_layer_forward.1} parent=11 // pred_check_branch
          %541 = sbr.rel (%p539) target = $region56
        $region55: #{decoder_layer_forward.1} parent=11 // pred_region
          _
        $region56: #{decoder_layer_forward.1} parent=11 // pred_fallthru
          _
        // Predicated region
        $region57: #{decoder_layer_forward.1} parent=11 // pred_check
          %p542 = pneg %p424
        $region58: #{decoder_layer_forward.1} parent=11 // pred_check_branch
          %544 = sbr.rel (%p542) target = $region60
        $region59: #{decoder_layer_forward.1} parent=11 // pred_region
          _
        $region60: #{decoder_layer_forward.1} parent=11 // pred_fallthru
          _
        // Predicated region
        $region61: #{decoder_layer_forward.1} parent=11 // pred_check
          %p545 = pneg %p445
        $region62: #{decoder_layer_forward.1} parent=11 // pred_check_branch
          %547 = sbr.rel (%p545) target = $region64
        $region63: #{decoder_layer_forward.1} parent=11 // pred_region
          _
        $region64: #{decoder_layer_forward.1} parent=11 // pred_fallthru
          _
        // Predicated region
        $region65: #{decoder_layer_forward.1} parent=11 // pred_check
          %p548 = pneg %p466
        $region66: #{decoder_layer_forward.1} parent=11 // pred_check_branch
          %550 = sbr.rel (%p548) target = $region68
        $region67: #{decoder_layer_forward.1} parent=11 // pred_region
          _
        $region68: #{decoder_layer_forward.1} parent=11 // pred_fallthru
          _
      $region12: #{decoder_layer_forward.1} parent=5 // pred_fallthru
        _
      %p551 = scmp.lt.s32.totalorder %s28, 2
      // Predicated region
      $region69: #{decoder_layer_forward.1} parent=5 // pred_check
        %p552 = pneg %p551
      $region70: #{decoder_layer_forward.1} parent=5 // pred_check_branch
        %554 = sbr.rel (%p552) target = $region72
      $region71: #{decoder_layer_forward.1} parent=5 // pred_region
        // Predicated region
        $region73: #{decoder_layer_forward.1} parent=71 // pred_check
          %p555 = pneg %p62
        $region74: #{decoder_layer_forward.1} parent=71 // pred_check_branch
          %557 = sbr.rel (%p555) target = $region76
        $region75: #{decoder_layer_forward.1} parent=71 // pred_region
          %p558 = scmp.lt.s32.totalorder %s35, 1
          %s559 = scalar_select %p558, %s35, 1
          %p560 = scmp.lt.s32.totalorder %s36, 0
          %s561 = scalar_select %p560, %s36, 0
          %s562 = sadd.s32 %s561, %s559
          %s563 = smul.addr %s562, 4
          %s564 = scalar_lea.vmem %s0, %s563
        $region76: #{decoder_layer_forward.1} parent=71 // pred_fallthru
          _
        // Predicated region
        $region77: #{decoder_layer_forward.1} parent=71 // pred_check
          %p565 = pneg %p88
        $region78: #{decoder_layer_forward.1} parent=71 // pred_check_branch
          %567 = sbr.rel (%p565) target = $region80
        $region79: #{decoder_layer_forward.1} parent=71 // pred_region
          %p568 = scmp.lt.s32.totalorder %s35, 1
          %s569 = scalar_select %p568, %s35, 1
          %s570 = smul.addr %s569, 4
          %s571 = scalar_lea.vmem %s1, %s570
        $region80: #{decoder_layer_forward.1} parent=71 // pred_fallthru
          _
        // Predicated region
        $region81: #{decoder_layer_forward.1} parent=71 // pred_check
          %p572 = pneg %p114
        $region82: #{decoder_layer_forward.1} parent=71 // pred_check_branch
          %574 = sbr.rel (%p572) target = $region84
        $region83: #{decoder_layer_forward.1} parent=71 // pred_region
          %p575 = scmp.lt.s32.totalorder %s35, 1
          %s576 = scalar_select %p575, %s35, 1
          %s577 = smul.addr %s576, 4
          %s578 = scalar_lea.vmem %s2, %s577
        $region84: #{decoder_layer_forward.1} parent=71 // pred_fallthru
          _
        // Predicated region
        $region85: #{decoder_layer_forward.1} parent=71 // pred_check
          %p579 = pneg %p140
        $region86: #{decoder_layer_forward.1} parent=71 // pred_check_branch
          %581 = sbr.rel (%p579) target = $region88
        $region87: #{decoder_layer_forward.1} parent=71 // pred_region
          %p582 = scmp.lt.s32.totalorder %s35, 1
          %s583 = scalar_select %p582, %s35, 1
          %s584 = scalar_lea.vmem %s3, %s583
        $region88: #{decoder_layer_forward.1} parent=71 // pred_fallthru
          _
        // Predicated region
        $region89: #{decoder_layer_forward.1} parent=71 // pred_check
          %p585 = pneg %p166
        $region90: #{decoder_layer_forward.1} parent=71 // pred_check_branch
          %587 = sbr.rel (%p585) target = $region92
        $region91: #{decoder_layer_forward.1} parent=71 // pred_region
          %p588 = scmp.lt.s32.totalorder %s35, 1
          %s589 = scalar_select %p588, %s35, 1
          %s590 = scalar_lea.vmem %s4, %s589
        $region92: #{decoder_layer_forward.1} parent=71 // pred_fallthru
          _
      $region72: #{decoder_layer_forward.1} parent=5 // pred_fallthru
        _
      %p591 = scmp.le.s32.totalorder 1, %s28
      %p592 = scmp.lt.s32.totalorder %s28, 3
      %p593 = pnand %p591, %p592
      %p594 = pneg %p593
      // Predicated region
      $region93: #{decoder_layer_forward.1} parent=5 // pred_check
        _
      $region94: #{decoder_layer_forward.1} parent=5 // pred_check_branch
        %596 = sbr.rel (%p593) target = $region96
      $region95: #{decoder_layer_forward.1} parent=5 // pred_region
        %s597 = ssub.s32 %s28, 1
        %p598 = scmp.lt.s32.totalorder %s37, 1
        %s599 = scalar_select %p598, %s37, 1
        %p600 = scmp.lt.s32.totalorder %s38, 0
        %s601 = scalar_select %p600, %s38, 0
        %s602 = sadd.s32 %s601, %s599
        %s603 = smul.addr %s602, 4
        %s604 = scalar_lea.vmem %s0, %s603
        %p605 = pneg %p68
        %p606 = pneg %p65
        %p607 = scmp.lt.s32.totalorder %s37, 1
        %s608 = scalar_select %p607, %s37, 1
        %s609 = smul.addr %s608, 4
        %s610 = scalar_lea.vmem %s1, %s609
        %p611 = pneg %p94
        %p612 = pneg %p91
        %p613 = scmp.lt.s32.totalorder %s37, 1
        %s614 = scalar_select %p613, %s37, 1
        %s615 = smul.addr %s614, 4
        %s616 = scalar_lea.vmem %s2, %s615
        %p617 = pneg %p120
        %p618 = pneg %p117
        %p619 = scmp.lt.s32.totalorder %s37, 1
        %s620 = scalar_select %p619, %s37, 1
        %s621 = scalar_lea.vmem %s3, %s620
        %p622 = pneg %p146
        %p623 = pneg %p143
        %p624 = scmp.lt.s32.totalorder %s37, 1
        %s625 = scalar_select %p624, %s37, 1
        %s626 = scalar_lea.vmem %s4, %s625
        %p627 = pneg %p172
        %p628 = pneg %p169
        %p629 = pneg %p193
        %p630 = pneg %p190
        %p631 = pneg %p214
        %p632 = pneg %p211
        %p633 = pneg %p235
        %p634 = pneg %p232
        %p635 = pneg %p256
        %p636 = pneg %p253
        %p637 = pneg %p277
        %p638 = pneg %p274
        %p639 = pneg %p298
        %p640 = pneg %p295
        %p641 = pneg %p319
        %p642 = pneg %p316
        %p643 = pneg %p340
        %p644 = pneg %p337
        %p645 = pneg %p361
        %p646 = pneg %p358
        %p647 = pneg %p382
        %p648 = pneg %p379
        %p649 = pneg %p403
        %p650 = pneg %p400
        %p651 = pneg %p424
        %p652 = pneg %p421
        %p653 = pneg %p445
        %p654 = pneg %p442
        %p655 = pneg %p466
        %p656 = pneg %p463
        %p657 = pneg %p494
        %p658 = pneg %p491
        %s659 = sand.u32 %s481, 1
        %s660 = scalar_lea.sflag [#allocation3], %s659
        %s661 = sand.u32 %s481, 1
        %s662 = smul.addr %s661, 8
        %s663 = scalar_lea.vmem [#allocation2], %s662
        %p664 = scmp.lt.s32.totalorder %s37, 1
        %s665 = scalar_select %p664, %s37, 1
        %p666 = scmp.lt.s32.totalorder %s38, 0
        %s667 = scalar_select %p666, %s38, 0
        %s668 = sadd.s32 %s667, %s665
        %s669 = smul.addr %s668, 4
        %s670 = scalar_lea.vmem %s0, %s669
        %p671 = scmp.lt.s32.totalorder %s37, 1
        %s672 = scalar_select %p671, %s37, 1
        %s673 = smul.addr %s672, 4
        %s674 = scalar_lea.vmem %s1, %s673
        %p675 = scmp.lt.s32.totalorder %s37, 1
        %s676 = scalar_select %p675, %s37, 1
        %s677 = smul.addr %s676, 4
        %s678 = scalar_lea.vmem %s2, %s677
        %p679 = scmp.lt.s32.totalorder %s37, 1
        %s680 = scalar_select %p679, %s37, 1
        %s681 = scalar_lea.vmem %s3, %s680
        %p682 = scmp.lt.s32.totalorder %s37, 1
        %s683 = scalar_select %p682, %s37, 1
        %s684 = scalar_lea.vmem %s4, %s683
        %s686 = smul.u32 %s38, 8
        %v687 = vld [vmem:[%s670] sm:$0xf]
        %v688 = vld [vmem:[%s674] sm:$0xf]
        %v689 = vld [vmem:[%s678] sm:$0xf]
        %v690 = vld [vmem:[%s681] sm:$0x1]
        %vm691 = vcmp.gt.s32.totalorder %v690, 0
        %v692 = vlaneseq
        %v693 = vshrl.u32 %v692, 7
        %v694 = vstv %s686
        %v695 = vadd.s32 %v693, %v694
        %v696 = vlaneseq
        %v697 = vand.u32 %v696, 127
        %vm698 = vcmp.le.s32.totalorder %v697, %v695
        %v699 = vsel %vm691, 1, 0
        %v700 = vlaneseq
        %v701 = vshrl.u32 %v700, 7
        %v702 = vsub.s32 0, %v701
        %v703 = vrot.slane %v699, %v702
        %vm704 = vcmp.eq.s32.totalorder %v703, 1
        %vm705 = vmand %vm698, %vm704
        %v706 = vld [vmem:[%s684] sm:$0x1]
        %vm707 = vcmp.gt.s32.totalorder %v706, 0
        %v708 = vsel %vm707, 1, 0
        %v709 = vlaneseq
        %v710 = vshrl.u32 %v709, 7
        %v711 = vsub.s32 0, %v710
        %v712 = vrot.slane %v708, %v711
        %vm713 = vcmp.eq.s32.totalorder %v712, 1
        %v714 = vunpack.c.l.bf16 %v687
        %v715 = vld [vmem:[%s5] sm:$0xf]
        %v716 = vld [vmem:[%s6] sm:$0x1]
        %v718 = vlaneseq
        %v719 = vshrl.u32 %v718, 7
        %v720 = vsub.s32 0, %v719
        %v721 = vrot.slane %v716, %v720
        %vm723 = vcmask 261120
        %v725 = vsel %vm723, %v687, 0
        %v728 = vsel %vm723, %v715, 0
        %730 = vmatprep.subr.bf16.mxu0 0
        %731 = vmatpush1.bf16.xpose.msra.mxu0 0
        %732 = vmatprep.subr.bf16.mxu0 0
        %733 = vmatpush1.bf16.xpose.msra.mxu0 0
        %734 = vmatprep.subr.bf16.mxu0 0
        %735 = vmatpush1.bf16.xpose.msra.mxu0 0
        %736 = vmatprep.subr.bf16.mxu0 0
        %737 = vmatpush1.bf16.xpose.msra.mxu0 0
        %738 = vmatprep.subr.bf16.mxu0 0
        %739 = vmatpush1.bf16.xpose.msra.mxu0 0
        %740 = vmatprep.subr.bf16.mxu0 0
        %741 = vmatpush1.bf16.xpose.msra.mxu0 0
        %742 = vmatprep.subr.bf16.mxu0 0
        %743 = vmatpush1.bf16.xpose.msra.mxu0 0
        %744 = vmatprep.subr.bf16.mxu0 0
        %745 = vmatpush1.bf16.xpose.msra.mxu0 %v728
        %746 = vmatprep.subr.bf16.mxu0 0
        %747 = vmatpush2.bf16.xpose.msra.mxu0 0
        %748 = vmatprep.subr.bf16.mxu0 0
        %749 = vmatpush2.bf16.xpose.msra.mxu0 0
        %750 = vmatprep.subr.bf16.mxu0 0
        %751 = vmatpush2.bf16.xpose.msra.mxu0 0
        %752 = vmatprep.subr.bf16.mxu0 0
        %753 = vmatpush2.bf16.xpose.msra.mxu0 0
        %754 = vmatprep.subr.bf16.mxu0 0
        %755 = vmatpush2.bf16.xpose.msra.mxu0 0
        %756 = vmatprep.subr.bf16.mxu0 0
        %757 = vmatpush2.bf16.xpose.msra.mxu0 0
        %758 = vmatprep.subr.bf16.mxu0 0
        %759 = vmatpush2.bf16.xpose.msra.mxu0 0
        %760 = vmatprep.subr.bf16.mxu0 0
        %761 = vmatpush2.bf16.xpose.msra.mxu0 0
        %762 = vmatprep.mubr.bf16.mxu0 0
        %763 = vmatmul.mubr.bf16.gmra.mxu0 %v725
        %v764 = vpop.f32.mrf.mxu0
        %v765 = vadd.f32 %v721, %v764
        %v766 = vpop.f32.mrf.mxu0
        %v767 = vpop.f32.mrf.mxu0
        %v768 = vpop.f32.mrf.mxu0
        %769 = vdwg.mxu0
        %s770 = scalar_lea.vmem %s5, 16
        %v771 = vld [vmem:[%s770] sm:$0xf]
        %s772 = scalar_lea.vmem %s6, 4
        %v773 = vld [vmem:[%s772] sm:$0x1]
        %v775 = vlaneseq
        %v776 = vshrl.u32 %v775, 7
        %v777 = vsub.s32 0, %v776
        %v778 = vrot.slane %v773, %v777
        %v781 = vsel %vm723, %v688, 0
        %v784 = vsel %vm723, %v771, 0
        %786 = vmatprep.subr.bf16.mxu0 0
        %787 = vmatpush1.bf16.xpose.msra.mxu0 0
        %788 = vmatprep.subr.bf16.mxu0 0
        %789 = vmatpush1.bf16.xpose.msra.mxu0 0
        %790 = vmatprep.subr.bf16.mxu0 0
        %791 = vmatpush1.bf16.xpose.msra.mxu0 0
        %792 = vmatprep.subr.bf16.mxu0 0
        %793 = vmatpush1.bf16.xpose.msra.mxu0 0
        %794 = vmatprep.subr.bf16.mxu0 0
        %795 = vmatpush1.bf16.xpose.msra.mxu0 0
        %796 = vmatprep.subr.bf16.mxu0 0
        %797 = vmatpush1.bf16.xpose.msra.mxu0 0
        %798 = vmatprep.subr.bf16.mxu0 0
        %799 = vmatpush1.bf16.xpose.msra.mxu0 0
        %800 = vmatprep.subr.bf16.mxu0 0
        %801 = vmatpush1.bf16.xpose.msra.mxu0 %v784
        %802 = vmatprep.subr.bf16.mxu0 0
        %803 = vmatpush2.bf16.xpose.msra.mxu0 0
        %804 = vmatprep.subr.bf16.mxu0 0
        %805 = vmatpush2.bf16.xpose.msra.mxu0 0
        %806 = vmatprep.subr.bf16.mxu0 0
        %807 = vmatpush2.bf16.xpose.msra.mxu0 0
        %808 = vmatprep.subr.bf16.mxu0 0
        %809 = vmatpush2.bf16.xpose.msra.mxu0 0
        %810 = vmatprep.subr.bf16.mxu0 0
        %811 = vmatpush2.bf16.xpose.msra.mxu0 0
        %812 = vmatprep.subr.bf16.mxu0 0
        %813 = vmatpush2.bf16.xpose.msra.mxu0 0
        %814 = vmatprep.subr.bf16.mxu0 0
        %815 = vmatpush2.bf16.xpose.msra.mxu0 0
        %816 = vmatprep.subr.bf16.mxu0 0
        %817 = vmatpush2.bf16.xpose.msra.mxu0 0
        %818 = vmatprep.mubr.bf16.mxu0 0
        %819 = vmatmul.mubr.bf16.gmra.mxu0 %v781
        %v820 = vpop.f32.mrf.mxu0
        %v821 = vadd.f32 %v778, %v820
        %v822 = vpop.f32.mrf.mxu0
        %v823 = vpop.f32.mrf.mxu0
        %v824 = vpop.f32.mrf.mxu0
        %825 = vdwg.mxu0
        %s826 = scalar_lea.vmem %s5, 32
        %v827 = vld [vmem:[%s826] sm:$0xf]
        %s828 = scalar_lea.vmem %s6, 8
        %v829 = vld [vmem:[%s828] sm:$0x1]
        %v831 = vlaneseq
        %v832 = vshrl.u32 %v831, 7
        %v833 = vsub.s32 0, %v832
        %v834 = vrot.slane %v829, %v833
        %v837 = vsel %vm723, %v827, 0
        %839 = vmatprep.subr.bf16.mxu0 0
        %840 = vmatpush1.bf16.xpose.msra.mxu0 0
        %841 = vmatprep.subr.bf16.mxu0 0
        %842 = vmatpush1.bf16.xpose.msra.mxu0 0
        %843 = vmatprep.subr.bf16.mxu0 0
        %844 = vmatpush1.bf16.xpose.msra.mxu0 0
        %845 = vmatprep.subr.bf16.mxu0 0
        %846 = vmatpush1.bf16.xpose.msra.mxu0 0
        %847 = vmatprep.subr.bf16.mxu0 0
        %848 = vmatpush1.bf16.xpose.msra.mxu0 0
        %849 = vmatprep.subr.bf16.mxu0 0
        %850 = vmatpush1.bf16.xpose.msra.mxu0 0
        %851 = vmatprep.subr.bf16.mxu0 0
        %852 = vmatpush1.bf16.xpose.msra.mxu0 0
        %853 = vmatprep.subr.bf16.mxu0 0
        %854 = vmatpush1.bf16.xpose.msra.mxu0 %v837
        %855 = vmatprep.subr.bf16.mxu0 0
        %856 = vmatpush2.bf16.xpose.msra.mxu0 0
        %857 = vmatprep.subr.bf16.mxu0 0
        %858 = vmatpush2.bf16.xpose.msra.mxu0 0
        %859 = vmatprep.subr.bf16.mxu0 0
        %860 = vmatpush2.bf16.xpose.msra.mxu0 0
        %861 = vmatprep.subr.bf16.mxu0 0
        %862 = vmatpush2.bf16.xpose.msra.mxu0 0
        %863 = vmatprep.subr.bf16.mxu0 0
        %864 = vmatpush2.bf16.xpose.msra.mxu0 0
        %865 = vmatprep.subr.bf16.mxu0 0
        %866 = vmatpush2.bf16.xpose.msra.mxu0 0
        %867 = vmatprep.subr.bf16.mxu0 0
        %868 = vmatpush2.bf16.xpose.msra.mxu0 0
        %869 = vmatprep.subr.bf16.mxu0 0
        %870 = vmatpush2.bf16.xpose.msra.mxu0 0
        %871 = vmatprep.mubr.bf16.mxu0 0
        %872 = vmatmul.mubr.bf16.gmra.mxu0 %v781
        %v873 = vpop.f32.mrf.mxu0
        %v874 = vadd.f32 %v834, %v873
        %v875 = vpop.f32.mrf.mxu0
        %v876 = vpop.f32.mrf.mxu0
        %v877 = vpop.f32.mrf.mxu0
        %878 = vdwg.mxu0
        %v879 = vpack.c.bf16 %v765, %v765
        %v880 = vpack.c.bf16 %v821, %v821
        %vm881 = vcmask 64512
        %v883 = vsel %vm881, %v879, 0
        %v886 = vsel %vm881, %v880, 0
        %888 = vmatprep.subr.bf16.mxu0 0
        %889 = vmatpush1.bf16.xpose.msra.mxu0 0
        %890 = vmatprep.subr.bf16.mxu0 0
        %891 = vmatpush1.bf16.xpose.msra.mxu0 0
        %892 = vmatprep.subr.bf16.mxu0 0
        %893 = vmatpush1.bf16.xpose.msra.mxu0 0
        %894 = vmatprep.subr.bf16.mxu0 0
        %895 = vmatpush1.bf16.xpose.msra.mxu0 0
        %896 = vmatprep.subr.bf16.mxu0 0
        %897 = vmatpush1.bf16.xpose.msra.mxu0 0
        %898 = vmatprep.subr.bf16.mxu0 0
        %899 = vmatpush1.bf16.xpose.msra.mxu0 0
        %900 = vmatprep.subr.bf16.mxu0 0
        %901 = vmatpush1.bf16.xpose.msra.mxu0 0
        %902 = vmatprep.subr.bf16.mxu0 0
        %903 = vmatpush1.bf16.xpose.msra.mxu0 %v886
        %904 = vmatprep.subr.bf16.mxu0 0
        %905 = vmatpush2.bf16.xpose.msra.mxu0 0
        %906 = vmatprep.subr.bf16.mxu0 0
        %907 = vmatpush2.bf16.xpose.msra.mxu0 0
        %908 = vmatprep.subr.bf16.mxu0 0
        %909 = vmatpush2.bf16.xpose.msra.mxu0 0
        %910 = vmatprep.subr.bf16.mxu0 0
        %911 = vmatpush2.bf16.xpose.msra.mxu0 0
        %912 = vmatprep.subr.bf16.mxu0 0
        %913 = vmatpush2.bf16.xpose.msra.mxu0 0
        %914 = vmatprep.subr.bf16.mxu0 0
        %915 = vmatpush2.bf16.xpose.msra.mxu0 0
        %916 = vmatprep.subr.bf16.mxu0 0
        %917 = vmatpush2.bf16.xpose.msra.mxu0 0
        %918 = vmatprep.subr.bf16.mxu0 0
        %919 = vmatpush2.bf16.xpose.msra.mxu0 0
        %920 = vmatprep.mubr.bf16.mxu0 0
        %921 = vmatmul.mubr.bf16.gmra.mxu0 %v883
        %v922 = vpop.f32.mrf.mxu0
        %v923 = vadd.f32 0.0, %v922
        %v924 = vpop.f32.mrf.mxu0
        %v925 = vpop.f32.mrf.mxu0
        %v926 = vpop.f32.mrf.mxu0
        %927 = vdwg.mxu0
        %v928 = vmul.f32 %v923, 0.35355338
        %v929 = vsel %vm705, %v928, -1e+09
        %v930 = vsel %vm881, %v929, -inf
        %931 = vmax.xlane.f32.xlu0 %v930
        %v932 = vpop.xlane.xlu0 %931
        %v933 = vsub.f32 %v929, %v932
        %v934 = vmul.f32 %v933, 1.442695
        %v935 = vpow.pop %v934
        %v936 = vsel %vm881, %v935, 0.0
        %937 = vadd.xlane.f32.xlu0 %v936
        %v938 = vpop.xlane.xlu0 %937
        %v939 = vrcp.pop %v938
        %v940 = vmul.f32 %v935, %v939
        %v941 = vpack.c.bf16 %v940, %v940
        %v942 = vpack.c.bf16 %v874, %v874
        %v944 = vsel %vm881, %v941, 0
        %vm946 = vcmask 1043456
        %v948 = vsel %vm946, %v942, 0
        %950 = vmatprep.subr.bf16.mxu0 0
        %951 = vmatpush1.bf16.msra.mxu0 0
        %952 = vmatprep.subr.bf16.mxu0 0
        %953 = vmatpush1.bf16.msra.mxu0 0
        %954 = vmatprep.subr.bf16.mxu0 0
        %955 = vmatpush1.bf16.msra.mxu0 0
        %956 = vmatprep.subr.bf16.mxu0 0
        %957 = vmatpush1.bf16.msra.mxu0 0
        %958 = vmatprep.subr.bf16.mxu0 0
        %959 = vmatpush1.bf16.msra.mxu0 0
        %960 = vmatprep.subr.bf16.mxu0 0
        %961 = vmatpush1.bf16.msra.mxu0 0
        %962 = vmatprep.subr.bf16.mxu0 0
        %963 = vmatpush1.bf16.msra.mxu0 0
        %964 = vmatprep.subr.bf16.mxu0 0
        %965 = vmatpush1.bf16.msra.mxu0 %v948
        %966 = vmatprep.subr.bf16.mxu0 0
        %967 = vmatpush2.bf16.msra.mxu0 0
        %968 = vmatprep.subr.bf16.mxu0 0
        %969 = vmatpush2.bf16.msra.mxu0 0
        %970 = vmatprep.subr.bf16.mxu0 0
        %971 = vmatpush2.bf16.msra.mxu0 0
        %972 = vmatprep.subr.bf16.mxu0 0
        %973 = vmatpush2.bf16.msra.mxu0 0
        %974 = vmatprep.subr.bf16.mxu0 0
        %975 = vmatpush2.bf16.msra.mxu0 0
        %976 = vmatprep.subr.bf16.mxu0 0
        %977 = vmatpush2.bf16.msra.mxu0 0
        %978 = vmatprep.subr.bf16.mxu0 0
        %979 = vmatpush2.bf16.msra.mxu0 0
        %980 = vmatprep.subr.bf16.mxu0 0
        %981 = vmatpush2.bf16.msra.mxu0 0
        %982 = vmatprep.mubr.bf16.mxu0 0
        %983 = vmatmul.mubr.bf16.gmra.mxu0 %v944
        %v984 = vpop.f32.mrf.mxu0
        %v985 = vadd.f32 0.0, %v984
        %v986 = vpop.f32.mrf.mxu0
        %v987 = vpop.f32.mrf.mxu0
        %v988 = vpop.f32.mrf.mxu0
        %989 = vdwg.mxu0
        %v990 = vpack.c.bf16 %v985, %v985
        %v991 = vld [vmem:[%s7] sm:$0xf]
        %v992 = vld [vmem:[%s7 + $0x4] sm:$0xf]
        %v993 = vld [vmem:[%s7 + $0x8] sm:$0xf]
        %v994 = vld [vmem:[%s7 + $0xc] sm:$0xf]
        %s995 = scalar_lea.vmem %s5, 4
        %v996 = vld [vmem:[%s995] sm:$0xf]
        %s997 = scalar_lea.vmem %s6, 1
        %v998 = vld [vmem:[%s997] sm:$0x1]
        %v1000 = vlaneseq
        %v1001 = vshrl.u32 %v1000, 7
        %v1002 = vsub.s32 0, %v1001
        %v1003 = vrot.slane %v998, %v1002
        %v1006 = vsel %vm723, %v996, 0
        %1008 = vmatprep.subr.bf16.mxu0 0
        %1009 = vmatpush1.bf16.xpose.msra.mxu0 0
        %1010 = vmatprep.subr.bf16.mxu0 0
        %1011 = vmatpush1.bf16.xpose.msra.mxu0 0
        %1012 = vmatprep.subr.bf16.mxu0 0
        %1013 = vmatpush1.bf16.xpose.msra.mxu0 0
        %1014 = vmatprep.subr.bf16.mxu0 0
        %1015 = vmatpush1.bf16.xpose.msra.mxu0 0
        %1016 = vmatprep.subr.bf16.mxu0 0
        %1017 = vmatpush1.bf16.xpose.msra.mxu0 0
        %1018 = vmatprep.subr.bf16.mxu0 0
        %1019 = vmatpush1.bf16.xpose.msra.mxu0 0
        %1020 = vmatprep.subr.bf16.mxu0 0
        %1021 = vmatpush1.bf16.xpose.msra.mxu0 0
        %1022 = vmatprep.subr.bf16.mxu0 0
        %1023 = vmatpush1.bf16.xpose.msra.mxu0 %v1006
        %1024 = vmatprep.subr.bf16.mxu0 0
        %1025 = vmatpush2.bf16.xpose.msra.mxu0 0
        %1026 = vmatprep.subr.bf16.mxu0 0
        %1027 = vmatpush2.bf16.xpose.msra.mxu0 0
        %1028 = vmatprep.subr.bf16.mxu0 0
        %1029 = vmatpush2.bf16.xpose.msra.mxu0 0
        %1030 = vmatprep.subr.bf16.mxu0 0
        %1031 = vmatpush2.bf16.xpose.msra.mxu0 0
        %1032 = vmatprep.subr.bf16.mxu0 0
        %1033 = vmatpush2.bf16.xpose.msra.mxu0 0
        %1034 = vmatprep.subr.bf16.mxu0 0
        %1035 = vmatpush2.bf16.xpose.msra.mxu0 0
        %1036 = vmatprep.subr.bf16.mxu0 0
        %1037 = vmatpush2.bf16.xpose.msra.mxu0 0
        %1038 = vmatprep.subr.bf16.mxu0 0
        %1039 = vmatpush2.bf16.xpose.msra.mxu0 0
        %1040 = vmatprep.mubr.bf16.mxu0 0
        %1041 = vmatmul.mubr.bf16.gmra.mxu0 %v725
        %v1042 = vpop.f32.mrf.mxu0
        %v1043 = vadd.f32 %v1003, %v1042
        %v1044 = vpop.f32.mrf.mxu0
        %v1045 = vpop.f32.mrf.mxu0
        %v1046 = vpop.f32.mrf.mxu0
        %1047 = vdwg.mxu0
        %s1048 = scalar_lea.vmem %s5, 20
        %v1049 = vld [vmem:[%s1048] sm:$0xf]
        %s1050 = scalar_lea.vmem %s6, 5
        %v1051 = vld [vmem:[%s1050] sm:$0x1]
        %v1053 = vlaneseq
        %v1054 = vshrl.u32 %v1053, 7
        %v1055 = vsub.s32 0, %v1054
        %v1056 = vrot.slane %v1051, %v1055
        %v1059 = vsel %vm723, %v1049, 0
        %1061 = vmatprep.subr.bf16.mxu0 0
        %1062 = vmatpush1.bf16.xpose.msra.mxu0 0
        %1063 = vmatprep.subr.bf16.mxu0 0
        %1064 = vmatpush1.bf16.xpose.msra.mxu0 0
        %1065 = vmatprep.subr.bf16.mxu0 0
        %1066 = vmatpush1.bf16.xpose.msra.mxu0 0
        %1067 = vmatprep.subr.bf16.mxu0 0
        %1068 = vmatpush1.bf16.xpose.msra.mxu0 0
        %1069 = vmatprep.subr.bf16.mxu0 0
        %1070 = vmatpush1.bf16.xpose.msra.mxu0 0
        %1071 = vmatprep.subr.bf16.mxu0 0
        %1072 = vmatpush1.bf16.xpose.msra.mxu0 0
        %1073 = vmatprep.subr.bf16.mxu0 0
        %1074 = vmatpush1.bf16.xpose.msra.mxu0 0
        %1075 = vmatprep.subr.bf16.mxu0 0
        %1076 = vmatpush1.bf16.xpose.msra.mxu0 %v1059
        %1077 = vmatprep.subr.bf16.mxu0 0
        %1078 = vmatpush2.bf16.xpose.msra.mxu0 0
        %1079 = vmatprep.subr.bf16.mxu0 0
        %1080 = vmatpush2.bf16.xpose.msra.mxu0 0
        %1081 = vmatprep.subr.bf16.mxu0 0
        %1082 = vmatpush2.bf16.xpose.msra.mxu0 0
        %1083 = vmatprep.subr.bf16.mxu0 0
        %1084 = vmatpush2.bf16.xpose.msra.mxu0 0
        %1085 = vmatprep.subr.bf16.mxu0 0
        %1086 = vmatpush2.bf16.xpose.msra.mxu0 0
        %1087 = vmatprep.subr.bf16.mxu0 0
        %1088 = vmatpush2.bf16.xpose.msra.mxu0 0
        %1089 = vmatprep.subr.bf16.mxu0 0
        %1090 = vmatpush2.bf16.xpose.msra.mxu0 0
        %1091 = vmatprep.subr.bf16.mxu0 0
        %1092 = vmatpush2.bf16.xpose.msra.mxu0 0
        %1093 = vmatprep.mubr.bf16.mxu0 0
        %1094 = vmatmul.mubr.bf16.gmra.mxu0 %v781
        %v1095 = vpop.f32.mrf.mxu0
        %v1096 = vadd.f32 %v1056, %v1095
        %v1097 = vpop.f32.mrf.mxu0
        %v1098 = vpop.f32.mrf.mxu0
        %v1099 = vpop.f32.mrf.mxu0
        %1100 = vdwg.mxu0
        %s1101 = scalar_lea.vmem %s5, 36
        %v1102 = vld [vmem:[%s1101] sm:$0xf]
        %s1103 = scalar_lea.vmem %s6, 9
        %v1104 = vld [vmem:[%s1103] sm:$0x1]
        %v1106 = vlaneseq
        %v1107 = vshrl.u32 %v1106, 7
        %v1108 = vsub.s32 0, %v1107
        %v1109 = vrot.slane %v1104, %v1108
        %v1112 = vsel %vm723, %v1102, 0
        %1114 = vmatprep.subr.bf16.mxu0 0
        %1115 = vmatpush1.bf16.xpose.msra.mxu0 0
        %1116 = vmatprep.subr.bf16.mxu0 0
        %1117 = vmatpush1.bf16.xpose.msra.mxu0 0
        %1118 = vmatprep.subr.bf16.mxu0 0
        %1119 = vmatpush1.bf16.xpose.msra.mxu0 0
        %1120 = vmatprep.subr.bf16.mxu0 0
        %1121 = vmatpush1.bf16.xpose.msra.mxu0 0
        %1122 = vmatprep.subr.bf16.mxu0 0
        %1123 = vmatpush1.bf16.xpose.msra.mxu0 0
        %1124 = vmatprep.subr.bf16.mxu0 0
        %1125 = vmatpush1.bf16.xpose.msra.mxu0 0
        %1126 = vmatprep.subr.bf16.mxu0 0
        %1127 = vmatpush1.bf16.xpose.msra.mxu0 0
        %1128 = vmatprep.subr.bf16.mxu0 0
        %1129 = vmatpush1.bf16.xpose.msra.mxu0 %v1112
        %1130 = vmatprep.subr.bf16.mxu0 0
        %1131 = vmatpush2.bf16.xpose.msra.mxu0 0
        %1132 = vmatprep.subr.bf16.mxu0 0
        %1133 = vmatpush2.bf16.xpose.msra.mxu0 0
        %1134 = vmatprep.subr.bf16.mxu0 0
        %1135 = vmatpush2.bf16.xpose.msra.mxu0 0
        %1136 = vmatprep.subr.bf16.mxu0 0
        %1137 = vmatpush2.bf16.xpose.msra.mxu0 0
        %1138 = vmatprep.subr.bf16.mxu0 0
        %1139 = vmatpush2.bf16.xpose.msra.mxu0 0
        %1140 = vmatprep.subr.bf16.mxu0 0
        %1141 = vmatpush2.bf16.xpose.msra.mxu0 0
        %1142 = vmatprep.subr.bf16.mxu0 0
        %1143 = vmatpush2.bf16.xpose.msra.mxu0 0
        %1144 = vmatprep.subr.bf16.mxu0 0
        %1145 = vmatpush2.bf16.xpose.msra.mxu0 0
        %1146 = vmatprep.mubr.bf16.mxu0 0
        %1147 = vmatmul.mubr.bf16.gmra.mxu0 %v781
        %v1148 = vpop.f32.mrf.mxu0
        %v1149 = vadd.f32 %v1109, %v1148
        %v1150 = vpop.f32.mrf.mxu0
        %v1151 = vpop.f32.mrf.mxu0
        %v1152 = vpop.f32.mrf.mxu0
        %1153 = vdwg.mxu0
        %v1154 = vpack.c.bf16 %v1043, %v1043
        %v1155 = vpack.c.bf16 %v1096, %v1096
        %v1157 = vsel %vm881, %v1154, 0
        %v1160 = vsel %vm881, %v1155, 0
        %1162 = vmatprep.subr.bf16.mxu0 0
        %1163 = vmatpush1.bf16.xpose.msra.mxu0 0
        %1164 = vmatprep.subr.bf16.mxu0 0
        %1165 = vmatpush1.bf16.xpose.msra.mxu0 0
        %1166 = vmatprep.subr.bf16.mxu0 0
        %1167 = vmatpush1.bf16.xpose.msra.mxu0 0
        %1168 = vmatprep.subr.bf16.mxu0 0
        %1169 = vmatpush1.bf16.xpose.msra.mxu0 0
        %1170 = vmatprep.subr.bf16.mxu0 0
        %1171 = vmatpush1.bf16.xpose.msra.mxu0 0
        %1172 = vmatprep.subr.bf16.mxu0 0
        %1173 = vmatpush1.bf16.xpose.msra.mxu0 0
        %1174 = vmatprep.subr.bf16.mxu0 0
        %1175 = vmatpush1.bf16.xpose.msra.mxu0 0
        %1176 = vmatprep.subr.bf16.mxu0 0
        %1177 = vmatpush1.bf16.xpose.msra.mxu0 %v1160
        %1178 = vmatprep.subr.bf16.mxu0 0
        %1179 = vmatpush2.bf16.xpose.msra.mxu0 0
        %1180 = vmatprep.subr.bf16.mxu0 0
        %1181 = vmatpush2.bf16.xpose.msra.mxu0 0
        %1182 = vmatprep.subr.bf16.mxu0 0
        %1183 = vmatpush2.bf16.xpose.msra.mxu0 0
        %1184 = vmatprep.subr.bf16.mxu0 0
        %1185 = vmatpush2.bf16.xpose.msra.mxu0 0
        %1186 = vmatprep.subr.bf16.mxu0 0
        %1187 = vmatpush2.bf16.xpose.msra.mxu0 0
        %1188 = vmatprep.subr.bf16.mxu0 0
        %1189 = vmatpush2.bf16.xpose.msra.mxu0 0
        %1190 = vmatprep.subr.bf16.mxu0 0
        %1191 = vmatpush2.bf16.xpose.msra.mxu0 0
        %1192 = vmatprep.subr.bf16.mxu0 0
        %1193 = vmatpush2.bf16.xpose.msra.mxu0 0
        %1194 = vmatprep.mubr.bf16.mxu0 0
        %1195 = vmatmul.mubr.bf16.gmra.mxu0 %v1157
        %v1196 = vpop.f32.mrf.mxu0
        %v1197 = vadd.f32 0.0, %v1196
        %v1198 = vpop.f32.mrf.mxu0
        %v1199 = vpop.f32.mrf.mxu0
        %v1200 = vpop.f32.mrf.mxu0
        %1201 = vdwg.mxu0
        %v1202 = vmul.f32 %v1197, 0.35355338
        %v1203 = vsel %vm705, %v1202, -1e+09
        %v1204 = vsel %vm881, %v1203, -inf
        %1205 = vmax.xlane.f32.xlu0 %v1204
        %v1206 = vpop.xlane.xlu0 %1205
        %v1207 = vsub.f32 %v1203, %v1206
        %v1208 = vmul.f32 %v1207, 1.442695
        %v1209 = vpow.pop %v1208
        %v1210 = vsel %vm881, %v1209, 0.0
        %1211 = vadd.xlane.f32.xlu0 %v1210
        %v1212 = vpop.xlane.xlu0 %1211
        %v1213 = vrcp.pop %v1212
        %v1214 = vmul.f32 %v1209, %v1213
        %v1215 = vpack.c.bf16 %v1214, %v1214
        %v1216 = vpack.c.bf16 %v1149, %v1149
        %v1218 = vsel %vm881, %v1215, 0
        %v1221 = vsel %vm946, %v1216, 0
        %1223 = vmatprep.subr.bf16.mxu0 0
        %1224 = vmatpush1.bf16.msra.mxu0 0
        %1225 = vmatprep.subr.bf16.mxu0 0
        %1226 = vmatpush1.bf16.msra.mxu0 0
        %1227 = vmatprep.subr.bf16.mxu0 0
        %1228 = vmatpush1.bf16.msra.mxu0 0
        %1229 = vmatprep.subr.bf16.mxu0 0
        %1230 = vmatpush1.bf16.msra.mxu0 0
        %1231 = vmatprep.subr.bf16.mxu0 0
        %1232 = vmatpush1.bf16.msra.mxu0 0
        %1233 = vmatprep.subr.bf16.mxu0 0
        %1234 = vmatpush1.bf16.msra.mxu0 0
        %1235 = vmatprep.subr.bf16.mxu0 0
        %1236 = vmatpush1.bf16.msra.mxu0 0
        %1237 = vmatprep.subr.bf16.mxu0 0
        %1238 = vmatpush1.bf16.msra.mxu0 %v1221
        %1239 = vmatprep.subr.bf16.mxu0 0
        %1240 = vmatpush2.bf16.msra.mxu0 0
        %1241 = vmatprep.subr.bf16.mxu0 0
        %1242 = vmatpush2.bf16.msra.mxu0 0
        %1243 = vmatprep.subr.bf16.mxu0 0
        %1244 = vmatpush2.bf16.msra.mxu0 0
        %1245 = vmatprep.subr.bf16.mxu0 0
        %1246 = vmatpush2.bf16.msra.mxu0 0
        %1247 = vmatprep.subr.bf16.mxu0 0
        %1248 = vmatpush2.bf16.msra.mxu0 0
        %1249 = vmatprep.subr.bf16.mxu0 0
        %1250 = vmatpush2.bf16.msra.mxu0 0
        %1251 = vmatprep.subr.bf16.mxu0 0
        %1252 = vmatpush2.bf16.msra.mxu0 0
        %1253 = vmatprep.subr.bf16.mxu0 0
        %1254 = vmatpush2.bf16.msra.mxu0 0
        %1255 = vmatprep.mubr.bf16.mxu0 0
        %1256 = vmatmul.mubr.bf16.gmra.mxu0 %v1218
        %v1257 = vpop.f32.mrf.mxu0
        %v1258 = vadd.f32 0.0, %v1257
        %v1259 = vpop.f32.mrf.mxu0
        %v1260 = vpop.f32.mrf.mxu0
        %v1261 = vpop.f32.mrf.mxu0
        %1262 = vdwg.mxu0
        %v1263 = vpack.c.bf16 %v1258, %v1258
        %s1264 = scalar_lea.vmem %s7, 16
        %v1265 = vld [vmem:[%s1264] sm:$0xf]
        %v1266 = vld [vmem:[%s1264 + $0x4] sm:$0xf]
        %v1267 = vld [vmem:[%s1264 + $0x8] sm:$0xf]
        %v1268 = vld [vmem:[%s1264 + $0xc] sm:$0xf]
        %v1273 = vunpack.c.l.b16 %v1265
        %v1274 = vunpack.c.l.b16 %v1266
        %v1275 = vunpack.c.l.b16 %v1267
        %v1276 = vunpack.c.l.b16 %v1268
        %v1277 = vpack.c.b16 %v1274, %v1273
        %v1278 = vpack.c.b16 %v1276, %v1275
        %v1280 = vsel %vm881, %v1263, 0
        %v1283 = vsel %vm881, %v1277, 0
        %v1286 = vsel %vm881, %v1278, 0
        %1288 = vmatprep.subr.bf16.mxu0 0
        %1289 = vmatpush1.bf16.xpose.msra.mxu0 0
        %1290 = vmatprep.subr.bf16.mxu0 0
        %1291 = vmatpush1.bf16.xpose.msra.mxu0 0
        %1292 = vmatprep.subr.bf16.mxu0 0
        %1293 = vmatpush1.bf16.xpose.msra.mxu0 0
        %1294 = vmatprep.subr.bf16.mxu0 0
        %1295 = vmatpush1.bf16.xpose.msra.mxu0 0
        %1296 = vmatprep.subr.bf16.mxu0 0
        %1297 = vmatpush1.bf16.xpose.msra.mxu0 0
        %1298 = vmatprep.subr.bf16.mxu0 0
        %1299 = vmatpush1.bf16.xpose.msra.mxu0 0
        %1300 = vmatprep.subr.bf16.mxu0 0
        %1301 = vmatpush1.bf16.xpose.msra.mxu0 %v1286
        %1302 = vmatprep.subr.bf16.mxu0 0
        %1303 = vmatpush1.bf16.xpose.msra.mxu0 %v1283
        %1304 = vmatprep.subr.bf16.mxu0 0
        %1305 = vmatpush2.bf16.xpose.msra.mxu0 0
        %1306 = vmatprep.subr.bf16.mxu0 0
        %1307 = vmatpush2.bf16.xpose.msra.mxu0 0
        %1308 = vmatprep.subr.bf16.mxu0 0
        %1309 = vmatpush2.bf16.xpose.msra.mxu0 0
        %1310 = vmatprep.subr.bf16.mxu0 0
        %1311 = vmatpush2.bf16.xpose.msra.mxu0 0
        %1312 = vmatprep.subr.bf16.mxu0 0
        %1313 = vmatpush2.bf16.xpose.msra.mxu0 0
        %1314 = vmatprep.subr.bf16.mxu0 0
        %1315 = vmatpush2.bf16.xpose.msra.mxu0 0
        %1316 = vmatprep.subr.bf16.mxu0 0
        %1317 = vmatpush2.bf16.xpose.msra.mxu0 0
        %1318 = vmatprep.subr.bf16.mxu0 0
        %1319 = vmatpush2.bf16.xpose.msra.mxu0 0
        %1320 = vmatprep.mubr.bf16.mxu0 0
        %1321 = vmatmul.mubr.bf16.gmra.mxu0 %v1280
        %v1322 = vpop.f32.mrf.mxu0
        %v1323 = vadd.f32 0.0, %v1322
        %v1324 = vpop.f32.mrf.mxu0
        %v1325 = vpop.f32.mrf.mxu0
        %v1326 = vpop.f32.mrf.mxu0
        %1327 = vdwg.mxu0
        %v1332 = vunpack.c.l.b16 %v991
        %v1333 = vunpack.c.l.b16 %v992
        %v1334 = vunpack.c.l.b16 %v993
        %v1335 = vunpack.c.l.b16 %v994
        %v1336 = vpack.c.b16 %v1333, %v1332
        %v1337 = vpack.c.b16 %v1335, %v1334
        %v1339 = vsel %vm881, %v990, 0
        %v1342 = vsel %vm881, %v1336, 0
        %v1345 = vsel %vm881, %v1337, 0
        %1347 = vmatprep.subr.bf16.mxu0 0
        %1348 = vmatpush1.bf16.xpose.msra.mxu0 0
        %1349 = vmatprep.subr.bf16.mxu0 0
        %1350 = vmatpush1.bf16.xpose.msra.mxu0 0
        %1351 = vmatprep.subr.bf16.mxu0 0
        %1352 = vmatpush1.bf16.xpose.msra.mxu0 0
        %1353 = vmatprep.subr.bf16.mxu0 0
        %1354 = vmatpush1.bf16.xpose.msra.mxu0 0
        %1355 = vmatprep.subr.bf16.mxu0 0
        %1356 = vmatpush1.bf16.xpose.msra.mxu0 0
        %1357 = vmatprep.subr.bf16.mxu0 0
        %1358 = vmatpush1.bf16.xpose.msra.mxu0 0
        %1359 = vmatprep.subr.bf16.mxu0 0
        %1360 = vmatpush1.bf16.xpose.msra.mxu0 %v1345
        %1361 = vmatprep.subr.bf16.mxu0 0
        %1362 = vmatpush1.bf16.xpose.msra.mxu0 %v1342
        %1363 = vmatprep.subr.bf16.mxu0 0
        %1364 = vmatpush2.bf16.xpose.msra.mxu0 0
        %1365 = vmatprep.subr.bf16.mxu0 0
        %1366 = vmatpush2.bf16.xpose.msra.mxu0 0
        %1367 = vmatprep.subr.bf16.mxu0 0
        %1368 = vmatpush2.bf16.xpose.msra.mxu0 0
        %1369 = vmatprep.subr.bf16.mxu0 0
        %1370 = vmatpush2.bf16.xpose.msra.mxu0 0
        %1371 = vmatprep.subr.bf16.mxu0 0
        %1372 = vmatpush2.bf16.xpose.msra.mxu0 0
        %1373 = vmatprep.subr.bf16.mxu0 0
        %1374 = vmatpush2.bf16.xpose.msra.mxu0 0
        %1375 = vmatprep.subr.bf16.mxu0 0
        %1376 = vmatpush2.bf16.xpose.msra.mxu0 0
        %1377 = vmatprep.subr.bf16.mxu0 0
        %1378 = vmatpush2.bf16.xpose.msra.mxu0 0
        %1379 = vmatprep.mubr.bf16.mxu0 0
        %1380 = vmatmul.mubr.bf16.gmra.mxu0 %v1339
        %v1381 = vpop.f32.mrf.mxu0
        %v1382 = vadd.f32 %v1323, %v1381
        %v1383 = vpop.f32.mrf.mxu0
        %v1384 = vpop.f32.mrf.mxu0
        %v1385 = vpop.f32.mrf.mxu0
        %1386 = vdwg.mxu0
        %s1387 = scalar_lea.vmem %s5, 8
        %v1388 = vld [vmem:[%s1387] sm:$0xf]
        %s1389 = scalar_lea.vmem %s6, 2
        %v1390 = vld [vmem:[%s1389] sm:$0x1]
        %v1392 = vlaneseq
        %v1393 = vshrl.u32 %v1392, 7
        %v1394 = vsub.s32 0, %v1393
        %v1395 = vrot.slane %v1390, %v1394
        %v1398 = vsel %vm723, %v1388, 0
        %1400 = vmatprep.subr.bf16.mxu0 0
        %1401 = vmatpush1.bf16.xpose.msra.mxu0 0
        %1402 = vmatprep.subr.bf16.mxu0 0
        %1403 = vmatpush1.bf16.xpose.msra.mxu0 0
        %1404 = vmatprep.subr.bf16.mxu0 0
        %1405 = vmatpush1.bf16.xpose.msra.mxu0 0
        %1406 = vmatprep.subr.bf16.mxu0 0
        %1407 = vmatpush1.bf16.xpose.msra.mxu0 0
        %1408 = vmatprep.subr.bf16.mxu0 0
        %1409 = vmatpush1.bf16.xpose.msra.mxu0 0
        %1410 = vmatprep.subr.bf16.mxu0 0
        %1411 = vmatpush1.bf16.xpose.msra.mxu0 0
        %1412 = vmatprep.subr.bf16.mxu0 0
        %1413 = vmatpush1.bf16.xpose.msra.mxu0 0
        %1414 = vmatprep.subr.bf16.mxu0 0
        %1415 = vmatpush1.bf16.xpose.msra.mxu0 %v1398
        %1416 = vmatprep.subr.bf16.mxu0 0
        %1417 = vmatpush2.bf16.xpose.msra.mxu0 0
        %1418 = vmatprep.subr.bf16.mxu0 0
        %1419 = vmatpush2.bf16.xpose.msra.mxu0 0
        %1420 = vmatprep.subr.bf16.mxu0 0
        %1421 = vmatpush2.bf16.xpose.msra.mxu0 0
        %1422 = vmatprep.subr.bf16.mxu0 0
        %1423 = vmatpush2.bf16.xpose.msra.mxu0 0
        %1424 = vmatprep.subr.bf16.mxu0 0
        %1425 = vmatpush2.bf16.xpose.msra.mxu0 0
        %1426 = vmatprep.subr.bf16.mxu0 0
        %1427 = vmatpush2.bf16.xpose.msra.mxu0 0
        %1428 = vmatprep.subr.bf16.mxu0 0
        %1429 = vmatpush2.bf16.xpose.msra.mxu0 0
        %1430 = vmatprep.subr.bf16.mxu0 0
        %1431 = vmatpush2.bf16.xpose.msra.mxu0 0
        %1432 = vmatprep.mubr.bf16.mxu0 0
        %1433 = vmatmul.mubr.bf16.gmra.mxu0 %v725
        %v1434 = vpop.f32.mrf.mxu0
        %v1435 = vadd.f32 %v1395, %v1434
        %v1436 = vpop.f32.mrf.mxu0
        %v1437 = vpop.f32.mrf.mxu0
        %v1438 = vpop.f32.mrf.mxu0
        %1439 = vdwg.mxu0
        %s1440 = scalar_lea.vmem %s5, 24
        %v1441 = vld [vmem:[%s1440] sm:$0xf]
        %s1442 = scalar_lea.vmem %s6, 6
        %v1443 = vld [vmem:[%s1442] sm:$0x1]
        %v1445 = vlaneseq
        %v1446 = vshrl.u32 %v1445, 7
        %v1447 = vsub.s32 0, %v1446
        %v1448 = vrot.slane %v1443, %v1447
        %v1451 = vsel %vm723, %v1441, 0
        %1453 = vmatprep.subr.bf16.mxu0 0
        %1454 = vmatpush1.bf16.xpose.msra.mxu0 0
        %1455 = vmatprep.subr.bf16.mxu0 0
        %1456 = vmatpush1.bf16.xpose.msra.mxu0 0
        %1457 = vmatprep.subr.bf16.mxu0 0
        %1458 = vmatpush1.bf16.xpose.msra.mxu0 0
        %1459 = vmatprep.subr.bf16.mxu0 0
        %1460 = vmatpush1.bf16.xpose.msra.mxu0 0
        %1461 = vmatprep.subr.bf16.mxu0 0
        %1462 = vmatpush1.bf16.xpose.msra.mxu0 0
        %1463 = vmatprep.subr.bf16.mxu0 0
        %1464 = vmatpush1.bf16.xpose.msra.mxu0 0
        %1465 = vmatprep.subr.bf16.mxu0 0
        %1466 = vmatpush1.bf16.xpose.msra.mxu0 0
        %1467 = vmatprep.subr.bf16.mxu0 0
        %1468 = vmatpush1.bf16.xpose.msra.mxu0 %v1451
        %1469 = vmatprep.subr.bf16.mxu0 0
        %1470 = vmatpush2.bf16.xpose.msra.mxu0 0
        %1471 = vmatprep.subr.bf16.mxu0 0
        %1472 = vmatpush2.bf16.xpose.msra.mxu0 0
        %1473 = vmatprep.subr.bf16.mxu0 0
        %1474 = vmatpush2.bf16.xpose.msra.mxu0 0
        %1475 = vmatprep.subr.bf16.mxu0 0
        %1476 = vmatpush2.bf16.xpose.msra.mxu0 0
        %1477 = vmatprep.subr.bf16.mxu0 0
        %1478 = vmatpush2.bf16.xpose.msra.mxu0 0
        %1479 = vmatprep.subr.bf16.mxu0 0
        %1480 = vmatpush2.bf16.xpose.msra.mxu0 0
        %1481 = vmatprep.subr.bf16.mxu0 0
        %1482 = vmatpush2.bf16.xpose.msra.mxu0 0
        %1483 = vmatprep.subr.bf16.mxu0 0
        %1484 = vmatpush2.bf16.xpose.msra.mxu0 0
        %1485 = vmatprep.mubr.bf16.mxu0 0
        %1486 = vmatmul.mubr.bf16.gmra.mxu0 %v781
        %v1487 = vpop.f32.mrf.mxu0
        %v1488 = vadd.f32 %v1448, %v1487
        %v1489 = vpop.f32.mrf.mxu0
        %v1490 = vpop.f32.mrf.mxu0
        %v1491 = vpop.f32.mrf.mxu0
        %1492 = vdwg.mxu0
        %s1493 = scalar_lea.vmem %s5, 40
        %v1494 = vld [vmem:[%s1493] sm:$0xf]
        %s1495 = scalar_lea.vmem %s6, 10
        %v1496 = vld [vmem:[%s1495] sm:$0x1]
        %v1498 = vlaneseq
        %v1499 = vshrl.u32 %v1498, 7
        %v1500 = vsub.s32 0, %v1499
        %v1501 = vrot.slane %v1496, %v1500
        %v1504 = vsel %vm723, %v1494, 0
        %1506 = vmatprep.subr.bf16.mxu0 0
        %1507 = vmatpush1.bf16.xpose.msra.mxu0 0
        %1508 = vmatprep.subr.bf16.mxu0 0
        %1509 = vmatpush1.bf16.xpose.msra.mxu0 0
        %1510 = vmatprep.subr.bf16.mxu0 0
        %1511 = vmatpush1.bf16.xpose.msra.mxu0 0
        %1512 = vmatprep.subr.bf16.mxu0 0
        %1513 = vmatpush1.bf16.xpose.msra.mxu0 0
        %1514 = vmatprep.subr.bf16.mxu0 0
        %1515 = vmatpush1.bf16.xpose.msra.mxu0 0
        %1516 = vmatprep.subr.bf16.mxu0 0
        %1517 = vmatpush1.bf16.xpose.msra.mxu0 0
        %1518 = vmatprep.subr.bf16.mxu0 0
        %1519 = vmatpush1.bf16.xpose.msra.mxu0 0
        %1520 = vmatprep.subr.bf16.mxu0 0
        %1521 = vmatpush1.bf16.xpose.msra.mxu0 %v1504
        %1522 = vmatprep.subr.bf16.mxu0 0
        %1523 = vmatpush2.bf16.xpose.msra.mxu0 0
        %1524 = vmatprep.subr.bf16.mxu0 0
        %1525 = vmatpush2.bf16.xpose.msra.mxu0 0
        %1526 = vmatprep.subr.bf16.mxu0 0
        %1527 = vmatpush2.bf16.xpose.msra.mxu0 0
        %1528 = vmatprep.subr.bf16.mxu0 0
        %1529 = vmatpush2.bf16.xpose.msra.mxu0 0
        %1530 = vmatprep.subr.bf16.mxu0 0
        %1531 = vmatpush2.bf16.xpose.msra.mxu0 0
        %1532 = vmatprep.subr.bf16.mxu0 0
        %1533 = vmatpush2.bf16.xpose.msra.mxu0 0
        %1534 = vmatprep.subr.bf16.mxu0 0
        %1535 = vmatpush2.bf16.xpose.msra.mxu0 0
        %1536 = vmatprep.subr.bf16.mxu0 0
        %1537 = vmatpush2.bf16.xpose.msra.mxu0 0
        %1538 = vmatprep.mubr.bf16.mxu0 0
        %1539 = vmatmul.mubr.bf16.gmra.mxu0 %v781
        %v1540 = vpop.f32.mrf.mxu0
        %v1541 = vadd.f32 %v1501, %v1540
        %v1542 = vpop.f32.mrf.mxu0
        %v1543 = vpop.f32.mrf.mxu0
        %v1544 = vpop.f32.mrf.mxu0
        %1545 = vdwg.mxu0
        %v1546 = vpack.c.bf16 %v1435, %v1435
        %v1547 = vpack.c.bf16 %v1488, %v1488
        %v1549 = vsel %vm881, %v1546, 0
        %v1552 = vsel %vm881, %v1547, 0
        %1554 = vmatprep.subr.bf16.mxu0 0
        %1555 = vmatpush1.bf16.xpose.msra.mxu0 0
        %1556 = vmatprep.subr.bf16.mxu0 0
        %1557 = vmatpush1.bf16.xpose.msra.mxu0 0
        %1558 = vmatprep.subr.bf16.mxu0 0
        %1559 = vmatpush1.bf16.xpose.msra.mxu0 0
        %1560 = vmatprep.subr.bf16.mxu0 0
        %1561 = vmatpush1.bf16.xpose.msra.mxu0 0
        %1562 = vmatprep.subr.bf16.mxu0 0
        %1563 = vmatpush1.bf16.xpose.msra.mxu0 0
        %1564 = vmatprep.subr.bf16.mxu0 0
        %1565 = vmatpush1.bf16.xpose.msra.mxu0 0
        %1566 = vmatprep.subr.bf16.mxu0 0
        %1567 = vmatpush1.bf16.xpose.msra.mxu0 0
        %1568 = vmatprep.subr.bf16.mxu0 0
        %1569 = vmatpush1.bf16.xpose.msra.mxu0 %v1552
        %1570 = vmatprep.subr.bf16.mxu0 0
        %1571 = vmatpush2.bf16.xpose.msra.mxu0 0
        %1572 = vmatprep.subr.bf16.mxu0 0
        %1573 = vmatpush2.bf16.xpose.msra.mxu0 0
        %1574 = vmatprep.subr.bf16.mxu0 0
        %1575 = vmatpush2.bf16.xpose.msra.mxu0 0
        %1576 = vmatprep.subr.bf16.mxu0 0
        %1577 = vmatpush2.bf16.xpose.msra.mxu0 0
        %1578 = vmatprep.subr.bf16.mxu0 0
        %1579 = vmatpush2.bf16.xpose.msra.mxu0 0
        %1580 = vmatprep.subr.bf16.mxu0 0
        %1581 = vmatpush2.bf16.xpose.msra.mxu0 0
        %1582 = vmatprep.subr.bf16.mxu0 0
        %1583 = vmatpush2.bf16.xpose.msra.mxu0 0
        %1584 = vmatprep.subr.bf16.mxu0 0
        %1585 = vmatpush2.bf16.xpose.msra.mxu0 0
        %1586 = vmatprep.mubr.bf16.mxu0 0
        %1587 = vmatmul.mubr.bf16.gmra.mxu0 %v1549
        %v1588 = vpop.f32.mrf.mxu0
        %v1589 = vadd.f32 0.0, %v1588
        %v1590 = vpop.f32.mrf.mxu0
        %v1591 = vpop.f32.mrf.mxu0
        %v1592 = vpop.f32.mrf.mxu0
        %1593 = vdwg.mxu0
        %v1594 = vmul.f32 %v1589, 0.35355338
        %v1595 = vsel %vm705, %v1594, -1e+09
        %v1596 = vsel %vm881, %v1595, -inf
        %1597 = vmax.xlane.f32.xlu0 %v1596
        %v1598 = vpop.xlane.xlu0 %1597
        %v1599 = vsub.f32 %v1595, %v1598
        %v1600 = vmul.f32 %v1599, 1.442695
        %v1601 = vpow.pop %v1600
        %v1602 = vsel %vm881, %v1601, 0.0
        %1603 = vadd.xlane.f32.xlu0 %v1602
        %v1604 = vpop.xlane.xlu0 %1603
        %v1605 = vrcp.pop %v1604
        %v1606 = vmul.f32 %v1601, %v1605
        %v1607 = vpack.c.bf16 %v1606, %v1606
        %v1608 = vpack.c.bf16 %v1541, %v1541
        %v1610 = vsel %vm881, %v1607, 0
        %v1613 = vsel %vm946, %v1608, 0
        %1615 = vmatprep.subr.bf16.mxu0 0
        %1616 = vmatpush1.bf16.msra.mxu0 0
        %1617 = vmatprep.subr.bf16.mxu0 0
        %1618 = vmatpush1.bf16.msra.mxu0 0
        %1619 = vmatprep.subr.bf16.mxu0 0
        %1620 = vmatpush1.bf16.msra.mxu0 0
        %1621 = vmatprep.subr.bf16.mxu0 0
        %1622 = vmatpush1.bf16.msra.mxu0 0
        %1623 = vmatprep.subr.bf16.mxu0 0
        %1624 = vmatpush1.bf16.msra.mxu0 0
        %1625 = vmatprep.subr.bf16.mxu0 0
        %1626 = vmatpush1.bf16.msra.mxu0 0
        %1627 = vmatprep.subr.bf16.mxu0 0
        %1628 = vmatpush1.bf16.msra.mxu0 0
        %1629 = vmatprep.subr.bf16.mxu0 0
        %1630 = vmatpush1.bf16.msra.mxu0 %v1613
        %1631 = vmatprep.subr.bf16.mxu0 0
        %1632 = vmatpush2.bf16.msra.mxu0 0
        %1633 = vmatprep.subr.bf16.mxu0 0
        %1634 = vmatpush2.bf16.msra.mxu0 0
        %1635 = vmatprep.subr.bf16.mxu0 0
        %1636 = vmatpush2.bf16.msra.mxu0 0
        %1637 = vmatprep.subr.bf16.mxu0 0
        %1638 = vmatpush2.bf16.msra.mxu0 0
        %1639 = vmatprep.subr.bf16.mxu0 0
        %1640 = vmatpush2.bf16.msra.mxu0 0
        %1641 = vmatprep.subr.bf16.mxu0 0
        %1642 = vmatpush2.bf16.msra.mxu0 0
        %1643 = vmatprep.subr.bf16.mxu0 0
        %1644 = vmatpush2.bf16.msra.mxu0 0
        %1645 = vmatprep.subr.bf16.mxu0 0
        %1646 = vmatpush2.bf16.msra.mxu0 0
        %1647 = vmatprep.mubr.bf16.mxu0 0
        %1648 = vmatmul.mubr.bf16.gmra.mxu0 %v1610
        %v1649 = vpop.f32.mrf.mxu0
        %v1650 = vadd.f32 0.0, %v1649
        %v1651 = vpop.f32.mrf.mxu0
        %v1652 = vpop.f32.mrf.mxu0
        %v1653 = vpop.f32.mrf.mxu0
        %1654 = vdwg.mxu0
        %v1655 = vpack.c.bf16 %v1650, %v1650
        %s1656 = scalar_lea.vmem %s7, 32
        %v1657 = vld [vmem:[%s1656] sm:$0xf]
        %v1658 = vld [vmem:[%s1656 + $0x4] sm:$0xf]
        %v1659 = vld [vmem:[%s1656 + $0x8] sm:$0xf]
        %v1660 = vld [vmem:[%s1656 + $0xc] sm:$0xf]
        %v1665 = vunpack.c.l.b16 %v1657
        %v1666 = vunpack.c.l.b16 %v1658
        %v1667 = vunpack.c.l.b16 %v1659
        %v1668 = vunpack.c.l.b16 %v1660
        %v1669 = vpack.c.b16 %v1666, %v1665
        %v1670 = vpack.c.b16 %v1668, %v1667
        %v1672 = vsel %vm881, %v1655, 0
        %v1675 = vsel %vm881, %v1669, 0
        %v1678 = vsel %vm881, %v1670, 0
        %1680 = vmatprep.subr.bf16.mxu0 0
        %1681 = vmatpush1.bf16.xpose.msra.mxu0 0
        %1682 = vmatprep.subr.bf16.mxu0 0
        %1683 = vmatpush1.bf16.xpose.msra.mxu0 0
        %1684 = vmatprep.subr.bf16.mxu0 0
        %1685 = vmatpush1.bf16.xpose.msra.mxu0 0
        %1686 = vmatprep.subr.bf16.mxu0 0
        %1687 = vmatpush1.bf16.xpose.msra.mxu0 0
        %1688 = vmatprep.subr.bf16.mxu0 0
        %1689 = vmatpush1.bf16.xpose.msra.mxu0 0
        %1690 = vmatprep.subr.bf16.mxu0 0
        %1691 = vmatpush1.bf16.xpose.msra.mxu0 0
        %1692 = vmatprep.subr.bf16.mxu0 0
        %1693 = vmatpush1.bf16.xpose.msra.mxu0 %v1678
        %1694 = vmatprep.subr.bf16.mxu0 0
        %1695 = vmatpush1.bf16.xpose.msra.mxu0 %v1675
        %1696 = vmatprep.subr.bf16.mxu0 0
        %1697 = vmatpush2.bf16.xpose.msra.mxu0 0
        %1698 = vmatprep.subr.bf16.mxu0 0
        %1699 = vmatpush2.bf16.xpose.msra.mxu0 0
        %1700 = vmatprep.subr.bf16.mxu0 0
        %1701 = vmatpush2.bf16.xpose.msra.mxu0 0
        %1702 = vmatprep.subr.bf16.mxu0 0
        %1703 = vmatpush2.bf16.xpose.msra.mxu0 0
        %1704 = vmatprep.subr.bf16.mxu0 0
        %1705 = vmatpush2.bf16.xpose.msra.mxu0 0
        %1706 = vmatprep.subr.bf16.mxu0 0
        %1707 = vmatpush2.bf16.xpose.msra.mxu0 0
        %1708 = vmatprep.subr.bf16.mxu0 0
        %1709 = vmatpush2.bf16.xpose.msra.mxu0 0
        %1710 = vmatprep.subr.bf16.mxu0 0
        %1711 = vmatpush2.bf16.xpose.msra.mxu0 0
        %1712 = vmatprep.mubr.bf16.mxu0 0
        %1713 = vmatmul.mubr.bf16.gmra.mxu0 %v1672
        %v1714 = vpop.f32.mrf.mxu0
        %v1715 = vadd.f32 0.0, %v1714
        %v1716 = vpop.f32.mrf.mxu0
        %v1717 = vpop.f32.mrf.mxu0
        %v1718 = vpop.f32.mrf.mxu0
        %1719 = vdwg.mxu0
        %v1720 = vadd.f32 %v1382, %v1715
        %s1721 = scalar_lea.vmem %s5, 12
        %v1722 = vld [vmem:[%s1721] sm:$0xf]
        %s1723 = scalar_lea.vmem %s6, 3
        %v1724 = vld [vmem:[%s1723] sm:$0x1]
        %v1726 = vlaneseq
        %v1727 = vshrl.u32 %v1726, 7
        %v1728 = vsub.s32 0, %v1727
        %v1729 = vrot.slane %v1724, %v1728
        %v1732 = vsel %vm723, %v1722, 0
        %1734 = vmatprep.subr.bf16.mxu0 0
        %1735 = vmatpush1.bf16.xpose.msra.mxu0 0
        %1736 = vmatprep.subr.bf16.mxu0 0
        %1737 = vmatpush1.bf16.xpose.msra.mxu0 0
        %1738 = vmatprep.subr.bf16.mxu0 0
        %1739 = vmatpush1.bf16.xpose.msra.mxu0 0
        %1740 = vmatprep.subr.bf16.mxu0 0
        %1741 = vmatpush1.bf16.xpose.msra.mxu0 0
        %1742 = vmatprep.subr.bf16.mxu0 0
        %1743 = vmatpush1.bf16.xpose.msra.mxu0 0
        %1744 = vmatprep.subr.bf16.mxu0 0
        %1745 = vmatpush1.bf16.xpose.msra.mxu0 0
        %1746 = vmatprep.subr.bf16.mxu0 0
        %1747 = vmatpush1.bf16.xpose.msra.mxu0 0
        %1748 = vmatprep.subr.bf16.mxu0 0
        %1749 = vmatpush1.bf16.xpose.msra.mxu0 %v1732
        %1750 = vmatprep.subr.bf16.mxu0 0
        %1751 = vmatpush2.bf16.xpose.msra.mxu0 0
        %1752 = vmatprep.subr.bf16.mxu0 0
        %1753 = vmatpush2.bf16.xpose.msra.mxu0 0
        %1754 = vmatprep.subr.bf16.mxu0 0
        %1755 = vmatpush2.bf16.xpose.msra.mxu0 0
        %1756 = vmatprep.subr.bf16.mxu0 0
        %1757 = vmatpush2.bf16.xpose.msra.mxu0 0
        %1758 = vmatprep.subr.bf16.mxu0 0
        %1759 = vmatpush2.bf16.xpose.msra.mxu0 0
        %1760 = vmatprep.subr.bf16.mxu0 0
        %1761 = vmatpush2.bf16.xpose.msra.mxu0 0
        %1762 = vmatprep.subr.bf16.mxu0 0
        %1763 = vmatpush2.bf16.xpose.msra.mxu0 0
        %1764 = vmatprep.subr.bf16.mxu0 0
        %1765 = vmatpush2.bf16.xpose.msra.mxu0 0
        %1766 = vmatprep.mubr.bf16.mxu0 0
        %1767 = vmatmul.mubr.bf16.gmra.mxu0 %v725
        %v1768 = vpop.f32.mrf.mxu0
        %v1769 = vadd.f32 %v1729, %v1768
        %v1770 = vpop.f32.mrf.mxu0
        %v1771 = vpop.f32.mrf.mxu0
        %v1772 = vpop.f32.mrf.mxu0
        %1773 = vdwg.mxu0
        %s1774 = scalar_lea.vmem %s5, 28
        %v1775 = vld [vmem:[%s1774] sm:$0xf]
        %s1776 = scalar_lea.vmem %s6, 7
        %v1777 = vld [vmem:[%s1776] sm:$0x1]
        %v1779 = vlaneseq
        %v1780 = vshrl.u32 %v1779, 7
        %v1781 = vsub.s32 0, %v1780
        %v1782 = vrot.slane %v1777, %v1781
        %v1785 = vsel %vm723, %v1775, 0
        %1787 = vmatprep.subr.bf16.mxu0 0
        %1788 = vmatpush1.bf16.xpose.msra.mxu0 0
        %1789 = vmatprep.subr.bf16.mxu0 0
        %1790 = vmatpush1.bf16.xpose.msra.mxu0 0
        %1791 = vmatprep.subr.bf16.mxu0 0
        %1792 = vmatpush1.bf16.xpose.msra.mxu0 0
        %1793 = vmatprep.subr.bf16.mxu0 0
        %1794 = vmatpush1.bf16.xpose.msra.mxu0 0
        %1795 = vmatprep.subr.bf16.mxu0 0
        %1796 = vmatpush1.bf16.xpose.msra.mxu0 0
        %1797 = vmatprep.subr.bf16.mxu0 0
        %1798 = vmatpush1.bf16.xpose.msra.mxu0 0
        %1799 = vmatprep.subr.bf16.mxu0 0
        %1800 = vmatpush1.bf16.xpose.msra.mxu0 0
        %1801 = vmatprep.subr.bf16.mxu0 0
        %1802 = vmatpush1.bf16.xpose.msra.mxu0 %v1785
        %1803 = vmatprep.subr.bf16.mxu0 0
        %1804 = vmatpush2.bf16.xpose.msra.mxu0 0
        %1805 = vmatprep.subr.bf16.mxu0 0
        %1806 = vmatpush2.bf16.xpose.msra.mxu0 0
        %1807 = vmatprep.subr.bf16.mxu0 0
        %1808 = vmatpush2.bf16.xpose.msra.mxu0 0
        %1809 = vmatprep.subr.bf16.mxu0 0
        %1810 = vmatpush2.bf16.xpose.msra.mxu0 0
        %1811 = vmatprep.subr.bf16.mxu0 0
        %1812 = vmatpush2.bf16.xpose.msra.mxu0 0
        %1813 = vmatprep.subr.bf16.mxu0 0
        %1814 = vmatpush2.bf16.xpose.msra.mxu0 0
        %1815 = vmatprep.subr.bf16.mxu0 0
        %1816 = vmatpush2.bf16.xpose.msra.mxu0 0
        %1817 = vmatprep.subr.bf16.mxu0 0
        %1818 = vmatpush2.bf16.xpose.msra.mxu0 0
        %1819 = vmatprep.mubr.bf16.mxu0 0
        %1820 = vmatmul.mubr.bf16.gmra.mxu0 %v781
        %v1821 = vpop.f32.mrf.mxu0
        %v1822 = vadd.f32 %v1782, %v1821
        %v1823 = vpop.f32.mrf.mxu0
        %v1824 = vpop.f32.mrf.mxu0
        %v1825 = vpop.f32.mrf.mxu0
        %1826 = vdwg.mxu0
        %s1827 = scalar_lea.vmem %s5, 44
        %v1828 = vld [vmem:[%s1827] sm:$0xf]
        %s1829 = scalar_lea.vmem %s6, 11
        %v1830 = vld [vmem:[%s1829] sm:$0x1]
        %v1832 = vlaneseq
        %v1833 = vshrl.u32 %v1832, 7
        %v1834 = vsub.s32 0, %v1833
        %v1835 = vrot.slane %v1830, %v1834
        %v1838 = vsel %vm723, %v1828, 0
        %1840 = vmatprep.subr.bf16.mxu0 0
        %1841 = vmatpush1.bf16.xpose.msra.mxu0 0
        %1842 = vmatprep.subr.bf16.mxu0 0
        %1843 = vmatpush1.bf16.xpose.msra.mxu0 0
        %1844 = vmatprep.subr.bf16.mxu0 0
        %1845 = vmatpush1.bf16.xpose.msra.mxu0 0
        %1846 = vmatprep.subr.bf16.mxu0 0
        %1847 = vmatpush1.bf16.xpose.msra.mxu0 0
        %1848 = vmatprep.subr.bf16.mxu0 0
        %1849 = vmatpush1.bf16.xpose.msra.mxu0 0
        %1850 = vmatprep.subr.bf16.mxu0 0
        %1851 = vmatpush1.bf16.xpose.msra.mxu0 0
        %1852 = vmatprep.subr.bf16.mxu0 0
        %1853 = vmatpush1.bf16.xpose.msra.mxu0 0
        %1854 = vmatprep.subr.bf16.mxu0 0
        %1855 = vmatpush1.bf16.xpose.msra.mxu0 %v1838
        %1856 = vmatprep.subr.bf16.mxu0 0
        %1857 = vmatpush2.bf16.xpose.msra.mxu0 0
        %1858 = vmatprep.subr.bf16.mxu0 0
        %1859 = vmatpush2.bf16.xpose.msra.mxu0 0
        %1860 = vmatprep.subr.bf16.mxu0 0
        %1861 = vmatpush2.bf16.xpose.msra.mxu0 0
        %1862 = vmatprep.subr.bf16.mxu0 0
        %1863 = vmatpush2.bf16.xpose.msra.mxu0 0
        %1864 = vmatprep.subr.bf16.mxu0 0
        %1865 = vmatpush2.bf16.xpose.msra.mxu0 0
        %1866 = vmatprep.subr.bf16.mxu0 0
        %1867 = vmatpush2.bf16.xpose.msra.mxu0 0
        %1868 = vmatprep.subr.bf16.mxu0 0
        %1869 = vmatpush2.bf16.xpose.msra.mxu0 0
        %1870 = vmatprep.subr.bf16.mxu0 0
        %1871 = vmatpush2.bf16.xpose.msra.mxu0 0
        %1872 = vmatprep.mubr.bf16.mxu0 0
        %1873 = vmatmul.mubr.bf16.gmra.mxu0 %v781
        %v1874 = vpop.f32.mrf.mxu0
        %v1875 = vadd.f32 %v1835, %v1874
        %v1876 = vpop.f32.mrf.mxu0
        %v1877 = vpop.f32.mrf.mxu0
        %v1878 = vpop.f32.mrf.mxu0
        %1879 = vdwg.mxu0
        %v1880 = vpack.c.bf16 %v1769, %v1769
        %v1881 = vpack.c.bf16 %v1822, %v1822
        %v1883 = vsel %vm881, %v1880, 0
        %v1886 = vsel %vm881, %v1881, 0
        %1888 = vmatprep.subr.bf16.mxu0 0
        %1889 = vmatpush1.bf16.xpose.msra.mxu0 0
        %1890 = vmatprep.subr.bf16.mxu0 0
        %1891 = vmatpush1.bf16.xpose.msra.mxu0 0
        %1892 = vmatprep.subr.bf16.mxu0 0
        %1893 = vmatpush1.bf16.xpose.msra.mxu0 0
        %1894 = vmatprep.subr.bf16.mxu0 0
        %1895 = vmatpush1.bf16.xpose.msra.mxu0 0
        %1896 = vmatprep.subr.bf16.mxu0 0
        %1897 = vmatpush1.bf16.xpose.msra.mxu0 0
        %1898 = vmatprep.subr.bf16.mxu0 0
        %1899 = vmatpush1.bf16.xpose.msra.mxu0 0
        %1900 = vmatprep.subr.bf16.mxu0 0
        %1901 = vmatpush1.bf16.xpose.msra.mxu0 0
        %1902 = vmatprep.subr.bf16.mxu0 0
        %1903 = vmatpush1.bf16.xpose.msra.mxu0 %v1886
        %1904 = vmatprep.subr.bf16.mxu0 0
        %1905 = vmatpush2.bf16.xpose.msra.mxu0 0
        %1906 = vmatprep.subr.bf16.mxu0 0
        %1907 = vmatpush2.bf16.xpose.msra.mxu0 0
        %1908 = vmatprep.subr.bf16.mxu0 0
        %1909 = vmatpush2.bf16.xpose.msra.mxu0 0
        %1910 = vmatprep.subr.bf16.mxu0 0
        %1911 = vmatpush2.bf16.xpose.msra.mxu0 0
        %1912 = vmatprep.subr.bf16.mxu0 0
        %1913 = vmatpush2.bf16.xpose.msra.mxu0 0
        %1914 = vmatprep.subr.bf16.mxu0 0
        %1915 = vmatpush2.bf16.xpose.msra.mxu0 0
        %1916 = vmatprep.subr.bf16.mxu0 0
        %1917 = vmatpush2.bf16.xpose.msra.mxu0 0
        %1918 = vmatprep.subr.bf16.mxu0 0
        %1919 = vmatpush2.bf16.xpose.msra.mxu0 0
        %1920 = vmatprep.mubr.bf16.mxu0 0
        %1921 = vmatmul.mubr.bf16.gmra.mxu0 %v1883
        %v1922 = vpop.f32.mrf.mxu0
        %v1923 = vadd.f32 0.0, %v1922
        %v1924 = vpop.f32.mrf.mxu0
        %v1925 = vpop.f32.mrf.mxu0
        %v1926 = vpop.f32.mrf.mxu0
        %1927 = vdwg.mxu0
        %v1928 = vmul.f32 %v1923, 0.35355338
        %v1929 = vsel %vm705, %v1928, -1e+09
        %v1930 = vsel %vm881, %v1929, -inf
        %1931 = vmax.xlane.f32.xlu0 %v1930
        %v1932 = vpop.xlane.xlu0 %1931
        %v1933 = vsub.f32 %v1929, %v1932
        %v1934 = vmul.f32 %v1933, 1.442695
        %v1935 = vpow.pop %v1934
        %v1936 = vsel %vm881, %v1935, 0.0
        %1937 = vadd.xlane.f32.xlu0 %v1936
        %v1938 = vpop.xlane.xlu0 %1937
        %v1939 = vrcp.pop %v1938
        %v1940 = vmul.f32 %v1935, %v1939
        %v1941 = vpack.c.bf16 %v1940, %v1940
        %v1942 = vpack.c.bf16 %v1875, %v1875
        %v1944 = vsel %vm881, %v1941, 0
        %v1947 = vsel %vm946, %v1942, 0
        %1949 = vmatprep.subr.bf16.mxu0 0
        %1950 = vmatpush1.bf16.msra.mxu0 0
        %1951 = vmatprep.subr.bf16.mxu0 0
        %1952 = vmatpush1.bf16.msra.mxu0 0
        %1953 = vmatprep.subr.bf16.mxu0 0
        %1954 = vmatpush1.bf16.msra.mxu0 0
        %1955 = vmatprep.subr.bf16.mxu0 0
        %1956 = vmatpush1.bf16.msra.mxu0 0
        %1957 = vmatprep.subr.bf16.mxu0 0
        %1958 = vmatpush1.bf16.msra.mxu0 0
        %1959 = vmatprep.subr.bf16.mxu0 0
        %1960 = vmatpush1.bf16.msra.mxu0 0
        %1961 = vmatprep.subr.bf16.mxu0 0
        %1962 = vmatpush1.bf16.msra.mxu0 0
        %1963 = vmatprep.subr.bf16.mxu0 0
        %1964 = vmatpush1.bf16.msra.mxu0 %v1947
        %1965 = vmatprep.subr.bf16.mxu0 0
        %1966 = vmatpush2.bf16.msra.mxu0 0
        %1967 = vmatprep.subr.bf16.mxu0 0
        %1968 = vmatpush2.bf16.msra.mxu0 0
        %1969 = vmatprep.subr.bf16.mxu0 0
        %1970 = vmatpush2.bf16.msra.mxu0 0
        %1971 = vmatprep.subr.bf16.mxu0 0
        %1972 = vmatpush2.bf16.msra.mxu0 0
        %1973 = vmatprep.subr.bf16.mxu0 0
        %1974 = vmatpush2.bf16.msra.mxu0 0
        %1975 = vmatprep.subr.bf16.mxu0 0
        %1976 = vmatpush2.bf16.msra.mxu0 0
        %1977 = vmatprep.subr.bf16.mxu0 0
        %1978 = vmatpush2.bf16.msra.mxu0 0
        %1979 = vmatprep.subr.bf16.mxu0 0
        %1980 = vmatpush2.bf16.msra.mxu0 0
        %1981 = vmatprep.mubr.bf16.mxu0 0
        %1982 = vmatmul.mubr.bf16.gmra.mxu0 %v1944
        %v1983 = vpop.f32.mrf.mxu0
        %v1984 = vadd.f32 0.0, %v1983
        %v1985 = vpop.f32.mrf.mxu0
        %v1986 = vpop.f32.mrf.mxu0
        %v1987 = vpop.f32.mrf.mxu0
        %1988 = vdwg.mxu0
        %v1989 = vpack.c.bf16 %v1984, %v1984
        %s1990 = scalar_lea.vmem %s7, 48
        %v1991 = vld [vmem:[%s1990] sm:$0xf]
        %v1992 = vld [vmem:[%s1990 + $0x4] sm:$0xf]
        %v1993 = vld [vmem:[%s1990 + $0x8] sm:$0xf]
        %v1994 = vld [vmem:[%s1990 + $0xc] sm:$0xf]
        %v1999 = vunpack.c.l.b16 %v1991
        %v2000 = vunpack.c.l.b16 %v1992
        %v2001 = vunpack.c.l.b16 %v1993
        %v2002 = vunpack.c.l.b16 %v1994
        %v2003 = vpack.c.b16 %v2000, %v1999
        %v2004 = vpack.c.b16 %v2002, %v2001
        %v2006 = vsel %vm881, %v1989, 0
        %v2009 = vsel %vm881, %v2003, 0
        %v2012 = vsel %vm881, %v2004, 0
        %2014 = vmatprep.subr.bf16.mxu0 0
        %2015 = vmatpush1.bf16.xpose.msra.mxu0 0
        %2016 = vmatprep.subr.bf16.mxu0 0
        %2017 = vmatpush1.bf16.xpose.msra.mxu0 0
        %2018 = vmatprep.subr.bf16.mxu0 0
        %2019 = vmatpush1.bf16.xpose.msra.mxu0 0
        %2020 = vmatprep.subr.bf16.mxu0 0
        %2021 = vmatpush1.bf16.xpose.msra.mxu0 0
        %2022 = vmatprep.subr.bf16.mxu0 0
        %2023 = vmatpush1.bf16.xpose.msra.mxu0 0
        %2024 = vmatprep.subr.bf16.mxu0 0
        %2025 = vmatpush1.bf16.xpose.msra.mxu0 0
        %2026 = vmatprep.subr.bf16.mxu0 0
        %2027 = vmatpush1.bf16.xpose.msra.mxu0 %v2012
        %2028 = vmatprep.subr.bf16.mxu0 0
        %2029 = vmatpush1.bf16.xpose.msra.mxu0 %v2009
        %2030 = vmatprep.subr.bf16.mxu0 0
        %2031 = vmatpush2.bf16.xpose.msra.mxu0 0
        %2032 = vmatprep.subr.bf16.mxu0 0
        %2033 = vmatpush2.bf16.xpose.msra.mxu0 0
        %2034 = vmatprep.subr.bf16.mxu0 0
        %2035 = vmatpush2.bf16.xpose.msra.mxu0 0
        %2036 = vmatprep.subr.bf16.mxu0 0
        %2037 = vmatpush2.bf16.xpose.msra.mxu0 0
        %2038 = vmatprep.subr.bf16.mxu0 0
        %2039 = vmatpush2.bf16.xpose.msra.mxu0 0
        %2040 = vmatprep.subr.bf16.mxu0 0
        %2041 = vmatpush2.bf16.xpose.msra.mxu0 0
        %2042 = vmatprep.subr.bf16.mxu0 0
        %2043 = vmatpush2.bf16.xpose.msra.mxu0 0
        %2044 = vmatprep.subr.bf16.mxu0 0
        %2045 = vmatpush2.bf16.xpose.msra.mxu0 0
        %2046 = vmatprep.mubr.bf16.mxu0 0
        %2047 = vmatmul.mubr.bf16.gmra.mxu0 %v2006
        %v2048 = vpop.f32.mrf.mxu0
        %v2049 = vadd.f32 0.0, %v2048
        %v2050 = vpop.f32.mrf.mxu0
        %v2051 = vpop.f32.mrf.mxu0
        %v2052 = vpop.f32.mrf.mxu0
        %2053 = vdwg.mxu0
        %v2054 = vadd.f32 %v1720, %v2049
        %v2055 = vld [vmem:[%s8] sm:$0x1]
        %v2057 = vlaneseq
        %v2058 = vshrl.u32 %v2057, 7
        %v2059 = vsub.s32 0, %v2058
        %v2060 = vrot.slane %v2055, %v2059
        %v2062 = vadd.f32 %v2054, %v2060
        %v2063 = vadd.f32 %v714, %v2062
        %v2064 = vld [vmem:[%s17] sm:$0x1]
        %v2065 = vld [vmem:[%s18] sm:$0x1]
        %v2066 = vsel %vm723, %v2063, 0.0
        %2067 = vadd.xlane.f32.xlu0 %v2066
        %v2068 = vpop.xlane.xlu0 %2067
        %v2069 = vrcp.pop 32.0
        %v2070 = vmul.f32 %v2068, %v2069
        %v2071 = vsub.f32 %v2063, %v2070
        %v2072 = vmul.f32 %v2071, %v2071
        %v2073 = vsel %vm723, %v2072, 0.0
        %2074 = vadd.xlane.f32.xlu0 %v2073
        %v2075 = vpop.xlane.xlu0 %2074
        %v2076 = vmul.f32 %v2075, 0.032258064
        %v2077 = vrsqrt.pop %v2076
        %v2078 = vmul.f32 %v2076, %v2077
        %vm2079 = vcmp.eq.f32.partialorder %v2076, inf
        %v2080 = vsel %vm2079, %v2076, %v2078
        %vm2081 = vcmp.eq.f32.partialorder %v2076, 0.0
        %v2082 = vand.u32 %v2076, 2147483648
        %v2083 = vsel %vm2081, %v2082, %v2080
        %v2084 = vadd.f32 %v2083, 1e-06
        %v2085 = vrcp.pop %v2084
        %v2086 = vmul.f32 %v2071, %v2085
        %v2088 = vlaneseq
        %v2089 = vshrl.u32 %v2088, 7
        %v2090 = vsub.s32 0, %v2089
        %v2091 = vrot.slane %v2064, %v2090
        %v2093 = vmul.f32 %v2091, %v2086
        %v2095 = vlaneseq
        %v2096 = vshrl.u32 %v2095, 7
        %v2097 = vsub.s32 0, %v2096
        %v2098 = vrot.slane %v2065, %v2097
        %v2100 = vadd.f32 %v2093, %v2098
        %v2101 = vpack.c.bf16 %v2100, %v2100
        %v2102 = vld [vmem:[%s9] sm:$0xf]
        %v2103 = vld [vmem:[%s10] sm:$0x1]
        %v2105 = vlaneseq
        %v2106 = vshrl.u32 %v2105, 7
        %v2107 = vsub.s32 0, %v2106
        %v2108 = vrot.slane %v2103, %v2107
        %v2111 = vsel %vm723, %v2101, 0
        %v2114 = vsel %vm723, %v2102, 0
        %2116 = vmatprep.subr.bf16.mxu0 0
        %2117 = vmatpush1.bf16.xpose.msra.mxu0 0
        %2118 = vmatprep.subr.bf16.mxu0 0
        %2119 = vmatpush1.bf16.xpose.msra.mxu0 0
        %2120 = vmatprep.subr.bf16.mxu0 0
        %2121 = vmatpush1.bf16.xpose.msra.mxu0 0
        %2122 = vmatprep.subr.bf16.mxu0 0
        %2123 = vmatpush1.bf16.xpose.msra.mxu0 0
        %2124 = vmatprep.subr.bf16.mxu0 0
        %2125 = vmatpush1.bf16.xpose.msra.mxu0 0
        %2126 = vmatprep.subr.bf16.mxu0 0
        %2127 = vmatpush1.bf16.xpose.msra.mxu0 0
        %2128 = vmatprep.subr.bf16.mxu0 0
        %2129 = vmatpush1.bf16.xpose.msra.mxu0 0
        %2130 = vmatprep.subr.bf16.mxu0 0
        %2131 = vmatpush1.bf16.xpose.msra.mxu0 %v2114
        %2132 = vmatprep.subr.bf16.mxu0 0
        %2133 = vmatpush2.bf16.xpose.msra.mxu0 0
        %2134 = vmatprep.subr.bf16.mxu0 0
        %2135 = vmatpush2.bf16.xpose.msra.mxu0 0
        %2136 = vmatprep.subr.bf16.mxu0 0
        %2137 = vmatpush2.bf16.xpose.msra.mxu0 0
        %2138 = vmatprep.subr.bf16.mxu0 0
        %2139 = vmatpush2.bf16.xpose.msra.mxu0 0
        %2140 = vmatprep.subr.bf16.mxu0 0
        %2141 = vmatpush2.bf16.xpose.msra.mxu0 0
        %2142 = vmatprep.subr.bf16.mxu0 0
        %2143 = vmatpush2.bf16.xpose.msra.mxu0 0
        %2144 = vmatprep.subr.bf16.mxu0 0
        %2145 = vmatpush2.bf16.xpose.msra.mxu0 0
        %2146 = vmatprep.subr.bf16.mxu0 0
        %2147 = vmatpush2.bf16.xpose.msra.mxu0 0
        %2148 = vmatprep.mubr.bf16.mxu0 0
        %2149 = vmatmul.mubr.bf16.gmra.mxu0 %v2111
        %v2150 = vpop.f32.mrf.mxu0
        %v2151 = vadd.f32 %v2108, %v2150
        %v2152 = vpop.f32.mrf.mxu0
        %v2153 = vpop.f32.mrf.mxu0
        %v2154 = vpop.f32.mrf.mxu0
        %2155 = vdwg.mxu0
        %s2156 = scalar_lea.vmem %s9, 16
        %v2157 = vld [vmem:[%s2156] sm:$0xf]
        %s2158 = scalar_lea.vmem %s10, 4
        %v2159 = vld [vmem:[%s2158] sm:$0x1]
        %v2161 = vlaneseq
        %v2162 = vshrl.u32 %v2161, 7
        %v2163 = vsub.s32 0, %v2162
        %v2164 = vrot.slane %v2159, %v2163
        %v2167 = vsel %vm723, %v689, 0
        %v2170 = vsel %vm723, %v2157, 0
        %2172 = vmatprep.subr.bf16.mxu0 0
        %2173 = vmatpush1.bf16.xpose.msra.mxu0 0
        %2174 = vmatprep.subr.bf16.mxu0 0
        %2175 = vmatpush1.bf16.xpose.msra.mxu0 0
        %2176 = vmatprep.subr.bf16.mxu0 0
        %2177 = vmatpush1.bf16.xpose.msra.mxu0 0
        %2178 = vmatprep.subr.bf16.mxu0 0
        %2179 = vmatpush1.bf16.xpose.msra.mxu0 0
        %2180 = vmatprep.subr.bf16.mxu0 0
        %2181 = vmatpush1.bf16.xpose.msra.mxu0 0
        %2182 = vmatprep.subr.bf16.mxu0 0
        %2183 = vmatpush1.bf16.xpose.msra.mxu0 0
        %2184 = vmatprep.subr.bf16.mxu0 0
        %2185 = vmatpush1.bf16.xpose.msra.mxu0 0
        %2186 = vmatprep.subr.bf16.mxu0 0
        %2187 = vmatpush1.bf16.xpose.msra.mxu0 %v2170
        %2188 = vmatprep.subr.bf16.mxu0 0
        %2189 = vmatpush2.bf16.xpose.msra.mxu0 0
        %2190 = vmatprep.subr.bf16.mxu0 0
        %2191 = vmatpush2.bf16.xpose.msra.mxu0 0
        %2192 = vmatprep.subr.bf16.mxu0 0
        %2193 = vmatpush2.bf16.xpose.msra.mxu0 0
        %2194 = vmatprep.subr.bf16.mxu0 0
        %2195 = vmatpush2.bf16.xpose.msra.mxu0 0
        %2196 = vmatprep.subr.bf16.mxu0 0
        %2197 = vmatpush2.bf16.xpose.msra.mxu0 0
        %2198 = vmatprep.subr.bf16.mxu0 0
        %2199 = vmatpush2.bf16.xpose.msra.mxu0 0
        %2200 = vmatprep.subr.bf16.mxu0 0
        %2201 = vmatpush2.bf16.xpose.msra.mxu0 0
        %2202 = vmatprep.subr.bf16.mxu0 0
        %2203 = vmatpush2.bf16.xpose.msra.mxu0 0
        %2204 = vmatprep.mubr.bf16.mxu0 0
        %2205 = vmatmul.mubr.bf16.gmra.mxu0 %v2167
        %v2206 = vpop.f32.mrf.mxu0
        %v2207 = vadd.f32 %v2164, %v2206
        %v2208 = vpop.f32.mrf.mxu0
        %v2209 = vpop.f32.mrf.mxu0
        %v2210 = vpop.f32.mrf.mxu0
        %2211 = vdwg.mxu0
        %s2212 = scalar_lea.vmem %s9, 32
        %v2213 = vld [vmem:[%s2212] sm:$0xf]
        %s2214 = scalar_lea.vmem %s10, 8
        %v2215 = vld [vmem:[%s2214] sm:$0x1]
        %v2217 = vlaneseq
        %v2218 = vshrl.u32 %v2217, 7
        %v2219 = vsub.s32 0, %v2218
        %v2220 = vrot.slane %v2215, %v2219
        %v2223 = vsel %vm723, %v2213, 0
        %2225 = vmatprep.subr.bf16.mxu0 0
        %2226 = vmatpush1.bf16.xpose.msra.mxu0 0
        %2227 = vmatprep.subr.bf16.mxu0 0
        %2228 = vmatpush1.bf16.xpose.msra.mxu0 0
        %2229 = vmatprep.subr.bf16.mxu0 0
        %2230 = vmatpush1.bf16.xpose.msra.mxu0 0
        %2231 = vmatprep.subr.bf16.mxu0 0
        %2232 = vmatpush1.bf16.xpose.msra.mxu0 0
        %2233 = vmatprep.subr.bf16.mxu0 0
        %2234 = vmatpush1.bf16.xpose.msra.mxu0 0
        %2235 = vmatprep.subr.bf16.mxu0 0
        %2236 = vmatpush1.bf16.xpose.msra.mxu0 0
        %2237 = vmatprep.subr.bf16.mxu0 0
        %2238 = vmatpush1.bf16.xpose.msra.mxu0 0
        %2239 = vmatprep.subr.bf16.mxu0 0
        %2240 = vmatpush1.bf16.xpose.msra.mxu0 %v2223
        %2241 = vmatprep.subr.bf16.mxu0 0
        %2242 = vmatpush2.bf16.xpose.msra.mxu0 0
        %2243 = vmatprep.subr.bf16.mxu0 0
        %2244 = vmatpush2.bf16.xpose.msra.mxu0 0
        %2245 = vmatprep.subr.bf16.mxu0 0
        %2246 = vmatpush2.bf16.xpose.msra.mxu0 0
        %2247 = vmatprep.subr.bf16.mxu0 0
        %2248 = vmatpush2.bf16.xpose.msra.mxu0 0
        %2249 = vmatprep.subr.bf16.mxu0 0
        %2250 = vmatpush2.bf16.xpose.msra.mxu0 0
        %2251 = vmatprep.subr.bf16.mxu0 0
        %2252 = vmatpush2.bf16.xpose.msra.mxu0 0
        %2253 = vmatprep.subr.bf16.mxu0 0
        %2254 = vmatpush2.bf16.xpose.msra.mxu0 0
        %2255 = vmatprep.subr.bf16.mxu0 0
        %2256 = vmatpush2.bf16.xpose.msra.mxu0 0
        %2257 = vmatprep.mubr.bf16.mxu0 0
        %2258 = vmatmul.mubr.bf16.gmra.mxu0 %v2167
        %v2259 = vpop.f32.mrf.mxu0
        %v2260 = vadd.f32 %v2220, %v2259
        %v2261 = vpop.f32.mrf.mxu0
        %v2262 = vpop.f32.mrf.mxu0
        %v2263 = vpop.f32.mrf.mxu0
        %2264 = vdwg.mxu0
        %v2265 = vpack.c.bf16 %v2151, %v2151
        %v2266 = vpack.c.bf16 %v2207, %v2207
        %v2268 = vsel %vm881, %v2265, 0
        %v2271 = vsel %vm881, %v2266, 0
        %2273 = vmatprep.subr.bf16.mxu0 0
        %2274 = vmatpush1.bf16.xpose.msra.mxu0 0
        %2275 = vmatprep.subr.bf16.mxu0 0
        %2276 = vmatpush1.bf16.xpose.msra.mxu0 0
        %2277 = vmatprep.subr.bf16.mxu0 0
        %2278 = vmatpush1.bf16.xpose.msra.mxu0 0
        %2279 = vmatprep.subr.bf16.mxu0 0
        %2280 = vmatpush1.bf16.xpose.msra.mxu0 0
        %2281 = vmatprep.subr.bf16.mxu0 0
        %2282 = vmatpush1.bf16.xpose.msra.mxu0 0
        %2283 = vmatprep.subr.bf16.mxu0 0
        %2284 = vmatpush1.bf16.xpose.msra.mxu0 0
        %2285 = vmatprep.subr.bf16.mxu0 0
        %2286 = vmatpush1.bf16.xpose.msra.mxu0 0
        %2287 = vmatprep.subr.bf16.mxu0 0
        %2288 = vmatpush1.bf16.xpose.msra.mxu0 %v2271
        %2289 = vmatprep.subr.bf16.mxu0 0
        %2290 = vmatpush2.bf16.xpose.msra.mxu0 0
        %2291 = vmatprep.subr.bf16.mxu0 0
        %2292 = vmatpush2.bf16.xpose.msra.mxu0 0
        %2293 = vmatprep.subr.bf16.mxu0 0
        %2294 = vmatpush2.bf16.xpose.msra.mxu0 0
        %2295 = vmatprep.subr.bf16.mxu0 0
        %2296 = vmatpush2.bf16.xpose.msra.mxu0 0
        %2297 = vmatprep.subr.bf16.mxu0 0
        %2298 = vmatpush2.bf16.xpose.msra.mxu0 0
        %2299 = vmatprep.subr.bf16.mxu0 0
        %2300 = vmatpush2.bf16.xpose.msra.mxu0 0
        %2301 = vmatprep.subr.bf16.mxu0 0
        %2302 = vmatpush2.bf16.xpose.msra.mxu0 0
        %2303 = vmatprep.subr.bf16.mxu0 0
        %2304 = vmatpush2.bf16.xpose.msra.mxu0 0
        %2305 = vmatprep.mubr.bf16.mxu0 0
        %2306 = vmatmul.mubr.bf16.gmra.mxu0 %v2268
        %v2307 = vpop.f32.mrf.mxu0
        %v2308 = vadd.f32 0.0, %v2307
        %v2309 = vpop.f32.mrf.mxu0
        %v2310 = vpop.f32.mrf.mxu0
        %v2311 = vpop.f32.mrf.mxu0
        %2312 = vdwg.mxu0
        %v2313 = vmul.f32 %v2308, 0.35355338
        %v2314 = vsel %vm713, %v2313, -1e+09
        %v2315 = vsel %vm881, %v2314, -inf
        %2316 = vmax.xlane.f32.xlu0 %v2315
        %v2317 = vpop.xlane.xlu0 %2316
        %v2318 = vsub.f32 %v2314, %v2317
        %v2319 = vmul.f32 %v2318, 1.442695
        %v2320 = vpow.pop %v2319
        %v2321 = vsel %vm881, %v2320, 0.0
        %2322 = vadd.xlane.f32.xlu0 %v2321
        %v2323 = vpop.xlane.xlu0 %2322
        %v2324 = vrcp.pop %v2323
        %v2325 = vmul.f32 %v2320, %v2324
        %v2326 = vpack.c.bf16 %v2325, %v2325
        %v2327 = vpack.c.bf16 %v2260, %v2260
        %v2329 = vsel %vm881, %v2326, 0
        %v2332 = vsel %vm946, %v2327, 0
        %2334 = vmatprep.subr.bf16.mxu0 0
        %2335 = vmatpush1.bf16.msra.mxu0 0
        %2336 = vmatprep.subr.bf16.mxu0 0
        %2337 = vmatpush1.bf16.msra.mxu0 0
        %2338 = vmatprep.subr.bf16.mxu0 0
        %2339 = vmatpush1.bf16.msra.mxu0 0
        %2340 = vmatprep.subr.bf16.mxu0 0
        %2341 = vmatpush1.bf16.msra.mxu0 0
        %2342 = vmatprep.subr.bf16.mxu0 0
        %2343 = vmatpush1.bf16.msra.mxu0 0
        %2344 = vmatprep.subr.bf16.mxu0 0
        %2345 = vmatpush1.bf16.msra.mxu0 0
        %2346 = vmatprep.subr.bf16.mxu0 0
        %2347 = vmatpush1.bf16.msra.mxu0 0
        %2348 = vmatprep.subr.bf16.mxu0 0
        %2349 = vmatpush1.bf16.msra.mxu0 %v2332
        %2350 = vmatprep.subr.bf16.mxu0 0
        %2351 = vmatpush2.bf16.msra.mxu0 0
        %2352 = vmatprep.subr.bf16.mxu0 0
        %2353 = vmatpush2.bf16.msra.mxu0 0
        %2354 = vmatprep.subr.bf16.mxu0 0
        %2355 = vmatpush2.bf16.msra.mxu0 0
        %2356 = vmatprep.subr.bf16.mxu0 0
        %2357 = vmatpush2.bf16.msra.mxu0 0
        %2358 = vmatprep.subr.bf16.mxu0 0
        %2359 = vmatpush2.bf16.msra.mxu0 0
        %2360 = vmatprep.subr.bf16.mxu0 0
        %2361 = vmatpush2.bf16.msra.mxu0 0
        %2362 = vmatprep.subr.bf16.mxu0 0
        %2363 = vmatpush2.bf16.msra.mxu0 0
        %2364 = vmatprep.subr.bf16.mxu0 0
        %2365 = vmatpush2.bf16.msra.mxu0 0
        %2366 = vmatprep.mubr.bf16.mxu0 0
        %2367 = vmatmul.mubr.bf16.gmra.mxu0 %v2329
        %v2368 = vpop.f32.mrf.mxu0
        %v2369 = vadd.f32 0.0, %v2368
        %v2370 = vpop.f32.mrf.mxu0
        %v2371 = vpop.f32.mrf.mxu0
        %v2372 = vpop.f32.mrf.mxu0
        %2373 = vdwg.mxu0
        %v2374 = vpack.c.bf16 %v2369, %v2369
        %v2375 = vld [vmem:[%s11] sm:$0xf]
        %v2376 = vld [vmem:[%s11 + $0x4] sm:$0xf]
        %v2377 = vld [vmem:[%s11 + $0x8] sm:$0xf]
        %v2378 = vld [vmem:[%s11 + $0xc] sm:$0xf]
        %s2379 = scalar_lea.vmem %s9, 4
        %v2380 = vld [vmem:[%s2379] sm:$0xf]
        %s2381 = scalar_lea.vmem %s10, 1
        %v2382 = vld [vmem:[%s2381] sm:$0x1]
        %v2384 = vlaneseq
        %v2385 = vshrl.u32 %v2384, 7
        %v2386 = vsub.s32 0, %v2385
        %v2387 = vrot.slane %v2382, %v2386
        %v2390 = vsel %vm723, %v2380, 0
        %2392 = vmatprep.subr.bf16.mxu0 0
        %2393 = vmatpush1.bf16.xpose.msra.mxu0 0
        %2394 = vmatprep.subr.bf16.mxu0 0
        %2395 = vmatpush1.bf16.xpose.msra.mxu0 0
        %2396 = vmatprep.subr.bf16.mxu0 0
        %2397 = vmatpush1.bf16.xpose.msra.mxu0 0
        %2398 = vmatprep.subr.bf16.mxu0 0
        %2399 = vmatpush1.bf16.xpose.msra.mxu0 0
        %2400 = vmatprep.subr.bf16.mxu0 0
        %2401 = vmatpush1.bf16.xpose.msra.mxu0 0
        %2402 = vmatprep.subr.bf16.mxu0 0
        %2403 = vmatpush1.bf16.xpose.msra.mxu0 0
        %2404 = vmatprep.subr.bf16.mxu0 0
        %2405 = vmatpush1.bf16.xpose.msra.mxu0 0
        %2406 = vmatprep.subr.bf16.mxu0 0
        %2407 = vmatpush1.bf16.xpose.msra.mxu0 %v2390
        %2408 = vmatprep.subr.bf16.mxu0 0
        %2409 = vmatpush2.bf16.xpose.msra.mxu0 0
        %2410 = vmatprep.subr.bf16.mxu0 0
        %2411 = vmatpush2.bf16.xpose.msra.mxu0 0
        %2412 = vmatprep.subr.bf16.mxu0 0
        %2413 = vmatpush2.bf16.xpose.msra.mxu0 0
        %2414 = vmatprep.subr.bf16.mxu0 0
        %2415 = vmatpush2.bf16.xpose.msra.mxu0 0
        %2416 = vmatprep.subr.bf16.mxu0 0
        %2417 = vmatpush2.bf16.xpose.msra.mxu0 0
        %2418 = vmatprep.subr.bf16.mxu0 0
        %2419 = vmatpush2.bf16.xpose.msra.mxu0 0
        %2420 = vmatprep.subr.bf16.mxu0 0
        %2421 = vmatpush2.bf16.xpose.msra.mxu0 0
        %2422 = vmatprep.subr.bf16.mxu0 0
        %2423 = vmatpush2.bf16.xpose.msra.mxu0 0
        %2424 = vmatprep.mubr.bf16.mxu0 0
        %2425 = vmatmul.mubr.bf16.gmra.mxu0 %v2111
        %v2426 = vpop.f32.mrf.mxu0
        %v2427 = vadd.f32 %v2387, %v2426
        %v2428 = vpop.f32.mrf.mxu0
        %v2429 = vpop.f32.mrf.mxu0
        %v2430 = vpop.f32.mrf.mxu0
        %2431 = vdwg.mxu0
        %s2432 = scalar_lea.vmem %s9, 20
        %v2433 = vld [vmem:[%s2432] sm:$0xf]
        %s2434 = scalar_lea.vmem %s10, 5
        %v2435 = vld [vmem:[%s2434] sm:$0x1]
        %v2437 = vlaneseq
        %v2438 = vshrl.u32 %v2437, 7
        %v2439 = vsub.s32 0, %v2438
        %v2440 = vrot.slane %v2435, %v2439
        %v2443 = vsel %vm723, %v2433, 0
        %2445 = vmatprep.subr.bf16.mxu0 0
        %2446 = vmatpush1.bf16.xpose.msra.mxu0 0
        %2447 = vmatprep.subr.bf16.mxu0 0
        %2448 = vmatpush1.bf16.xpose.msra.mxu0 0
        %2449 = vmatprep.subr.bf16.mxu0 0
        %2450 = vmatpush1.bf16.xpose.msra.mxu0 0
        %2451 = vmatprep.subr.bf16.mxu0 0
        %2452 = vmatpush1.bf16.xpose.msra.mxu0 0
        %2453 = vmatprep.subr.bf16.mxu0 0
        %2454 = vmatpush1.bf16.xpose.msra.mxu0 0
        %2455 = vmatprep.subr.bf16.mxu0 0
        %2456 = vmatpush1.bf16.xpose.msra.mxu0 0
        %2457 = vmatprep.subr.bf16.mxu0 0
        %2458 = vmatpush1.bf16.xpose.msra.mxu0 0
        %2459 = vmatprep.subr.bf16.mxu0 0
        %2460 = vmatpush1.bf16.xpose.msra.mxu0 %v2443
        %2461 = vmatprep.subr.bf16.mxu0 0
        %2462 = vmatpush2.bf16.xpose.msra.mxu0 0
        %2463 = vmatprep.subr.bf16.mxu0 0
        %2464 = vmatpush2.bf16.xpose.msra.mxu0 0
        %2465 = vmatprep.subr.bf16.mxu0 0
        %2466 = vmatpush2.bf16.xpose.msra.mxu0 0
        %2467 = vmatprep.subr.bf16.mxu0 0
        %2468 = vmatpush2.bf16.xpose.msra.mxu0 0
        %2469 = vmatprep.subr.bf16.mxu0 0
        %2470 = vmatpush2.bf16.xpose.msra.mxu0 0
        %2471 = vmatprep.subr.bf16.mxu0 0
        %2472 = vmatpush2.bf16.xpose.msra.mxu0 0
        %2473 = vmatprep.subr.bf16.mxu0 0
        %2474 = vmatpush2.bf16.xpose.msra.mxu0 0
        %2475 = vmatprep.subr.bf16.mxu0 0
        %2476 = vmatpush2.bf16.xpose.msra.mxu0 0
        %2477 = vmatprep.mubr.bf16.mxu0 0
        %2478 = vmatmul.mubr.bf16.gmra.mxu0 %v2167
        %v2479 = vpop.f32.mrf.mxu0
        %v2480 = vadd.f32 %v2440, %v2479
        %v2481 = vpop.f32.mrf.mxu0
        %v2482 = vpop.f32.mrf.mxu0
        %v2483 = vpop.f32.mrf.mxu0
        %2484 = vdwg.mxu0
        %s2485 = scalar_lea.vmem %s9, 36
        %v2486 = vld [vmem:[%s2485] sm:$0xf]
        %s2487 = scalar_lea.vmem %s10, 9
        %v2488 = vld [vmem:[%s2487] sm:$0x1]
        %v2490 = vlaneseq
        %v2491 = vshrl.u32 %v2490, 7
        %v2492 = vsub.s32 0, %v2491
        %v2493 = vrot.slane %v2488, %v2492
        %v2496 = vsel %vm723, %v2486, 0
        %2498 = vmatprep.subr.bf16.mxu0 0
        %2499 = vmatpush1.bf16.xpose.msra.mxu0 0
        %2500 = vmatprep.subr.bf16.mxu0 0
        %2501 = vmatpush1.bf16.xpose.msra.mxu0 0
        %2502 = vmatprep.subr.bf16.mxu0 0
        %2503 = vmatpush1.bf16.xpose.msra.mxu0 0
        %2504 = vmatprep.subr.bf16.mxu0 0
        %2505 = vmatpush1.bf16.xpose.msra.mxu0 0
        %2506 = vmatprep.subr.bf16.mxu0 0
        %2507 = vmatpush1.bf16.xpose.msra.mxu0 0
        %2508 = vmatprep.subr.bf16.mxu0 0
        %2509 = vmatpush1.bf16.xpose.msra.mxu0 0
        %2510 = vmatprep.subr.bf16.mxu0 0
        %2511 = vmatpush1.bf16.xpose.msra.mxu0 0
        %2512 = vmatprep.subr.bf16.mxu0 0
        %2513 = vmatpush1.bf16.xpose.msra.mxu0 %v2496
        %2514 = vmatprep.subr.bf16.mxu0 0
        %2515 = vmatpush2.bf16.xpose.msra.mxu0 0
        %2516 = vmatprep.subr.bf16.mxu0 0
        %2517 = vmatpush2.bf16.xpose.msra.mxu0 0
        %2518 = vmatprep.subr.bf16.mxu0 0
        %2519 = vmatpush2.bf16.xpose.msra.mxu0 0
        %2520 = vmatprep.subr.bf16.mxu0 0
        %2521 = vmatpush2.bf16.xpose.msra.mxu0 0
        %2522 = vmatprep.subr.bf16.mxu0 0
        %2523 = vmatpush2.bf16.xpose.msra.mxu0 0
        %2524 = vmatprep.subr.bf16.mxu0 0
        %2525 = vmatpush2.bf16.xpose.msra.mxu0 0
        %2526 = vmatprep.subr.bf16.mxu0 0
        %2527 = vmatpush2.bf16.xpose.msra.mxu0 0
        %2528 = vmatprep.subr.bf16.mxu0 0
        %2529 = vmatpush2.bf16.xpose.msra.mxu0 0
        %2530 = vmatprep.mubr.bf16.mxu0 0
        %2531 = vmatmul.mubr.bf16.gmra.mxu0 %v2167
        %v2532 = vpop.f32.mrf.mxu0
        %v2533 = vadd.f32 %v2493, %v2532
        %v2534 = vpop.f32.mrf.mxu0
        %v2535 = vpop.f32.mrf.mxu0
        %v2536 = vpop.f32.mrf.mxu0
        %2537 = vdwg.mxu0
        %v2538 = vpack.c.bf16 %v2427, %v2427
        %v2539 = vpack.c.bf16 %v2480, %v2480
        %v2541 = vsel %vm881, %v2538, 0
        %v2544 = vsel %vm881, %v2539, 0
        %2546 = vmatprep.subr.bf16.mxu0 0
        %2547 = vmatpush1.bf16.xpose.msra.mxu0 0
        %2548 = vmatprep.subr.bf16.mxu0 0
        %2549 = vmatpush1.bf16.xpose.msra.mxu0 0
        %2550 = vmatprep.subr.bf16.mxu0 0
        %2551 = vmatpush1.bf16.xpose.msra.mxu0 0
        %2552 = vmatprep.subr.bf16.mxu0 0
        %2553 = vmatpush1.bf16.xpose.msra.mxu0 0
        %2554 = vmatprep.subr.bf16.mxu0 0
        %2555 = vmatpush1.bf16.xpose.msra.mxu0 0
        %2556 = vmatprep.subr.bf16.mxu0 0
        %2557 = vmatpush1.bf16.xpose.msra.mxu0 0
        %2558 = vmatprep.subr.bf16.mxu0 0
        %2559 = vmatpush1.bf16.xpose.msra.mxu0 0
        %2560 = vmatprep.subr.bf16.mxu0 0
        %2561 = vmatpush1.bf16.xpose.msra.mxu0 %v2544
        %2562 = vmatprep.subr.bf16.mxu0 0
        %2563 = vmatpush2.bf16.xpose.msra.mxu0 0
        %2564 = vmatprep.subr.bf16.mxu0 0
        %2565 = vmatpush2.bf16.xpose.msra.mxu0 0
        %2566 = vmatprep.subr.bf16.mxu0 0
        %2567 = vmatpush2.bf16.xpose.msra.mxu0 0
        %2568 = vmatprep.subr.bf16.mxu0 0
        %2569 = vmatpush2.bf16.xpose.msra.mxu0 0
        %2570 = vmatprep.subr.bf16.mxu0 0
        %2571 = vmatpush2.bf16.xpose.msra.mxu0 0
        %2572 = vmatprep.subr.bf16.mxu0 0
        %2573 = vmatpush2.bf16.xpose.msra.mxu0 0
        %2574 = vmatprep.subr.bf16.mxu0 0
        %2575 = vmatpush2.bf16.xpose.msra.mxu0 0
        %2576 = vmatprep.subr.bf16.mxu0 0
        %2577 = vmatpush2.bf16.xpose.msra.mxu0 0
        %2578 = vmatprep.mubr.bf16.mxu0 0
        %2579 = vmatmul.mubr.bf16.gmra.mxu0 %v2541
        %v2580 = vpop.f32.mrf.mxu0
        %v2581 = vadd.f32 0.0, %v2580
        %v2582 = vpop.f32.mrf.mxu0
        %v2583 = vpop.f32.mrf.mxu0
        %v2584 = vpop.f32.mrf.mxu0
        %2585 = vdwg.mxu0
        %v2586 = vmul.f32 %v2581, 0.35355338
        %v2587 = vsel %vm713, %v2586, -1e+09
        %v2588 = vsel %vm881, %v2587, -inf
        %2589 = vmax.xlane.f32.xlu0 %v2588
        %v2590 = vpop.xlane.xlu0 %2589
        %v2591 = vsub.f32 %v2587, %v2590
        %v2592 = vmul.f32 %v2591, 1.442695
        %v2593 = vpow.pop %v2592
        %v2594 = vsel %vm881, %v2593, 0.0
        %2595 = vadd.xlane.f32.xlu0 %v2594
        %v2596 = vpop.xlane.xlu0 %2595
        %v2597 = vrcp.pop %v2596
        %v2598 = vmul.f32 %v2593, %v2597
        %v2599 = vpack.c.bf16 %v2598, %v2598
        %v2600 = vpack.c.bf16 %v2533, %v2533
        %v2602 = vsel %vm881, %v2599, 0
        %v2605 = vsel %vm946, %v2600, 0
        %2607 = vmatprep.subr.bf16.mxu0 0
        %2608 = vmatpush1.bf16.msra.mxu0 0
        %2609 = vmatprep.subr.bf16.mxu0 0
        %2610 = vmatpush1.bf16.msra.mxu0 0
        %2611 = vmatprep.subr.bf16.mxu0 0
        %2612 = vmatpush1.bf16.msra.mxu0 0
        %2613 = vmatprep.subr.bf16.mxu0 0
        %2614 = vmatpush1.bf16.msra.mxu0 0
        %2615 = vmatprep.subr.bf16.mxu0 0
        %2616 = vmatpush1.bf16.msra.mxu0 0
        %2617 = vmatprep.subr.bf16.mxu0 0
        %2618 = vmatpush1.bf16.msra.mxu0 0
        %2619 = vmatprep.subr.bf16.mxu0 0
        %2620 = vmatpush1.bf16.msra.mxu0 0
        %2621 = vmatprep.subr.bf16.mxu0 0
        %2622 = vmatpush1.bf16.msra.mxu0 %v2605
        %2623 = vmatprep.subr.bf16.mxu0 0
        %2624 = vmatpush2.bf16.msra.mxu0 0
        %2625 = vmatprep.subr.bf16.mxu0 0
        %2626 = vmatpush2.bf16.msra.mxu0 0
        %2627 = vmatprep.subr.bf16.mxu0 0
        %2628 = vmatpush2.bf16.msra.mxu0 0
        %2629 = vmatprep.subr.bf16.mxu0 0
        %2630 = vmatpush2.bf16.msra.mxu0 0
        %2631 = vmatprep.subr.bf16.mxu0 0
        %2632 = vmatpush2.bf16.msra.mxu0 0
        %2633 = vmatprep.subr.bf16.mxu0 0
        %2634 = vmatpush2.bf16.msra.mxu0 0
        %2635 = vmatprep.subr.bf16.mxu0 0
        %2636 = vmatpush2.bf16.msra.mxu0 0
        %2637 = vmatprep.subr.bf16.mxu0 0
        %2638 = vmatpush2.bf16.msra.mxu0 0
        %2639 = vmatprep.mubr.bf16.mxu0 0
        %2640 = vmatmul.mubr.bf16.gmra.mxu0 %v2602
        %v2641 = vpop.f32.mrf.mxu0
        %v2642 = vadd.f32 0.0, %v2641
        %v2643 = vpop.f32.mrf.mxu0
        %v2644 = vpop.f32.mrf.mxu0
        %v2645 = vpop.f32.mrf.mxu0
        %2646 = vdwg.mxu0
        %v2647 = vpack.c.bf16 %v2642, %v2642
        %s2648 = scalar_lea.vmem %s11, 16
        %v2649 = vld [vmem:[%s2648] sm:$0xf]
        %v2650 = vld [vmem:[%s2648 + $0x4] sm:$0xf]
        %v2651 = vld [vmem:[%s2648 + $0x8] sm:$0xf]
        %v2652 = vld [vmem:[%s2648 + $0xc] sm:$0xf]
        %v2657 = vunpack.c.l.b16 %v2649
        %v2658 = vunpack.c.l.b16 %v2650
        %v2659 = vunpack.c.l.b16 %v2651
        %v2660 = vunpack.c.l.b16 %v2652
        %v2661 = vpack.c.b16 %v2658, %v2657
        %v2662 = vpack.c.b16 %v2660, %v2659
        %v2664 = vsel %vm881, %v2647, 0
        %v2667 = vsel %vm881, %v2661, 0
        %v2670 = vsel %vm881, %v2662, 0
        %2672 = vmatprep.subr.bf16.mxu0 0
        %2673 = vmatpush1.bf16.xpose.msra.mxu0 0
        %2674 = vmatprep.subr.bf16.mxu0 0
        %2675 = vmatpush1.bf16.xpose.msra.mxu0 0
        %2676 = vmatprep.subr.bf16.mxu0 0
        %2677 = vmatpush1.bf16.xpose.msra.mxu0 0
        %2678 = vmatprep.subr.bf16.mxu0 0
        %2679 = vmatpush1.bf16.xpose.msra.mxu0 0
        %2680 = vmatprep.subr.bf16.mxu0 0
        %2681 = vmatpush1.bf16.xpose.msra.mxu0 0
        %2682 = vmatprep.subr.bf16.mxu0 0
        %2683 = vmatpush1.bf16.xpose.msra.mxu0 0
        %2684 = vmatprep.subr.bf16.mxu0 0
        %2685 = vmatpush1.bf16.xpose.msra.mxu0 %v2670
        %2686 = vmatprep.subr.bf16.mxu0 0
        %2687 = vmatpush1.bf16.xpose.msra.mxu0 %v2667
        %2688 = vmatprep.subr.bf16.mxu0 0
        %2689 = vmatpush2.bf16.xpose.msra.mxu0 0
        %2690 = vmatprep.subr.bf16.mxu0 0
        %2691 = vmatpush2.bf16.xpose.msra.mxu0 0
        %2692 = vmatprep.subr.bf16.mxu0 0
        %2693 = vmatpush2.bf16.xpose.msra.mxu0 0
        %2694 = vmatprep.subr.bf16.mxu0 0
        %2695 = vmatpush2.bf16.xpose.msra.mxu0 0
        %2696 = vmatprep.subr.bf16.mxu0 0
        %2697 = vmatpush2.bf16.xpose.msra.mxu0 0
        %2698 = vmatprep.subr.bf16.mxu0 0
        %2699 = vmatpush2.bf16.xpose.msra.mxu0 0
        %2700 = vmatprep.subr.bf16.mxu0 0
        %2701 = vmatpush2.bf16.xpose.msra.mxu0 0
        %2702 = vmatprep.subr.bf16.mxu0 0
        %2703 = vmatpush2.bf16.xpose.msra.mxu0 0
        %2704 = vmatprep.mubr.bf16.mxu0 0
        %2705 = vmatmul.mubr.bf16.gmra.mxu0 %v2664
        %v2706 = vpop.f32.mrf.mxu0
        %v2707 = vadd.f32 0.0, %v2706
        %v2708 = vpop.f32.mrf.mxu0
        %v2709 = vpop.f32.mrf.mxu0
        %v2710 = vpop.f32.mrf.mxu0
        %2711 = vdwg.mxu0
        %v2716 = vunpack.c.l.b16 %v2375
        %v2717 = vunpack.c.l.b16 %v2376
        %v2718 = vunpack.c.l.b16 %v2377
        %v2719 = vunpack.c.l.b16 %v2378
        %v2720 = vpack.c.b16 %v2717, %v2716
        %v2721 = vpack.c.b16 %v2719, %v2718
        %v2723 = vsel %vm881, %v2374, 0
        %v2726 = vsel %vm881, %v2720, 0
        %v2729 = vsel %vm881, %v2721, 0
        %2731 = vmatprep.subr.bf16.mxu0 0
        %2732 = vmatpush1.bf16.xpose.msra.mxu0 0
        %2733 = vmatprep.subr.bf16.mxu0 0
        %2734 = vmatpush1.bf16.xpose.msra.mxu0 0
        %2735 = vmatprep.subr.bf16.mxu0 0
        %2736 = vmatpush1.bf16.xpose.msra.mxu0 0
        %2737 = vmatprep.subr.bf16.mxu0 0
        %2738 = vmatpush1.bf16.xpose.msra.mxu0 0
        %2739 = vmatprep.subr.bf16.mxu0 0
        %2740 = vmatpush1.bf16.xpose.msra.mxu0 0
        %2741 = vmatprep.subr.bf16.mxu0 0
        %2742 = vmatpush1.bf16.xpose.msra.mxu0 0
        %2743 = vmatprep.subr.bf16.mxu0 0
        %2744 = vmatpush1.bf16.xpose.msra.mxu0 %v2729
        %2745 = vmatprep.subr.bf16.mxu0 0
        %2746 = vmatpush1.bf16.xpose.msra.mxu0 %v2726
        %2747 = vmatprep.subr.bf16.mxu0 0
        %2748 = vmatpush2.bf16.xpose.msra.mxu0 0
        %2749 = vmatprep.subr.bf16.mxu0 0
        %2750 = vmatpush2.bf16.xpose.msra.mxu0 0
        %2751 = vmatprep.subr.bf16.mxu0 0
        %2752 = vmatpush2.bf16.xpose.msra.mxu0 0
        %2753 = vmatprep.subr.bf16.mxu0 0
        %2754 = vmatpush2.bf16.xpose.msra.mxu0 0
        %2755 = vmatprep.subr.bf16.mxu0 0
        %2756 = vmatpush2.bf16.xpose.msra.mxu0 0
        %2757 = vmatprep.subr.bf16.mxu0 0
        %2758 = vmatpush2.bf16.xpose.msra.mxu0 0
        %2759 = vmatprep.subr.bf16.mxu0 0
        %2760 = vmatpush2.bf16.xpose.msra.mxu0 0
        %2761 = vmatprep.subr.bf16.mxu0 0
        %2762 = vmatpush2.bf16.xpose.msra.mxu0 0
        %2763 = vmatprep.mubr.bf16.mxu0 0
        %2764 = vmatmul.mubr.bf16.gmra.mxu0 %v2723
        %v2765 = vpop.f32.mrf.mxu0
        %v2766 = vadd.f32 %v2707, %v2765
        %v2767 = vpop.f32.mrf.mxu0
        %v2768 = vpop.f32.mrf.mxu0
        %v2769 = vpop.f32.mrf.mxu0
        %2770 = vdwg.mxu0
        %s2771 = scalar_lea.vmem %s9, 8
        %v2772 = vld [vmem:[%s2771] sm:$0xf]
        %s2773 = scalar_lea.vmem %s10, 2
        %v2774 = vld [vmem:[%s2773] sm:$0x1]
        %v2776 = vlaneseq
        %v2777 = vshrl.u32 %v2776, 7
        %v2778 = vsub.s32 0, %v2777
        %v2779 = vrot.slane %v2774, %v2778
        %v2782 = vsel %vm723, %v2772, 0
        %2784 = vmatprep.subr.bf16.mxu0 0
        %2785 = vmatpush1.bf16.xpose.msra.mxu0 0
        %2786 = vmatprep.subr.bf16.mxu0 0
        %2787 = vmatpush1.bf16.xpose.msra.mxu0 0
        %2788 = vmatprep.subr.bf16.mxu0 0
        %2789 = vmatpush1.bf16.xpose.msra.mxu0 0
        %2790 = vmatprep.subr.bf16.mxu0 0
        %2791 = vmatpush1.bf16.xpose.msra.mxu0 0
        %2792 = vmatprep.subr.bf16.mxu0 0
        %2793 = vmatpush1.bf16.xpose.msra.mxu0 0
        %2794 = vmatprep.subr.bf16.mxu0 0
        %2795 = vmatpush1.bf16.xpose.msra.mxu0 0
        %2796 = vmatprep.subr.bf16.mxu0 0
        %2797 = vmatpush1.bf16.xpose.msra.mxu0 0
        %2798 = vmatprep.subr.bf16.mxu0 0
        %2799 = vmatpush1.bf16.xpose.msra.mxu0 %v2782
        %2800 = vmatprep.subr.bf16.mxu0 0
        %2801 = vmatpush2.bf16.xpose.msra.mxu0 0
        %2802 = vmatprep.subr.bf16.mxu0 0
        %2803 = vmatpush2.bf16.xpose.msra.mxu0 0
        %2804 = vmatprep.subr.bf16.mxu0 0
        %2805 = vmatpush2.bf16.xpose.msra.mxu0 0
        %2806 = vmatprep.subr.bf16.mxu0 0
        %2807 = vmatpush2.bf16.xpose.msra.mxu0 0
        %2808 = vmatprep.subr.bf16.mxu0 0
        %2809 = vmatpush2.bf16.xpose.msra.mxu0 0
        %2810 = vmatprep.subr.bf16.mxu0 0
        %2811 = vmatpush2.bf16.xpose.msra.mxu0 0
        %2812 = vmatprep.subr.bf16.mxu0 0
        %2813 = vmatpush2.bf16.xpose.msra.mxu0 0
        %2814 = vmatprep.subr.bf16.mxu0 0
        %2815 = vmatpush2.bf16.xpose.msra.mxu0 0
        %2816 = vmatprep.mubr.bf16.mxu0 0
        %2817 = vmatmul.mubr.bf16.gmra.mxu0 %v2111
        %v2818 = vpop.f32.mrf.mxu0
        %v2819 = vadd.f32 %v2779, %v2818
        %v2820 = vpop.f32.mrf.mxu0
        %v2821 = vpop.f32.mrf.mxu0
        %v2822 = vpop.f32.mrf.mxu0
        %2823 = vdwg.mxu0
        %s2824 = scalar_lea.vmem %s9, 24
        %v2825 = vld [vmem:[%s2824] sm:$0xf]
        %s2826 = scalar_lea.vmem %s10, 6
        %v2827 = vld [vmem:[%s2826] sm:$0x1]
        %v2829 = vlaneseq
        %v2830 = vshrl.u32 %v2829, 7
        %v2831 = vsub.s32 0, %v2830
        %v2832 = vrot.slane %v2827, %v2831
        %v2835 = vsel %vm723, %v2825, 0
        %2837 = vmatprep.subr.bf16.mxu0 0
        %2838 = vmatpush1.bf16.xpose.msra.mxu0 0
        %2839 = vmatprep.subr.bf16.mxu0 0
        %2840 = vmatpush1.bf16.xpose.msra.mxu0 0
        %2841 = vmatprep.subr.bf16.mxu0 0
        %2842 = vmatpush1.bf16.xpose.msra.mxu0 0
        %2843 = vmatprep.subr.bf16.mxu0 0
        %2844 = vmatpush1.bf16.xpose.msra.mxu0 0
        %2845 = vmatprep.subr.bf16.mxu0 0
        %2846 = vmatpush1.bf16.xpose.msra.mxu0 0
        %2847 = vmatprep.subr.bf16.mxu0 0
        %2848 = vmatpush1.bf16.xpose.msra.mxu0 0
        %2849 = vmatprep.subr.bf16.mxu0 0
        %2850 = vmatpush1.bf16.xpose.msra.mxu0 0
        %2851 = vmatprep.subr.bf16.mxu0 0
        %2852 = vmatpush1.bf16.xpose.msra.mxu0 %v2835
        %2853 = vmatprep.subr.bf16.mxu0 0
        %2854 = vmatpush2.bf16.xpose.msra.mxu0 0
        %2855 = vmatprep.subr.bf16.mxu0 0
        %2856 = vmatpush2.bf16.xpose.msra.mxu0 0
        %2857 = vmatprep.subr.bf16.mxu0 0
        %2858 = vmatpush2.bf16.xpose.msra.mxu0 0
        %2859 = vmatprep.subr.bf16.mxu0 0
        %2860 = vmatpush2.bf16.xpose.msra.mxu0 0
        %2861 = vmatprep.subr.bf16.mxu0 0
        %2862 = vmatpush2.bf16.xpose.msra.mxu0 0
        %2863 = vmatprep.subr.bf16.mxu0 0
        %2864 = vmatpush2.bf16.xpose.msra.mxu0 0
        %2865 = vmatprep.subr.bf16.mxu0 0
        %2866 = vmatpush2.bf16.xpose.msra.mxu0 0
        %2867 = vmatprep.subr.bf16.mxu0 0
        %2868 = vmatpush2.bf16.xpose.msra.mxu0 0
        %2869 = vmatprep.mubr.bf16.mxu0 0
        %2870 = vmatmul.mubr.bf16.gmra.mxu0 %v2167
        %v2871 = vpop.f32.mrf.mxu0
        %v2872 = vadd.f32 %v2832, %v2871
        %v2873 = vpop.f32.mrf.mxu0
        %v2874 = vpop.f32.mrf.mxu0
        %v2875 = vpop.f32.mrf.mxu0
        %2876 = vdwg.mxu0
        %s2877 = scalar_lea.vmem %s9, 40
        %v2878 = vld [vmem:[%s2877] sm:$0xf]
        %s2879 = scalar_lea.vmem %s10, 10
        %v2880 = vld [vmem:[%s2879] sm:$0x1]
        %v2882 = vlaneseq
        %v2883 = vshrl.u32 %v2882, 7
        %v2884 = vsub.s32 0, %v2883
        %v2885 = vrot.slane %v2880, %v2884
        %v2888 = vsel %vm723, %v2878, 0
        %2890 = vmatprep.subr.bf16.mxu0 0
        %2891 = vmatpush1.bf16.xpose.msra.mxu0 0
        %2892 = vmatprep.subr.bf16.mxu0 0
        %2893 = vmatpush1.bf16.xpose.msra.mxu0 0
        %2894 = vmatprep.subr.bf16.mxu0 0
        %2895 = vmatpush1.bf16.xpose.msra.mxu0 0
        %2896 = vmatprep.subr.bf16.mxu0 0
        %2897 = vmatpush1.bf16.xpose.msra.mxu0 0
        %2898 = vmatprep.subr.bf16.mxu0 0
        %2899 = vmatpush1.bf16.xpose.msra.mxu0 0
        %2900 = vmatprep.subr.bf16.mxu0 0
        %2901 = vmatpush1.bf16.xpose.msra.mxu0 0
        %2902 = vmatprep.subr.bf16.mxu0 0
        %2903 = vmatpush1.bf16.xpose.msra.mxu0 0
        %2904 = vmatprep.subr.bf16.mxu0 0
        %2905 = vmatpush1.bf16.xpose.msra.mxu0 %v2888
        %2906 = vmatprep.subr.bf16.mxu0 0
        %2907 = vmatpush2.bf16.xpose.msra.mxu0 0
        %2908 = vmatprep.subr.bf16.mxu0 0
        %2909 = vmatpush2.bf16.xpose.msra.mxu0 0
        %2910 = vmatprep.subr.bf16.mxu0 0
        %2911 = vmatpush2.bf16.xpose.msra.mxu0 0
        %2912 = vmatprep.subr.bf16.mxu0 0
        %2913 = vmatpush2.bf16.xpose.msra.mxu0 0
        %2914 = vmatprep.subr.bf16.mxu0 0
        %2915 = vmatpush2.bf16.xpose.msra.mxu0 0
        %2916 = vmatprep.subr.bf16.mxu0 0
        %2917 = vmatpush2.bf16.xpose.msra.mxu0 0
        %2918 = vmatprep.subr.bf16.mxu0 0
        %2919 = vmatpush2.bf16.xpose.msra.mxu0 0
        %2920 = vmatprep.subr.bf16.mxu0 0
        %2921 = vmatpush2.bf16.xpose.msra.mxu0 0
        %2922 = vmatprep.mubr.bf16.mxu0 0
        %2923 = vmatmul.mubr.bf16.gmra.mxu0 %v2167
        %v2924 = vpop.f32.mrf.mxu0
        %v2925 = vadd.f32 %v2885, %v2924
        %v2926 = vpop.f32.mrf.mxu0
        %v2927 = vpop.f32.mrf.mxu0
        %v2928 = vpop.f32.mrf.mxu0
        %2929 = vdwg.mxu0
        %v2930 = vpack.c.bf16 %v2819, %v2819
        %v2931 = vpack.c.bf16 %v2872, %v2872
        %v2933 = vsel %vm881, %v2930, 0
        %v2936 = vsel %vm881, %v2931, 0
        %2938 = vmatprep.subr.bf16.mxu0 0
        %2939 = vmatpush1.bf16.xpose.msra.mxu0 0
        %2940 = vmatprep.subr.bf16.mxu0 0
        %2941 = vmatpush1.bf16.xpose.msra.mxu0 0
        %2942 = vmatprep.subr.bf16.mxu0 0
        %2943 = vmatpush1.bf16.xpose.msra.mxu0 0
        %2944 = vmatprep.subr.bf16.mxu0 0
        %2945 = vmatpush1.bf16.xpose.msra.mxu0 0
        %2946 = vmatprep.subr.bf16.mxu0 0
        %2947 = vmatpush1.bf16.xpose.msra.mxu0 0
        %2948 = vmatprep.subr.bf16.mxu0 0
        %2949 = vmatpush1.bf16.xpose.msra.mxu0 0
        %2950 = vmatprep.subr.bf16.mxu0 0
        %2951 = vmatpush1.bf16.xpose.msra.mxu0 0
        %2952 = vmatprep.subr.bf16.mxu0 0
        %2953 = vmatpush1.bf16.xpose.msra.mxu0 %v2936
        %2954 = vmatprep.subr.bf16.mxu0 0
        %2955 = vmatpush2.bf16.xpose.msra.mxu0 0
        %2956 = vmatprep.subr.bf16.mxu0 0
        %2957 = vmatpush2.bf16.xpose.msra.mxu0 0
        %2958 = vmatprep.subr.bf16.mxu0 0
        %2959 = vmatpush2.bf16.xpose.msra.mxu0 0
        %2960 = vmatprep.subr.bf16.mxu0 0
        %2961 = vmatpush2.bf16.xpose.msra.mxu0 0
        %2962 = vmatprep.subr.bf16.mxu0 0
        %2963 = vmatpush2.bf16.xpose.msra.mxu0 0
        %2964 = vmatprep.subr.bf16.mxu0 0
        %2965 = vmatpush2.bf16.xpose.msra.mxu0 0
        %2966 = vmatprep.subr.bf16.mxu0 0
        %2967 = vmatpush2.bf16.xpose.msra.mxu0 0
        %2968 = vmatprep.subr.bf16.mxu0 0
        %2969 = vmatpush2.bf16.xpose.msra.mxu0 0
        %2970 = vmatprep.mubr.bf16.mxu0 0
        %2971 = vmatmul.mubr.bf16.gmra.mxu0 %v2933
        %v2972 = vpop.f32.mrf.mxu0
        %v2973 = vadd.f32 0.0, %v2972
        %v2974 = vpop.f32.mrf.mxu0
        %v2975 = vpop.f32.mrf.mxu0
        %v2976 = vpop.f32.mrf.mxu0
        %2977 = vdwg.mxu0
        %v2978 = vmul.f32 %v2973, 0.35355338
        %v2979 = vsel %vm713, %v2978, -1e+09
        %v2980 = vsel %vm881, %v2979, -inf
        %2981 = vmax.xlane.f32.xlu0 %v2980
        %v2982 = vpop.xlane.xlu0 %2981
        %v2983 = vsub.f32 %v2979, %v2982
        %v2984 = vmul.f32 %v2983, 1.442695
        %v2985 = vpow.pop %v2984
        %v2986 = vsel %vm881, %v2985, 0.0
        %2987 = vadd.xlane.f32.xlu0 %v2986
        %v2988 = vpop.xlane.xlu0 %2987
        %v2989 = vrcp.pop %v2988
        %v2990 = vmul.f32 %v2985, %v2989
        %v2991 = vpack.c.bf16 %v2990, %v2990
        %v2992 = vpack.c.bf16 %v2925, %v2925
        %v2994 = vsel %vm881, %v2991, 0
        %v2997 = vsel %vm946, %v2992, 0
        %2999 = vmatprep.subr.bf16.mxu0 0
        %3000 = vmatpush1.bf16.msra.mxu0 0
        %3001 = vmatprep.subr.bf16.mxu0 0
        %3002 = vmatpush1.bf16.msra.mxu0 0
        %3003 = vmatprep.subr.bf16.mxu0 0
        %3004 = vmatpush1.bf16.msra.mxu0 0
        %3005 = vmatprep.subr.bf16.mxu0 0
        %3006 = vmatpush1.bf16.msra.mxu0 0
        %3007 = vmatprep.subr.bf16.mxu0 0
        %3008 = vmatpush1.bf16.msra.mxu0 0
        %3009 = vmatprep.subr.bf16.mxu0 0
        %3010 = vmatpush1.bf16.msra.mxu0 0
        %3011 = vmatprep.subr.bf16.mxu0 0
        %3012 = vmatpush1.bf16.msra.mxu0 0
        %3013 = vmatprep.subr.bf16.mxu0 0
        %3014 = vmatpush1.bf16.msra.mxu0 %v2997
        %3015 = vmatprep.subr.bf16.mxu0 0
        %3016 = vmatpush2.bf16.msra.mxu0 0
        %3017 = vmatprep.subr.bf16.mxu0 0
        %3018 = vmatpush2.bf16.msra.mxu0 0
        %3019 = vmatprep.subr.bf16.mxu0 0
        %3020 = vmatpush2.bf16.msra.mxu0 0
        %3021 = vmatprep.subr.bf16.mxu0 0
        %3022 = vmatpush2.bf16.msra.mxu0 0
        %3023 = vmatprep.subr.bf16.mxu0 0
        %3024 = vmatpush2.bf16.msra.mxu0 0
        %3025 = vmatprep.subr.bf16.mxu0 0
        %3026 = vmatpush2.bf16.msra.mxu0 0
        %3027 = vmatprep.subr.bf16.mxu0 0
        %3028 = vmatpush2.bf16.msra.mxu0 0
        %3029 = vmatprep.subr.bf16.mxu0 0
        %3030 = vmatpush2.bf16.msra.mxu0 0
        %3031 = vmatprep.mubr.bf16.mxu0 0
        %3032 = vmatmul.mubr.bf16.gmra.mxu0 %v2994
        %v3033 = vpop.f32.mrf.mxu0
        %v3034 = vadd.f32 0.0, %v3033
        %v3035 = vpop.f32.mrf.mxu0
        %v3036 = vpop.f32.mrf.mxu0
        %v3037 = vpop.f32.mrf.mxu0
        %3038 = vdwg.mxu0
        %v3039 = vpack.c.bf16 %v3034, %v3034
        %s3040 = scalar_lea.vmem %s11, 32
        %v3041 = vld [vmem:[%s3040] sm:$0xf]
        %v3042 = vld [vmem:[%s3040 + $0x4] sm:$0xf]
        %v3043 = vld [vmem:[%s3040 + $0x8] sm:$0xf]
        %v3044 = vld [vmem:[%s3040 + $0xc] sm:$0xf]
        %v3049 = vunpack.c.l.b16 %v3041
        %v3050 = vunpack.c.l.b16 %v3042
        %v3051 = vunpack.c.l.b16 %v3043
        %v3052 = vunpack.c.l.b16 %v3044
        %v3053 = vpack.c.b16 %v3050, %v3049
        %v3054 = vpack.c.b16 %v3052, %v3051
        %v3056 = vsel %vm881, %v3039, 0
        %v3059 = vsel %vm881, %v3053, 0
        %v3062 = vsel %vm881, %v3054, 0
        %3064 = vmatprep.subr.bf16.mxu0 0
        %3065 = vmatpush1.bf16.xpose.msra.mxu0 0
        %3066 = vmatprep.subr.bf16.mxu0 0
        %3067 = vmatpush1.bf16.xpose.msra.mxu0 0
        %3068 = vmatprep.subr.bf16.mxu0 0
        %3069 = vmatpush1.bf16.xpose.msra.mxu0 0
        %3070 = vmatprep.subr.bf16.mxu0 0
        %3071 = vmatpush1.bf16.xpose.msra.mxu0 0
        %3072 = vmatprep.subr.bf16.mxu0 0
        %3073 = vmatpush1.bf16.xpose.msra.mxu0 0
        %3074 = vmatprep.subr.bf16.mxu0 0
        %3075 = vmatpush1.bf16.xpose.msra.mxu0 0
        %3076 = vmatprep.subr.bf16.mxu0 0
        %3077 = vmatpush1.bf16.xpose.msra.mxu0 %v3062
        %3078 = vmatprep.subr.bf16.mxu0 0
        %3079 = vmatpush1.bf16.xpose.msra.mxu0 %v3059
        %3080 = vmatprep.subr.bf16.mxu0 0
        %3081 = vmatpush2.bf16.xpose.msra.mxu0 0
        %3082 = vmatprep.subr.bf16.mxu0 0
        %3083 = vmatpush2.bf16.xpose.msra.mxu0 0
        %3084 = vmatprep.subr.bf16.mxu0 0
        %3085 = vmatpush2.bf16.xpose.msra.mxu0 0
        %3086 = vmatprep.subr.bf16.mxu0 0
        %3087 = vmatpush2.bf16.xpose.msra.mxu0 0
        %3088 = vmatprep.subr.bf16.mxu0 0
        %3089 = vmatpush2.bf16.xpose.msra.mxu0 0
        %3090 = vmatprep.subr.bf16.mxu0 0
        %3091 = vmatpush2.bf16.xpose.msra.mxu0 0
        %3092 = vmatprep.subr.bf16.mxu0 0
        %3093 = vmatpush2.bf16.xpose.msra.mxu0 0
        %3094 = vmatprep.subr.bf16.mxu0 0
        %3095 = vmatpush2.bf16.xpose.msra.mxu0 0
        %3096 = vmatprep.mubr.bf16.mxu0 0
        %3097 = vmatmul.mubr.bf16.gmra.mxu0 %v3056
        %v3098 = vpop.f32.mrf.mxu0
        %v3099 = vadd.f32 0.0, %v3098
        %v3100 = vpop.f32.mrf.mxu0
        %v3101 = vpop.f32.mrf.mxu0
        %v3102 = vpop.f32.mrf.mxu0
        %3103 = vdwg.mxu0
        %v3104 = vadd.f32 %v2766, %v3099
        %s3105 = scalar_lea.vmem %s9, 12
        %v3106 = vld [vmem:[%s3105] sm:$0xf]
        %s3107 = scalar_lea.vmem %s10, 3
        %v3108 = vld [vmem:[%s3107] sm:$0x1]
        %v3110 = vlaneseq
        %v3111 = vshrl.u32 %v3110, 7
        %v3112 = vsub.s32 0, %v3111
        %v3113 = vrot.slane %v3108, %v3112
        %v3116 = vsel %vm723, %v3106, 0
        %3118 = vmatprep.subr.bf16.mxu0 0
        %3119 = vmatpush1.bf16.xpose.msra.mxu0 0
        %3120 = vmatprep.subr.bf16.mxu0 0
        %3121 = vmatpush1.bf16.xpose.msra.mxu0 0
        %3122 = vmatprep.subr.bf16.mxu0 0
        %3123 = vmatpush1.bf16.xpose.msra.mxu0 0
        %3124 = vmatprep.subr.bf16.mxu0 0
        %3125 = vmatpush1.bf16.xpose.msra.mxu0 0
        %3126 = vmatprep.subr.bf16.mxu0 0
        %3127 = vmatpush1.bf16.xpose.msra.mxu0 0
        %3128 = vmatprep.subr.bf16.mxu0 0
        %3129 = vmatpush1.bf16.xpose.msra.mxu0 0
        %3130 = vmatprep.subr.bf16.mxu0 0
        %3131 = vmatpush1.bf16.xpose.msra.mxu0 0
        %3132 = vmatprep.subr.bf16.mxu0 0
        %3133 = vmatpush1.bf16.xpose.msra.mxu0 %v3116
        %3134 = vmatprep.subr.bf16.mxu0 0
        %3135 = vmatpush2.bf16.xpose.msra.mxu0 0
        %3136 = vmatprep.subr.bf16.mxu0 0
        %3137 = vmatpush2.bf16.xpose.msra.mxu0 0
        %3138 = vmatprep.subr.bf16.mxu0 0
        %3139 = vmatpush2.bf16.xpose.msra.mxu0 0
        %3140 = vmatprep.subr.bf16.mxu0 0
        %3141 = vmatpush2.bf16.xpose.msra.mxu0 0
        %3142 = vmatprep.subr.bf16.mxu0 0
        %3143 = vmatpush2.bf16.xpose.msra.mxu0 0
        %3144 = vmatprep.subr.bf16.mxu0 0
        %3145 = vmatpush2.bf16.xpose.msra.mxu0 0
        %3146 = vmatprep.subr.bf16.mxu0 0
        %3147 = vmatpush2.bf16.xpose.msra.mxu0 0
        %3148 = vmatprep.subr.bf16.mxu0 0
        %3149 = vmatpush2.bf16.xpose.msra.mxu0 0
        %3150 = vmatprep.mubr.bf16.mxu0 0
        %3151 = vmatmul.mubr.bf16.gmra.mxu0 %v2111
        %v3152 = vpop.f32.mrf.mxu0
        %v3153 = vadd.f32 %v3113, %v3152
        %v3154 = vpop.f32.mrf.mxu0
        %v3155 = vpop.f32.mrf.mxu0
        %v3156 = vpop.f32.mrf.mxu0
        %3157 = vdwg.mxu0
        %s3158 = scalar_lea.vmem %s9, 28
        %v3159 = vld [vmem:[%s3158] sm:$0xf]
        %s3160 = scalar_lea.vmem %s10, 7
        %v3161 = vld [vmem:[%s3160] sm:$0x1]
        %v3163 = vlaneseq
        %v3164 = vshrl.u32 %v3163, 7
        %v3165 = vsub.s32 0, %v3164
        %v3166 = vrot.slane %v3161, %v3165
        %v3169 = vsel %vm723, %v3159, 0
        %3171 = vmatprep.subr.bf16.mxu0 0
        %3172 = vmatpush1.bf16.xpose.msra.mxu0 0
        %3173 = vmatprep.subr.bf16.mxu0 0
        %3174 = vmatpush1.bf16.xpose.msra.mxu0 0
        %3175 = vmatprep.subr.bf16.mxu0 0
        %3176 = vmatpush1.bf16.xpose.msra.mxu0 0
        %3177 = vmatprep.subr.bf16.mxu0 0
        %3178 = vmatpush1.bf16.xpose.msra.mxu0 0
        %3179 = vmatprep.subr.bf16.mxu0 0
        %3180 = vmatpush1.bf16.xpose.msra.mxu0 0
        %3181 = vmatprep.subr.bf16.mxu0 0
        %3182 = vmatpush1.bf16.xpose.msra.mxu0 0
        %3183 = vmatprep.subr.bf16.mxu0 0
        %3184 = vmatpush1.bf16.xpose.msra.mxu0 0
        %3185 = vmatprep.subr.bf16.mxu0 0
        %3186 = vmatpush1.bf16.xpose.msra.mxu0 %v3169
        %3187 = vmatprep.subr.bf16.mxu0 0
        %3188 = vmatpush2.bf16.xpose.msra.mxu0 0
        %3189 = vmatprep.subr.bf16.mxu0 0
        %3190 = vmatpush2.bf16.xpose.msra.mxu0 0
        %3191 = vmatprep.subr.bf16.mxu0 0
        %3192 = vmatpush2.bf16.xpose.msra.mxu0 0
        %3193 = vmatprep.subr.bf16.mxu0 0
        %3194 = vmatpush2.bf16.xpose.msra.mxu0 0
        %3195 = vmatprep.subr.bf16.mxu0 0
        %3196 = vmatpush2.bf16.xpose.msra.mxu0 0
        %3197 = vmatprep.subr.bf16.mxu0 0
        %3198 = vmatpush2.bf16.xpose.msra.mxu0 0
        %3199 = vmatprep.subr.bf16.mxu0 0
        %3200 = vmatpush2.bf16.xpose.msra.mxu0 0
        %3201 = vmatprep.subr.bf16.mxu0 0
        %3202 = vmatpush2.bf16.xpose.msra.mxu0 0
        %3203 = vmatprep.mubr.bf16.mxu0 0
        %3204 = vmatmul.mubr.bf16.gmra.mxu0 %v2167
        %v3205 = vpop.f32.mrf.mxu0
        %v3206 = vadd.f32 %v3166, %v3205
        %v3207 = vpop.f32.mrf.mxu0
        %v3208 = vpop.f32.mrf.mxu0
        %v3209 = vpop.f32.mrf.mxu0
        %3210 = vdwg.mxu0
        %s3211 = scalar_lea.vmem %s9, 44
        %v3212 = vld [vmem:[%s3211] sm:$0xf]
        %s3213 = scalar_lea.vmem %s10, 11
        %v3214 = vld [vmem:[%s3213] sm:$0x1]
        %v3216 = vlaneseq
        %v3217 = vshrl.u32 %v3216, 7
        %v3218 = vsub.s32 0, %v3217
        %v3219 = vrot.slane %v3214, %v3218
        %v3222 = vsel %vm723, %v3212, 0
        %3224 = vmatprep.subr.bf16.mxu0 0
        %3225 = vmatpush1.bf16.xpose.msra.mxu0 0
        %3226 = vmatprep.subr.bf16.mxu0 0
        %3227 = vmatpush1.bf16.xpose.msra.mxu0 0
        %3228 = vmatprep.subr.bf16.mxu0 0
        %3229 = vmatpush1.bf16.xpose.msra.mxu0 0
        %3230 = vmatprep.subr.bf16.mxu0 0
        %3231 = vmatpush1.bf16.xpose.msra.mxu0 0
        %3232 = vmatprep.subr.bf16.mxu0 0
        %3233 = vmatpush1.bf16.xpose.msra.mxu0 0
        %3234 = vmatprep.subr.bf16.mxu0 0
        %3235 = vmatpush1.bf16.xpose.msra.mxu0 0
        %3236 = vmatprep.subr.bf16.mxu0 0
        %3237 = vmatpush1.bf16.xpose.msra.mxu0 0
        %3238 = vmatprep.subr.bf16.mxu0 0
        %3239 = vmatpush1.bf16.xpose.msra.mxu0 %v3222
        %3240 = vmatprep.subr.bf16.mxu0 0
        %3241 = vmatpush2.bf16.xpose.msra.mxu0 0
        %3242 = vmatprep.subr.bf16.mxu0 0
        %3243 = vmatpush2.bf16.xpose.msra.mxu0 0
        %3244 = vmatprep.subr.bf16.mxu0 0
        %3245 = vmatpush2.bf16.xpose.msra.mxu0 0
        %3246 = vmatprep.subr.bf16.mxu0 0
        %3247 = vmatpush2.bf16.xpose.msra.mxu0 0
        %3248 = vmatprep.subr.bf16.mxu0 0
        %3249 = vmatpush2.bf16.xpose.msra.mxu0 0
        %3250 = vmatprep.subr.bf16.mxu0 0
        %3251 = vmatpush2.bf16.xpose.msra.mxu0 0
        %3252 = vmatprep.subr.bf16.mxu0 0
        %3253 = vmatpush2.bf16.xpose.msra.mxu0 0
        %3254 = vmatprep.subr.bf16.mxu0 0
        %3255 = vmatpush2.bf16.xpose.msra.mxu0 0
        %3256 = vmatprep.mubr.bf16.mxu0 0
        %3257 = vmatmul.mubr.bf16.gmra.mxu0 %v2167
        %v3258 = vpop.f32.mrf.mxu0
        %v3259 = vadd.f32 %v3219, %v3258
        %v3260 = vpop.f32.mrf.mxu0
        %v3261 = vpop.f32.mrf.mxu0
        %v3262 = vpop.f32.mrf.mxu0
        %3263 = vdwg.mxu0
        %v3264 = vpack.c.bf16 %v3153, %v3153
        %v3265 = vpack.c.bf16 %v3206, %v3206
        %v3267 = vsel %vm881, %v3264, 0
        %v3270 = vsel %vm881, %v3265, 0
        %3272 = vmatprep.subr.bf16.mxu0 0
        %3273 = vmatpush1.bf16.xpose.msra.mxu0 0
        %3274 = vmatprep.subr.bf16.mxu0 0
        %3275 = vmatpush1.bf16.xpose.msra.mxu0 0
        %3276 = vmatprep.subr.bf16.mxu0 0
        %3277 = vmatpush1.bf16.xpose.msra.mxu0 0
        %3278 = vmatprep.subr.bf16.mxu0 0
        %3279 = vmatpush1.bf16.xpose.msra.mxu0 0
        %3280 = vmatprep.subr.bf16.mxu0 0
        %3281 = vmatpush1.bf16.xpose.msra.mxu0 0
        %3282 = vmatprep.subr.bf16.mxu0 0
        %3283 = vmatpush1.bf16.xpose.msra.mxu0 0
        %3284 = vmatprep.subr.bf16.mxu0 0
        %3285 = vmatpush1.bf16.xpose.msra.mxu0 0
        %3286 = vmatprep.subr.bf16.mxu0 0
        %3287 = vmatpush1.bf16.xpose.msra.mxu0 %v3270
        %3288 = vmatprep.subr.bf16.mxu0 0
        %3289 = vmatpush2.bf16.xpose.msra.mxu0 0
        %3290 = vmatprep.subr.bf16.mxu0 0
        %3291 = vmatpush2.bf16.xpose.msra.mxu0 0
        %3292 = vmatprep.subr.bf16.mxu0 0
        %3293 = vmatpush2.bf16.xpose.msra.mxu0 0
        %3294 = vmatprep.subr.bf16.mxu0 0
        %3295 = vmatpush2.bf16.xpose.msra.mxu0 0
        %3296 = vmatprep.subr.bf16.mxu0 0
        %3297 = vmatpush2.bf16.xpose.msra.mxu0 0
        %3298 = vmatprep.subr.bf16.mxu0 0
        %3299 = vmatpush2.bf16.xpose.msra.mxu0 0
        %3300 = vmatprep.subr.bf16.mxu0 0
        %3301 = vmatpush2.bf16.xpose.msra.mxu0 0
        %3302 = vmatprep.subr.bf16.mxu0 0
        %3303 = vmatpush2.bf16.xpose.msra.mxu0 0
        %3304 = vmatprep.mubr.bf16.mxu0 0
        %3305 = vmatmul.mubr.bf16.gmra.mxu0 %v3267
        %v3306 = vpop.f32.mrf.mxu0
        %v3307 = vadd.f32 0.0, %v3306
        %v3308 = vpop.f32.mrf.mxu0
        %v3309 = vpop.f32.mrf.mxu0
        %v3310 = vpop.f32.mrf.mxu0
        %3311 = vdwg.mxu0
        %v3312 = vmul.f32 %v3307, 0.35355338
        %v3313 = vsel %vm713, %v3312, -1e+09
        %v3314 = vsel %vm881, %v3313, -inf
        %3315 = vmax.xlane.f32.xlu0 %v3314
        %v3316 = vpop.xlane.xlu0 %3315
        %v3317 = vsub.f32 %v3313, %v3316
        %v3318 = vmul.f32 %v3317, 1.442695
        %v3319 = vpow.pop %v3318
        %v3320 = vsel %vm881, %v3319, 0.0
        %3321 = vadd.xlane.f32.xlu0 %v3320
        %v3322 = vpop.xlane.xlu0 %3321
        %v3323 = vrcp.pop %v3322
        %v3324 = vmul.f32 %v3319, %v3323
        %v3325 = vpack.c.bf16 %v3324, %v3324
        %v3326 = vpack.c.bf16 %v3259, %v3259
        %v3328 = vsel %vm881, %v3325, 0
        %v3331 = vsel %vm946, %v3326, 0
        %3333 = vmatprep.subr.bf16.mxu0 0
        %3334 = vmatpush1.bf16.msra.mxu0 0
        %3335 = vmatprep.subr.bf16.mxu0 0
        %3336 = vmatpush1.bf16.msra.mxu0 0
        %3337 = vmatprep.subr.bf16.mxu0 0
        %3338 = vmatpush1.bf16.msra.mxu0 0
        %3339 = vmatprep.subr.bf16.mxu0 0
        %3340 = vmatpush1.bf16.msra.mxu0 0
        %3341 = vmatprep.subr.bf16.mxu0 0
        %3342 = vmatpush1.bf16.msra.mxu0 0
        %3343 = vmatprep.subr.bf16.mxu0 0
        %3344 = vmatpush1.bf16.msra.mxu0 0
        %3345 = vmatprep.subr.bf16.mxu0 0
        %3346 = vmatpush1.bf16.msra.mxu0 0
        %3347 = vmatprep.subr.bf16.mxu0 0
        %3348 = vmatpush1.bf16.msra.mxu0 %v3331
        %3349 = vmatprep.subr.bf16.mxu0 0
        %3350 = vmatpush2.bf16.msra.mxu0 0
        %3351 = vmatprep.subr.bf16.mxu0 0
        %3352 = vmatpush2.bf16.msra.mxu0 0
        %3353 = vmatprep.subr.bf16.mxu0 0
        %3354 = vmatpush2.bf16.msra.mxu0 0
        %3355 = vmatprep.subr.bf16.mxu0 0
        %3356 = vmatpush2.bf16.msra.mxu0 0
        %3357 = vmatprep.subr.bf16.mxu0 0
        %3358 = vmatpush2.bf16.msra.mxu0 0
        %3359 = vmatprep.subr.bf16.mxu0 0
        %3360 = vmatpush2.bf16.msra.mxu0 0
        %3361 = vmatprep.subr.bf16.mxu0 0
        %3362 = vmatpush2.bf16.msra.mxu0 0
        %3363 = vmatprep.subr.bf16.mxu0 0
        %3364 = vmatpush2.bf16.msra.mxu0 0
        %3365 = vmatprep.mubr.bf16.mxu0 0
        %3366 = vmatmul.mubr.bf16.gmra.mxu0 %v3328
        %v3367 = vpop.f32.mrf.mxu0
        %v3368 = vadd.f32 0.0, %v3367
        %v3369 = vpop.f32.mrf.mxu0
        %v3370 = vpop.f32.mrf.mxu0
        %v3371 = vpop.f32.mrf.mxu0
        %3372 = vdwg.mxu0
        %v3373 = vpack.c.bf16 %v3368, %v3368
        %s3374 = scalar_lea.vmem %s11, 48
        %v3375 = vld [vmem:[%s3374] sm:$0xf]
        %v3376 = vld [vmem:[%s3374 + $0x4] sm:$0xf]
        %v3377 = vld [vmem:[%s3374 + $0x8] sm:$0xf]
        %v3378 = vld [vmem:[%s3374 + $0xc] sm:$0xf]
        %v3383 = vunpack.c.l.b16 %v3375
        %v3384 = vunpack.c.l.b16 %v3376
        %v3385 = vunpack.c.l.b16 %v3377
        %v3386 = vunpack.c.l.b16 %v3378
        %v3387 = vpack.c.b16 %v3384, %v3383
        %v3388 = vpack.c.b16 %v3386, %v3385
        %v3390 = vsel %vm881, %v3373, 0
        %v3393 = vsel %vm881, %v3387, 0
        %v3396 = vsel %vm881, %v3388, 0
        %3398 = vmatprep.subr.bf16.mxu0 0
        %3399 = vmatpush1.bf16.xpose.msra.mxu0 0
        %3400 = vmatprep.subr.bf16.mxu0 0
        %3401 = vmatpush1.bf16.xpose.msra.mxu0 0
        %3402 = vmatprep.subr.bf16.mxu0 0
        %3403 = vmatpush1.bf16.xpose.msra.mxu0 0
        %3404 = vmatprep.subr.bf16.mxu0 0
        %3405 = vmatpush1.bf16.xpose.msra.mxu0 0
        %3406 = vmatprep.subr.bf16.mxu0 0
        %3407 = vmatpush1.bf16.xpose.msra.mxu0 0
        %3408 = vmatprep.subr.bf16.mxu0 0
        %3409 = vmatpush1.bf16.xpose.msra.mxu0 0
        %3410 = vmatprep.subr.bf16.mxu0 0
        %3411 = vmatpush1.bf16.xpose.msra.mxu0 %v3396
        %3412 = vmatprep.subr.bf16.mxu0 0
        %3413 = vmatpush1.bf16.xpose.msra.mxu0 %v3393
        %3414 = vmatprep.subr.bf16.mxu0 0
        %3415 = vmatpush2.bf16.xpose.msra.mxu0 0
        %3416 = vmatprep.subr.bf16.mxu0 0
        %3417 = vmatpush2.bf16.xpose.msra.mxu0 0
        %3418 = vmatprep.subr.bf16.mxu0 0
        %3419 = vmatpush2.bf16.xpose.msra.mxu0 0
        %3420 = vmatprep.subr.bf16.mxu0 0
        %3421 = vmatpush2.bf16.xpose.msra.mxu0 0
        %3422 = vmatprep.subr.bf16.mxu0 0
        %3423 = vmatpush2.bf16.xpose.msra.mxu0 0
        %3424 = vmatprep.subr.bf16.mxu0 0
        %3425 = vmatpush2.bf16.xpose.msra.mxu0 0
        %3426 = vmatprep.subr.bf16.mxu0 0
        %3427 = vmatpush2.bf16.xpose.msra.mxu0 0
        %3428 = vmatprep.subr.bf16.mxu0 0
        %3429 = vmatpush2.bf16.xpose.msra.mxu0 0
        %3430 = vmatprep.mubr.bf16.mxu0 0
        %3431 = vmatmul.mubr.bf16.gmra.mxu0 %v3390
        %v3432 = vpop.f32.mrf.mxu0
        %v3433 = vadd.f32 0.0, %v3432
        %v3434 = vpop.f32.mrf.mxu0
        %v3435 = vpop.f32.mrf.mxu0
        %v3436 = vpop.f32.mrf.mxu0
        %3437 = vdwg.mxu0
        %v3438 = vadd.f32 %v3104, %v3433
        %v3439 = vld [vmem:[%s12] sm:$0x1]
        %v3441 = vlaneseq
        %v3442 = vshrl.u32 %v3441, 7
        %v3443 = vsub.s32 0, %v3442
        %v3444 = vrot.slane %v3439, %v3443
        %v3446 = vadd.f32 %v3438, %v3444
        %v3447 = vadd.f32 %v2100, %v3446
        %s3448 = scalar_lea.vmem %s17, 1
        %v3449 = vld [vmem:[%s3448] sm:$0x1]
        %s3450 = scalar_lea.vmem %s18, 1
        %v3451 = vld [vmem:[%s3450] sm:$0x1]
        %v3452 = vsel %vm723, %v3447, 0.0
        %3453 = vadd.xlane.f32.xlu0 %v3452
        %v3454 = vpop.xlane.xlu0 %3453
        %v3455 = vmul.f32 %v3454, %v2069
        %v3456 = vsub.f32 %v3447, %v3455
        %v3457 = vmul.f32 %v3456, %v3456
        %v3458 = vsel %vm723, %v3457, 0.0
        %3459 = vadd.xlane.f32.xlu0 %v3458
        %v3460 = vpop.xlane.xlu0 %3459
        %v3461 = vmul.f32 %v3460, 0.032258064
        %v3462 = vrsqrt.pop %v3461
        %v3463 = vmul.f32 %v3461, %v3462
        %vm3464 = vcmp.eq.f32.partialorder %v3461, inf
        %v3465 = vsel %vm3464, %v3461, %v3463
        %vm3466 = vcmp.eq.f32.partialorder %v3461, 0.0
        %v3467 = vand.u32 %v3461, 2147483648
        %v3468 = vsel %vm3466, %v3467, %v3465
        %v3469 = vadd.f32 %v3468, 1e-06
        %v3470 = vrcp.pop %v3469
        %v3471 = vmul.f32 %v3456, %v3470
        %v3473 = vlaneseq
        %v3474 = vshrl.u32 %v3473, 7
        %v3475 = vsub.s32 0, %v3474
        %v3476 = vrot.slane %v3449, %v3475
        %v3478 = vmul.f32 %v3476, %v3471
        %v3480 = vlaneseq
        %v3481 = vshrl.u32 %v3480, 7
        %v3482 = vsub.s32 0, %v3481
        %v3483 = vrot.slane %v3451, %v3482
        %v3485 = vadd.f32 %v3478, %v3483
        %v3486 = vpack.c.bf16 %v3485, %v3485
        %v3487 = vld [vmem:[%s13] sm:$0xf]
        %v3488 = vld [vmem:[%s13 + $0x4] sm:$0xf]
        %v3489 = vld [vmem:[%s13 + $0x8] sm:$0xf]
        %v3490 = vld [vmem:[%s13 + $0xc] sm:$0xf]
        %v3491 = vld [vmem:[%s13 + $0x10] sm:$0xf]
        %v3492 = vld [vmem:[%s13 + $0x14] sm:$0xf]
        %v3493 = vld [vmem:[%s13 + $0x18] sm:$0xf]
        %v3494 = vld [vmem:[%s13 + $0x1c] sm:$0xf]
        %v3495 = vld [vmem:[%s14] sm:$0x1]
        %v3497 = vlaneseq
        %v3498 = vshrl.u32 %v3497, 7
        %v3499 = vsub.s32 0, %v3498
        %v3500 = vrot.slane %v3495, %v3499
        %v3510 = vunpack.c.l.b16 %v3487
        %v3511 = vunpack.c.l.b16 %v3488
        %v3512 = vunpack.c.l.b16 %v3489
        %v3513 = vunpack.c.l.b16 %v3490
        %v3514 = vunpack.c.l.b16 %v3491
        %v3515 = vunpack.c.l.b16 %v3492
        %v3516 = vunpack.c.l.b16 %v3493
        %v3517 = vunpack.c.l.b16 %v3494
        %v3518 = vpack.c.b16 %v3511, %v3510
        %v3519 = vpack.c.b16 %v3513, %v3512
        %v3520 = vpack.c.b16 %v3515, %v3514
        %v3521 = vpack.c.b16 %v3517, %v3516
        %v3523 = vsel %vm723, %v3486, 0
        %v3526 = vsel %vm723, %v3518, 0
        %v3529 = vsel %vm723, %v3519, 0
        %v3532 = vsel %vm723, %v3520, 0
        %v3535 = vsel %vm723, %v3521, 0
        %3537 = vmatprep.subr.bf16.mxu0 0
        %3538 = vmatpush1.bf16.xpose.msra.mxu0 0
        %3539 = vmatprep.subr.bf16.mxu0 0
        %3540 = vmatpush1.bf16.xpose.msra.mxu0 0
        %3541 = vmatprep.subr.bf16.mxu0 0
        %3542 = vmatpush1.bf16.xpose.msra.mxu0 0
        %3543 = vmatprep.subr.bf16.mxu0 0
        %3544 = vmatpush1.bf16.xpose.msra.mxu0 0
        %3545 = vmatprep.subr.bf16.mxu0 0
        %3546 = vmatpush1.bf16.xpose.msra.mxu0 %v3535
        %3547 = vmatprep.subr.bf16.mxu0 0
        %3548 = vmatpush1.bf16.xpose.msra.mxu0 %v3532
        %3549 = vmatprep.subr.bf16.mxu0 0
        %3550 = vmatpush1.bf16.xpose.msra.mxu0 %v3529
        %3551 = vmatprep.subr.bf16.mxu0 0
        %3552 = vmatpush1.bf16.xpose.msra.mxu0 %v3526
        %3553 = vmatprep.subr.bf16.mxu0 0
        %3554 = vmatpush2.bf16.xpose.msra.mxu0 0
        %3555 = vmatprep.subr.bf16.mxu0 0
        %3556 = vmatpush2.bf16.xpose.msra.mxu0 0
        %3557 = vmatprep.subr.bf16.mxu0 0
        %3558 = vmatpush2.bf16.xpose.msra.mxu0 0
        %3559 = vmatprep.subr.bf16.mxu0 0
        %3560 = vmatpush2.bf16.xpose.msra.mxu0 0
        %3561 = vmatprep.subr.bf16.mxu0 0
        %3562 = vmatpush2.bf16.xpose.msra.mxu0 0
        %3563 = vmatprep.subr.bf16.mxu0 0
        %3564 = vmatpush2.bf16.xpose.msra.mxu0 0
        %3565 = vmatprep.subr.bf16.mxu0 0
        %3566 = vmatpush2.bf16.xpose.msra.mxu0 0
        %3567 = vmatprep.subr.bf16.mxu0 0
        %3568 = vmatpush2.bf16.xpose.msra.mxu0 0
        %3569 = vmatprep.mubr.bf16.mxu0 0
        %3570 = vmatmul.mubr.bf16.gmra.mxu0 %v3523
        %v3571 = vpop.f32.mrf.mxu0
        %v3572 = vadd.f32 %v3500, %v3571
        %v3573 = vpop.f32.mrf.mxu0
        %v3574 = vpop.f32.mrf.mxu0
        %v3575 = vpop.f32.mrf.mxu0
        %3576 = vdwg.mxu0
        %v3577 = vmax.f32 %v3572, 0.0
        %v3578 = vpack.c.bf16 %v3577, %v3577
        %v3579 = vld [vmem:[%s15] sm:$0xf]
        %v3580 = vld [vmem:[%s15 + $0x4] sm:$0xf]
        %v3581 = vld [vmem:[%s15 + $0x8] sm:$0xf]
        %v3582 = vld [vmem:[%s15 + $0xc] sm:$0xf]
        %v3583 = vld [vmem:[%s16] sm:$0x1]
        %v3585 = vlaneseq
        %v3586 = vshrl.u32 %v3585, 7
        %v3587 = vsub.s32 0, %v3586
        %v3588 = vrot.slane %v3583, %v3587
        %v3594 = vunpack.c.l.b16 %v3579
        %v3595 = vunpack.c.l.b16 %v3580
        %v3596 = vunpack.c.l.b16 %v3581
        %v3597 = vunpack.c.l.b16 %v3582
        %v3598 = vpack.c.b16 %v3595, %v3594
        %v3599 = vpack.c.b16 %v3597, %v3596
        %vm3600 = vcmask 523264
        %v3602 = vsel %vm3600, %v3578, 0
        %v3605 = vsel %vm3600, %v3598, 0
        %v3608 = vsel %vm3600, %v3599, 0
        %3610 = vmatprep.subr.bf16.mxu0 0
        %3611 = vmatpush1.bf16.xpose.msra.mxu0 0
        %3612 = vmatprep.subr.bf16.mxu0 0
        %3613 = vmatpush1.bf16.xpose.msra.mxu0 0
        %3614 = vmatprep.subr.bf16.mxu0 0
        %3615 = vmatpush1.bf16.xpose.msra.mxu0 0
        %3616 = vmatprep.subr.bf16.mxu0 0
        %3617 = vmatpush1.bf16.xpose.msra.mxu0 0
        %3618 = vmatprep.subr.bf16.mxu0 0
        %3619 = vmatpush1.bf16.xpose.msra.mxu0 0
        %3620 = vmatprep.subr.bf16.mxu0 0
        %3621 = vmatpush1.bf16.xpose.msra.mxu0 0
        %3622 = vmatprep.subr.bf16.mxu0 0
        %3623 = vmatpush1.bf16.xpose.msra.mxu0 %v3608
        %3624 = vmatprep.subr.bf16.mxu0 0
        %3625 = vmatpush1.bf16.xpose.msra.mxu0 %v3605
        %3626 = vmatprep.subr.bf16.mxu0 0
        %3627 = vmatpush2.bf16.xpose.msra.mxu0 0
        %3628 = vmatprep.subr.bf16.mxu0 0
        %3629 = vmatpush2.bf16.xpose.msra.mxu0 0
        %3630 = vmatprep.subr.bf16.mxu0 0
        %3631 = vmatpush2.bf16.xpose.msra.mxu0 0
        %3632 = vmatprep.subr.bf16.mxu0 0
        %3633 = vmatpush2.bf16.xpose.msra.mxu0 0
        %3634 = vmatprep.subr.bf16.mxu0 0
        %3635 = vmatpush2.bf16.xpose.msra.mxu0 0
        %3636 = vmatprep.subr.bf16.mxu0 0
        %3637 = vmatpush2.bf16.xpose.msra.mxu0 0
        %3638 = vmatprep.subr.bf16.mxu0 0
        %3639 = vmatpush2.bf16.xpose.msra.mxu0 0
        %3640 = vmatprep.subr.bf16.mxu0 0
        %3641 = vmatpush2.bf16.xpose.msra.mxu0 0
        %3642 = vmatprep.mubr.bf16.mxu0 0
        %3643 = vmatmul.mubr.bf16.gmra.mxu0 %v3602
        %v3644 = vpop.f32.mrf.mxu0
        %v3645 = vadd.f32 %v3588, %v3644
        %v3646 = vpop.f32.mrf.mxu0
        %v3647 = vpop.f32.mrf.mxu0
        %v3648 = vpop.f32.mrf.mxu0
        %3649 = vdwg.mxu0
        %v3650 = vadd.f32 %v3485, %v3645
        %s3651 = scalar_lea.vmem %s17, 2
        %v3652 = vld [vmem:[%s3651] sm:$0x1]
        %s3653 = scalar_lea.vmem %s18, 2
        %v3654 = vld [vmem:[%s3653] sm:$0x1]
        %v3655 = vsel %vm723, %v3650, 0.0
        %3656 = vadd.xlane.f32.xlu0 %v3655
        %v3657 = vpop.xlane.xlu0 %3656
        %v3658 = vmul.f32 %v3657, %v2069
        %v3659 = vsub.f32 %v3650, %v3658
        %v3660 = vmul.f32 %v3659, %v3659
        %v3661 = vsel %vm723, %v3660, 0.0
        %3662 = vadd.xlane.f32.xlu0 %v3661
        %v3663 = vpop.xlane.xlu0 %3662
        %v3664 = vmul.f32 %v3663, 0.032258064
        %v3665 = vrsqrt.pop %v3664
        %v3666 = vmul.f32 %v3664, %v3665
        %vm3667 = vcmp.eq.f32.partialorder %v3664, inf
        %v3668 = vsel %vm3667, %v3664, %v3666
        %vm3669 = vcmp.eq.f32.partialorder %v3664, 0.0
        %v3670 = vand.u32 %v3664, 2147483648
        %v3671 = vsel %vm3669, %v3670, %v3668
        %v3672 = vadd.f32 %v3671, 1e-06
        %v3673 = vrcp.pop %v3672
        %v3674 = vmul.f32 %v3659, %v3673
        %v3676 = vlaneseq
        %v3677 = vshrl.u32 %v3676, 7
        %v3678 = vsub.s32 0, %v3677
        %v3679 = vrot.slane %v3652, %v3678
        %v3681 = vmul.f32 %v3679, %v3674
        %v3683 = vlaneseq
        %v3684 = vshrl.u32 %v3683, 7
        %v3685 = vsub.s32 0, %v3684
        %v3686 = vrot.slane %v3654, %v3685
        %v3688 = vadd.f32 %v3681, %v3686
        %3689 = vst.msk [vmem:[%s663] sm:$0xff] %vm723, %v3688
        %s3690 = sand.u32 %s481, 1
        %s3691 = scalar_lea.sflag [#allocation3], %s3690
        %s3692 = sand.u32 %s481, 1
        %s3693 = smul.addr %s3692, 8
        %s3694 = scalar_lea.vmem [#allocation2], %s3693
        // Predicated region
        $region97: #{decoder_layer_forward.1} parent=95 // pred_check
          %p3695 = pneg %p491
        $region98: #{decoder_layer_forward.1} parent=95 // pred_check_branch
          %3697 = sbr.rel (%p3695) target = $region100
        $region99: #{decoder_layer_forward.1} parent=95 // pred_region
          %s3699 = ssub.s32 128, 128
          %3700 = vsyncadd %s3691, %s3699
          %s3701 = sadd.s32 %s38, %s37
          %s3702 = smul.addr %s3701, 128
          %s3703 = scalar_lea.hbm %s19, %s3702
          %s3705 = sshll.u32 %s3694, 4
          %s3706 = int_to_ptr.vmem [resolvable:$true] %s3705
          %3708 = dma.vmem_to_hbm [thread:$0]  %s3706, 128, %s3703, %s3691
        $region100: #{decoder_layer_forward.1} parent=95 // pred_fallthru
          _
      $region96: #{decoder_layer_forward.1} parent=5 // pred_fallthru
        _
      %p3709 = scmp.le.s32.totalorder 2, %s28
      // Predicated region
      $region101: #{decoder_layer_forward.1} parent=5 // pred_check
        %p3710 = pneg %p3709
      $region102: #{decoder_layer_forward.1} parent=5 // pred_check_branch
        %3712 = sbr.rel (%p3710) target = $region104
      $region103: #{decoder_layer_forward.1} parent=5 // pred_region
        %s3713 = ssub.s32 %s28, 2
        // Predicated region
        $region105: #{decoder_layer_forward.1} parent=103 // pred_check
          %p3714 = pneg %p497
        $region106: #{decoder_layer_forward.1} parent=103 // pred_check_branch
          %3716 = sbr.rel (%p3714) target = $region108
        $region107: #{decoder_layer_forward.1} parent=103 // pred_region
          %s3717 = sand.u32 %s482, 1
          %s3718 = scalar_lea.sflag [#allocation3], %s3717
          %s3719 = sand.u32 %s482, 1
          %s3720 = smul.addr %s3719, 8
          %s3721 = scalar_lea.vmem [#allocation2], %s3720
          %3722 = dma.done %s3718, 128
        $region108: #{decoder_layer_forward.1} parent=103 // pred_fallthru
          _
      $region104: #{decoder_layer_forward.1} parent=5 // pred_fallthru
        _
    $region6: #{decoder_layer_forward.1} parent=1 // loop_footer
      %s32 = sadd.s32 1, %s28
    $region7: #{decoder_layer_forward.1} parent=1 // loop_footer_branch
      %27 = sbr.rel target = $region3
    $region8: #{decoder_layer_forward.1} parent=1 // loop_exit
      _
    %3723 = vsyncpa [#allocation3], 1
    %s3724 = scalar_lea.sflag [#allocation3], 1
    %3725 = vsyncpa %s3724, 1

</llo_original>
